<compile_context>
chip_gen: v7x
topology: tpu7x:2x2x1
jax: 0.10.0
libtpu: 0.0.40
codegen_flags: <defaults>
</compile_context>

<pallas_src>
import functools
import math

import jax
import jax.numpy as jnp
from jax.experimental import pallas as pl
from jax.experimental.pallas import tpu as pltpu


LANE = 128  # lane-pad for the classifier output so its store is lane-dense


# ----------------------------- fused forward kernel ------------------------

def _layernorm(x, g, b):
    mu = jnp.mean(x, axis=-1, keepdims=True)
    var = jnp.mean((x - mu) ** 2, axis=-1, keepdims=True)
    return (x - mu) * jax.lax.rsqrt(var + 1e-12) * g + b


def _mm(x_f32, w_bf16):
    # bf16 MXU matmul with f32 accumulation; weights are pre-cast to bf16 host-side.
    return jax.lax.dot_general(
        x_f32.astype(jnp.bfloat16), w_bf16,
        dimension_numbers=(((1,), (0,)), ((), ())),
        preferred_element_type=jnp.float32)


def _gelu(x):
    # tanh-approximate GELU (BERT intermediate activation), in f32 on the VPU/EUP.
    return 0.5 * x * (1.0 + jnp.tanh(0.7978845608028654 * (x + 0.044715 * x * x * x)))


def _bert_forward_kernel(*refs, B, S, H, nh, n_layers):
    hd = H // nh
    scale = 1.0 / math.sqrt(hd)
    bf16 = jnp.bfloat16

    # ---- unpack the flat ref list ----
    n_in = 4 + 12 * n_layers + 4
    emb_ref, mask_ref, emb_ln_g, emb_ln_b = refs[0:4]
    layer_refs = [refs[4 + 12 * l: 4 + 12 * (l + 1)] for l in range(n_layers)]
    pool_w, pool_b, fc_w, fc_b = refs[4 + 12 * n_layers:n_in]
    out_ref = refs[n_in]          # (B, LANE) f32 output (lane-padded logits)
    ctx_ref = refs[n_in + 1]      # (B*S, H)  f32 scratch: merged attention heads

    # ---- embeddings: LayerNorm only (gather happens host-side) ----
    hidden = _layernorm(emb_ref[...], emb_ln_g[...], emb_ln_b[...])   # (B*S, H) f32
    add_mask = mask_ref[...]                                          # (B, S)   f32

    # ---- transformer layers (statically unrolled) ----
    for l in range(n_layers):
        (wqkv, bqkv, wo, bo, ln1_g, ln1_b,
         w1, b1, w2, b2, ln2_g, ln2_b) = layer_refs[l]

        # Fused QKV projection: (B*S, 3H).  Cast to bf16 once; every head slice
        # below reuses that single cast (q/k/v feed the MXU directly).
        qkv = _mm(hidden, wqkv[...]) + bqkv[...]
        qkv_bf = qkv.astype(bf16)

        # Attention: all (batch, head) pairs unrolled inside this kernel; heads are
        # sliced straight out of the fused QKV slab and merged in the ctx scratch.
        for b in range(B):
            xb = qkv_bf[b * S:(b + 1) * S, :]     # (S, 3H) bf16
            mb = add_mask[b:b + 1, :]             # (1, S), broadcast over query rows
            for h in range(nh):
                q = xb[:, h * hd:(h + 1) * hd]
                k = xb[:, H + h * hd:H + (h + 1) * hd]
                v = xb[:, 2 * H + h * hd:2 * H + (h + 1) * hd]
                # q @ k^T without materializing the transpose.
                s = jax.lax.dot_general(
                    q, k, dimension_numbers=(((1,), (1,)), ((), ())),
                    preferred_element_type=jnp.float32) * scale
                s = s + mb
                s = s - jnp.max(s, axis=-1, keepdims=True)
                p = jnp.exp(s)
                p = p * pl.reciprocal(jnp.sum(p, axis=-1, keepdims=True), approx=True)
                ctx = jax.lax.dot_general(
                    p.astype(bf16), v,
                    dimension_numbers=(((1,), (0,)), ((), ())),
                    preferred_element_type=jnp.float32)
                ctx_ref[b * S:(b + 1) * S, h * hd:(h + 1) * hd] = ctx

        # Output projection + residual + LayerNorm, fused in-kernel.
        attn_out = _mm(ctx_ref[...], wo[...]) + bo[...]
        hidden = _layernorm(attn_out + hidden, ln1_g[...], ln1_b[...])

        # FFN (gelu) + residual + LayerNorm, fused in-kernel.
        ffn = _gelu(_mm(hidden, w1[...]) + b1[...])
        ffn = _mm(ffn, w2[...]) + b2[...]
        hidden = _layernorm(ffn + hidden, ln2_g[...], ln2_b[...])

    # ---- BERT pooler on [CLS] rows only: tanh(W h_cls + b) -> (B, H) ----
    cls = jnp.concatenate([hidden[b * S:b * S + 1, :] for b in range(B)], axis=0)
    pooled = jnp.tanh(_mm(cls, pool_w[...]) + pool_b[...])            # (B, H)

    # Dropout(p=0.3) is identity in inference mode.
    # TODO(synk): training-mode dropout (Bernoulli mask via pltpu.prng_*) not applied here.

    # ---- classifier into a lane-padded (B, 128) slab (dense lane store) ----
    out_ref[...] = (_mm(pooled, fc_w[...]) + fc_b[...]).astype(out_ref.dtype)


# ----------------------------- model definition ----------------------------

CFG = dict(
    vocab=100,
    max_pos=16,
    hidden=32,
    heads=4,
    layers=2,
    intermediate=64,
    n_classes=3,
)


def init_params(key, cfg):
    H, I, C = cfg["hidden"], cfg["intermediate"], cfg["n_classes"]

    def nrm(key, shape):
        return 0.02 * jax.random.normal(key, shape, dtype=jnp.float32)

    keys = iter(jax.random.split(key, 64))
    p = {
        "word_emb": nrm(next(keys), (cfg["vocab"], H)),
        "pos_emb": nrm(next(keys), (cfg["max_pos"], H)),
        "type_emb": nrm(next(keys), (2, H)),
        "emb_ln_g": jnp.ones((H,), jnp.float32),
        "emb_ln_b": jnp.zeros((H,), jnp.float32),
        "layers": [],
        "pool_w": nrm(next(keys), (H, H)),
        "pool_b": jnp.zeros((H,), jnp.float32),
        "fc_w": nrm(next(keys), (H, C)),
        "fc_b": jnp.zeros((C,), jnp.float32),
    }
    for _ in range(cfg["layers"]):
        p["layers"].append({
            "wq": nrm(next(keys), (H, H)), "bq": jnp.zeros((H,), jnp.float32),
            "wk": nrm(next(keys), (H, H)), "bk": jnp.zeros((H,), jnp.float32),
            "wv": nrm(next(keys), (H, H)), "bv": jnp.zeros((H,), jnp.float32),
            "wo": nrm(next(keys), (H, H)), "bo": jnp.zeros((H,), jnp.float32),
            "ln1_g": jnp.ones((H,), jnp.float32), "ln1_b": jnp.zeros((H,), jnp.float32),
            "w1": nrm(next(keys), (H, I)), "b1": jnp.zeros((I,), jnp.float32),
            "w2": nrm(next(keys), (I, H)), "b2": jnp.zeros((H,), jnp.float32),
            "ln2_g": jnp.ones((H,), jnp.float32), "ln2_b": jnp.zeros((H,), jnp.float32),
        })
    return p


def sentiment_classifier_forward(params, input_ids, attention_mask, cfg):
    B, S = input_ids.shape
    H, nh = cfg["hidden"], cfg["heads"]
    I, C = cfg["intermediate"], cfg["n_classes"]
    n_layers = len(params["layers"])
    bf16 = jnp.bfloat16

    # Embedding gather (glue) stays in plain JAX; everything else is in the fused kernel.
    emb = (params["word_emb"][input_ids]
           + params["pos_emb"][jnp.arange(S)][None, :, :]
           + params["type_emb"][0][None, None, :]).reshape(B * S, H).astype(jnp.float32)

    # Additive attention mask: (1 - mask) * -10000, shape (B, S).
    add_mask = (1.0 - attention_mask.astype(jnp.float32)) * -10000.0

    # Flat argument list; matmul weights pre-cast to bf16, Q/K/V fused to one (H, 3H).
    args = [emb, add_mask,
            params["emb_ln_g"].reshape(1, H), params["emb_ln_b"].reshape(1, H)]
    for lyr in params["layers"]:
        wqkv = jnp.concatenate([lyr["wq"], lyr["wk"], lyr["wv"]], axis=1).astype(bf16)
        bqkv = jnp.concatenate([lyr["bq"], lyr["bk"], lyr["bv"]]).reshape(1, 3 * H)
        args += [wqkv, bqkv,
                 lyr["wo"].astype(bf16), lyr["bo"].reshape(1, H),
                 lyr["ln1_g"].reshape(1, H), lyr["ln1_b"].reshape(1, H),
                 lyr["w1"].astype(bf16), lyr["b1"].reshape(1, I),
                 lyr["w2"].astype(bf16), lyr["b2"].reshape(1, H),
                 lyr["ln2_g"].reshape(1, H), lyr["ln2_b"].reshape(1, H)]
    # Lane-pad the classifier so the kernel's output store is lane-dense (last dim = 128).
    fc_w_pad = jnp.zeros((H, LANE), jnp.float32).at[:, :C].set(params["fc_w"]).astype(bf16)
    fc_b_pad = jnp.zeros((1, LANE), jnp.float32).at[0, :C].set(params["fc_b"])
    args += [params["pool_w"].astype(bf16), params["pool_b"].reshape(1, H),
             fc_w_pad, fc_b_pad]

    vmem = pl.BlockSpec(memory_space=pltpu.MemorySpace.VMEM)
    kernel = functools.partial(_bert_forward_kernel,
                               B=B, S=S, H=H, nh=nh, n_layers=n_layers)
    logits_pad = pl.pallas_call(
        kernel,
        out_shape=jax.ShapeDtypeStruct((B, LANE), jnp.float32),
        in_specs=[vmem] * len(args),
        out_specs=vmem,
        scratch_shapes=[pltpu.VMEM((B * S, H), jnp.float32)],   # merged-heads ctx
    )(*args)

    # Kernel already produced CLS-row logits; just drop the lane padding.
    return logits_pad[:, :C]


# --------------------------------- main -------------------------------------

if __name__ == "__main__":
    key = jax.random.PRNGKey(0)
    k_param, k_ids = jax.random.split(key)

    batch, seq = 2, 8
    params = init_params(k_param, CFG)

    input_ids = jax.random.randint(k_ids, (batch, seq), 0, CFG["vocab"], dtype=jnp.int32)
    attention_mask = jnp.array(
        [[1, 1, 1, 1, 1, 1, 1, 1],
         [1, 1, 1, 1, 1, 0, 0, 0]], dtype=jnp.int32)

    logits = sentiment_classifier_forward(params, input_ids, attention_mask, CFG)
    logits = jax.block_until_ready(logits)

    assert logits.shape == (batch, CFG["n_classes"])
    assert bool(jnp.all(jnp.isfinite(logits)))
    print("KERNEL_OK")
</pallas_src>

<mosaic_0001>
module attributes {stable_mosaic.version = 11 : i64} {
  func.func @_bert_forward_kernel(%arg0: memref<16x32xf32, #tpu.memory_space<vmem>>, %arg1: memref<2x8xf32, #tpu.memory_space<vmem>>, %arg2: memref<1x32xf32, #tpu.memory_space<vmem>>, %arg3: memref<1x32xf32, #tpu.memory_space<vmem>>, %arg4: memref<32x96xbf16, #tpu.memory_space<vmem>>, %arg5: memref<1x96xf32, #tpu.memory_space<vmem>>, %arg6: memref<32x32xbf16, #tpu.memory_space<vmem>>, %arg7: memref<1x32xf32, #tpu.memory_space<vmem>>, %arg8: memref<1x32xf32, #tpu.memory_space<vmem>>, %arg9: memref<1x32xf32, #tpu.memory_space<vmem>>, %arg10: memref<32x64xbf16, #tpu.memory_space<vmem>>, %arg11: memref<1x64xf32, #tpu.memory_space<vmem>>, %arg12: memref<64x32xbf16, #tpu.memory_space<vmem>>, %arg13: memref<1x32xf32, #tpu.memory_space<vmem>>, %arg14: memref<1x32xf32, #tpu.memory_space<vmem>>, %arg15: memref<1x32xf32, #tpu.memory_space<vmem>>, %arg16: memref<32x96xbf16, #tpu.memory_space<vmem>>, %arg17: memref<1x96xf32, #tpu.memory_space<vmem>>, %arg18: memref<32x32xbf16, #tpu.memory_space<vmem>>, %arg19: memref<1x32xf32, #tpu.memory_space<vmem>>, %arg20: memref<1x32xf32, #tpu.memory_space<vmem>>, %arg21: memref<1x32xf32, #tpu.memory_space<vmem>>, %arg22: memref<32x64xbf16, #tpu.memory_space<vmem>>, %arg23: memref<1x64xf32, #tpu.memory_space<vmem>>, %arg24: memref<64x32xbf16, #tpu.memory_space<vmem>>, %arg25: memref<1x32xf32, #tpu.memory_space<vmem>>, %arg26: memref<1x32xf32, #tpu.memory_space<vmem>>, %arg27: memref<1x32xf32, #tpu.memory_space<vmem>>, %arg28: memref<32x32xbf16, #tpu.memory_space<vmem>>, %arg29: memref<1x32xf32, #tpu.memory_space<vmem>>, %arg30: memref<32x128xbf16, #tpu.memory_space<vmem>>, %arg31: memref<1x128xf32, #tpu.memory_space<vmem>>, %arg32: memref<2x128xf32, #tpu.memory_space<vmem>>, %arg33: memref<16x32xf32, #tpu.memory_space<vmem>>) attributes {dimension_semantics = [], scalar_prefetch = 0 : i64, scratch_operands = 1 : i64, tpu.core_type = #tpu.core_type<tc>} {
    %c0 = arith.constant 0 : index
    %c0_0 = arith.constant 0 : index
    %0 = vector.load %arg0[%c0, %c0_0] : memref<16x32xf32, #tpu.memory_space<vmem>>, vector<16x32xf32>
    %c0_1 = arith.constant 0 : index
    %c0_2 = arith.constant 0 : index
    %1 = vector.load %arg2[%c0_1, %c0_2] : memref<1x32xf32, #tpu.memory_space<vmem>>, vector<1x32xf32>
    %c0_3 = arith.constant 0 : index
    %c0_4 = arith.constant 0 : index
    %2 = vector.load %arg3[%c0_3, %c0_4] : memref<1x32xf32, #tpu.memory_space<vmem>>, vector<1x32xf32>
    %cst = arith.constant dense<0.000000e+00> : vector<16xf32>
    %3 = vector.multi_reduction <add>, %0, %cst [1] : vector<16x32xf32> to vector<16xf32>
    %4 = vector.shape_cast %3 : vector<16xf32> to vector<16x1xf32>
    %cst_5 = arith.constant 3.200000e+01 : f32
    %5 = vector.broadcast %cst_5 : f32 to vector<16x1xf32>
    %6 = arith.divf %4, %5 : vector<16x1xf32>
    %7 = vector.broadcast %6 : vector<16x1xf32> to vector<16x32xf32>
    %8 = arith.subf %0, %7 : vector<16x32xf32>
    %9 = arith.mulf %8, %8 : vector<16x32xf32>
    %cst_6 = arith.constant dense<0.000000e+00> : vector<16xf32>
    %10 = vector.multi_reduction <add>, %9, %cst_6 [1] : vector<16x32xf32> to vector<16xf32>
    %11 = vector.shape_cast %10 : vector<16xf32> to vector<16x1xf32>
    %cst_7 = arith.constant 3.200000e+01 : f32
    %12 = vector.broadcast %cst_7 : f32 to vector<16x1xf32>
    %13 = arith.divf %11, %12 : vector<16x1xf32>
    %14 = vector.broadcast %6 : vector<16x1xf32> to vector<16x32xf32>
    %15 = arith.subf %0, %14 : vector<16x32xf32>
    %cst_8 = arith.constant 9.99999996E-13 : f32
    %16 = vector.broadcast %cst_8 : f32 to vector<16x1xf32>
    %17 = arith.addf %13, %16 : vector<16x1xf32>
    %18 = math.rsqrt %17 : vector<16x1xf32>
    %19 = vector.broadcast %18 : vector<16x1xf32> to vector<16x32xf32>
    %20 = arith.mulf %15, %19 : vector<16x32xf32>
    %21 = vector.broadcast %1 : vector<1x32xf32> to vector<16x32xf32>
    %22 = arith.mulf %20, %21 : vector<16x32xf32>
    %23 = vector.broadcast %2 : vector<1x32xf32> to vector<16x32xf32>
    %24 = arith.addf %22, %23 : vector<16x32xf32>
    %c0_9 = arith.constant 0 : index
    %c0_10 = arith.constant 0 : index
    %25 = vector.load %arg1[%c0_9, %c0_10] : memref<2x8xf32, #tpu.memory_space<vmem>>, vector<2x8xf32>
    %c0_11 = arith.constant 0 : index
    %c0_12 = arith.constant 0 : index
    %26 = vector.load %arg4[%c0_11, %c0_12] : memref<32x96xbf16, #tpu.memory_space<vmem>>, vector<32x96xbf16>
    %27 = arith.truncf %24 : vector<16x32xf32> to vector<16x32xbf16>
    %cst_13 = arith.constant dense<0.000000e+00> : vector<16x96xf32>
    %28 = tpu.matmul %27, %26, %cst_13 {dimension_numbers = #tpu.dot_dimension_numbers<[1], [0], [0], [1], [0, 0, 1, 1], [], []>} : vector<16x32xbf16>, vector<32x96xbf16>, vector<16x96xf32> -> vector<16x96xf32>
    %c0_14 = arith.constant 0 : index
    %c0_15 = arith.constant 0 : index
    %29 = vector.load %arg5[%c0_14, %c0_15] : memref<1x96xf32, #tpu.memory_space<vmem>>, vector<1x96xf32>
    %30 = vector.broadcast %29 : vector<1x96xf32> to vector<16x96xf32>
    %31 = arith.addf %28, %30 : vector<16x96xf32>
    %32 = arith.truncf %31 : vector<16x96xf32> to vector<16x96xbf16>
    %33 = vector.extract_strided_slice %32 {offsets = [0, 0], sizes = [8, 96], strides = [1, 1]} : vector<16x96xbf16> to vector<8x96xbf16>
    %34 = vector.extract_strided_slice %25 {offsets = [0, 0], sizes = [1, 8], strides = [1, 1]} : vector<2x8xf32> to vector<1x8xf32>
    %35 = vector.extract_strided_slice %33 {offsets = [0, 0], sizes = [8, 8], strides = [1, 1]} : vector<8x96xbf16> to vector<8x8xbf16>
    %36 = vector.extract_strided_slice %33 {offsets = [0, 32], sizes = [8, 8], strides = [1, 1]} : vector<8x96xbf16> to vector<8x8xbf16>
    %37 = vector.extract_strided_slice %33 {offsets = [0, 64], sizes = [8, 8], strides = [1, 1]} : vector<8x96xbf16> to vector<8x8xbf16>
    %cst_16 = arith.constant dense<0.000000e+00> : vector<8x8xf32>
    %38 = tpu.matmul %35, %36, %cst_16 {dimension_numbers = #tpu.dot_dimension_numbers<[1], [1], [0], [0], [0, 0, 1, 0], [], []>} : vector<8x8xbf16>, vector<8x8xbf16>, vector<8x8xf32> -> vector<8x8xf32>
    %cst_17 = arith.constant 0.353553385 : f32
    %39 = vector.broadcast %cst_17 : f32 to vector<8x8xf32>
    %40 = arith.mulf %38, %39 : vector<8x8xf32>
    %41 = vector.broadcast %34 : vector<1x8xf32> to vector<8x8xf32>
    %42 = arith.addf %40, %41 : vector<8x8xf32>
    %cst_18 = arith.constant dense<0xFF800000> : vector<8xf32>
    %43 = vector.multi_reduction <maximumf>, %42, %cst_18 [1] : vector<8x8xf32> to vector<8xf32>
    %44 = vector.shape_cast %43 : vector<8xf32> to vector<8x1xf32>
    %45 = vector.broadcast %44 : vector<8x1xf32> to vector<8x8xf32>
    %46 = arith.subf %42, %45 : vector<8x8xf32>
    %47 = math.exp %46 : vector<8x8xf32>
    %cst_19 = arith.constant dense<0.000000e+00> : vector<8xf32>
    %48 = vector.multi_reduction <add>, %47, %cst_19 [1] : vector<8x8xf32> to vector<8xf32>
    %49 = vector.shape_cast %48 : vector<8xf32> to vector<8x1xf32>
    %50 = tpu.reciprocal %49 {approx = true} : vector<8x1xf32> -> vector<8x1xf32>
    %51 = vector.broadcast %50 : vector<8x1xf32> to vector<8x8xf32>
    %52 = arith.mulf %47, %51 : vector<8x8xf32>
    %53 = arith.truncf %52 : vector<8x8xf32> to vector<8x8xbf16>
    %cst_20 = arith.constant dense<0.000000e+00> : vector<8x8xf32>
    %54 = tpu.matmul %53, %37, %cst_20 {dimension_numbers = #tpu.dot_dimension_numbers<[1], [0], [0], [1], [0, 0, 1, 1], [], []>} : vector<8x8xbf16>, vector<8x8xbf16>, vector<8x8xf32> -> vector<8x8xf32>
    %c0_21 = arith.constant 0 : index
    %c0_22 = arith.constant 0 : index
    %55 = vector.load %arg33[%c0_21, %c0_22] : memref<16x32xf32, #tpu.memory_space<vmem>>, vector<8x8xf32>
    tpu.vector_store %arg33[%c0_21, %c0_22], %54 {strides = array<i32>} : memref<16x32xf32, #tpu.memory_space<vmem>>, vector<8x8xf32>,
    %56 = vector.extract_strided_slice %33 {offsets = [0, 8], sizes = [8, 8], strides = [1, 1]} : vector<8x96xbf16> to vector<8x8xbf16>
    %57 = vector.extract_strided_slice %33 {offsets = [0, 40], sizes = [8, 8], strides = [1, 1]} : vector<8x96xbf16> to vector<8x8xbf16>
    %58 = vector.extract_strided_slice %33 {offsets = [0, 72], sizes = [8, 8], strides = [1, 1]} : vector<8x96xbf16> to vector<8x8xbf16>
    %cst_23 = arith.constant dense<0.000000e+00> : vector<8x8xf32>
    %59 = tpu.matmul %56, %57, %cst_23 {dimension_numbers = #tpu.dot_dimension_numbers<[1], [1], [0], [0], [0, 0, 1, 0], [], []>} : vector<8x8xbf16>, vector<8x8xbf16>, vector<8x8xf32> -> vector<8x8xf32>
    %cst_24 = arith.constant 0.353553385 : f32
    %60 = vector.broadcast %cst_24 : f32 to vector<8x8xf32>
    %61 = arith.mulf %59, %60 : vector<8x8xf32>
    %62 = vector.broadcast %34 : vector<1x8xf32> to vector<8x8xf32>
    %63 = arith.addf %61, %62 : vector<8x8xf32>
    %cst_25 = arith.constant dense<0xFF800000> : vector<8xf32>
    %64 = vector.multi_reduction <maximumf>, %63, %cst_25 [1] : vector<8x8xf32> to vector<8xf32>
    %65 = vector.shape_cast %64 : vector<8xf32> to vector<8x1xf32>
    %66 = vector.broadcast %65 : vector<8x1xf32> to vector<8x8xf32>
    %67 = arith.subf %63, %66 : vector<8x8xf32>
    %68 = math.exp %67 : vector<8x8xf32>
    %cst_26 = arith.constant dense<0.000000e+00> : vector<8xf32>
    %69 = vector.multi_reduction <add>, %68, %cst_26 [1] : vector<8x8xf32> to vector<8xf32>
    %70 = vector.shape_cast %69 : vector<8xf32> to vector<8x1xf32>
    %71 = tpu.reciprocal %70 {approx = true} : vector<8x1xf32> -> vector<8x1xf32>
    %72 = vector.broadcast %71 : vector<8x1xf32> to vector<8x8xf32>
    %73 = arith.mulf %68, %72 : vector<8x8xf32>
    %74 = arith.truncf %73 : vector<8x8xf32> to vector<8x8xbf16>
    %cst_27 = arith.constant dense<0.000000e+00> : vector<8x8xf32>
    %75 = tpu.matmul %74, %58, %cst_27 {dimension_numbers = #tpu.dot_dimension_numbers<[1], [0], [0], [1], [0, 0, 1, 1], [], []>} : vector<8x8xbf16>, vector<8x8xbf16>, vector<8x8xf32> -> vector<8x8xf32>
    %c0_28 = arith.constant 0 : index
    %c8 = arith.constant 8 : index
    %76 = vector.load %arg33[%c0_28, %c8] : memref<16x32xf32, #tpu.memory_space<vmem>>, vector<8x8xf32>
    tpu.vector_store %arg33[%c0_28, %c8], %75 {strides = array<i32>} : memref<16x32xf32, #tpu.memory_space<vmem>>, vector<8x8xf32>,
    %77 = vector.extract_strided_slice %33 {offsets = [0, 16], sizes = [8, 8], strides = [1, 1]} : vector<8x96xbf16> to vector<8x8xbf16>
    %78 = vector.extract_strided_slice %33 {offsets = [0, 48], sizes = [8, 8], strides = [1, 1]} : vector<8x96xbf16> to vector<8x8xbf16>
    %79 = vector.extract_strided_slice %33 {offsets = [0, 80], sizes = [8, 8], strides = [1, 1]} : vector<8x96xbf16> to vector<8x8xbf16>
    %cst_29 = arith.constant dense<0.000000e+00> : vector<8x8xf32>
    %80 = tpu.matmul %77, %78, %cst_29 {dimension_numbers = #tpu.dot_dimension_numbers<[1], [1], [0], [0], [0, 0, 1, 0], [], []>} : vector<8x8xbf16>, vector<8x8xbf16>, vector<8x8xf32> -> vector<8x8xf32>
    %cst_30 = arith.constant 0.353553385 : f32
    %81 = vector.broadcast %cst_30 : f32 to vector<8x8xf32>
    %82 = arith.mulf %80, %81 : vector<8x8xf32>
    %83 = vector.broadcast %34 : vector<1x8xf32> to vector<8x8xf32>
    %84 = arith.addf %82, %83 : vector<8x8xf32>
    %cst_31 = arith.constant dense<0xFF800000> : vector<8xf32>
    %85 = vector.multi_reduction <maximumf>, %84, %cst_31 [1] : vector<8x8xf32> to vector<8xf32>
    %86 = vector.shape_cast %85 : vector<8xf32> to vector<8x1xf32>
    %87 = vector.broadcast %86 : vector<8x1xf32> to vector<8x8xf32>
    %88 = arith.subf %84, %87 : vector<8x8xf32>
    %89 = math.exp %88 : vector<8x8xf32>
    %cst_32 = arith.constant dense<0.000000e+00> : vector<8xf32>
    %90 = vector.multi_reduction <add>, %89, %cst_32 [1] : vector<8x8xf32> to vector<8xf32>
    %91 = vector.shape_cast %90 : vector<8xf32> to vector<8x1xf32>
    %92 = tpu.reciprocal %91 {approx = true} : vector<8x1xf32> -> vector<8x1xf32>
    %93 = vector.broadcast %92 : vector<8x1xf32> to vector<8x8xf32>
    %94 = arith.mulf %89, %93 : vector<8x8xf32>
    %95 = arith.truncf %94 : vector<8x8xf32> to vector<8x8xbf16>
    %cst_33 = arith.constant dense<0.000000e+00> : vector<8x8xf32>
    %96 = tpu.matmul %95, %79, %cst_33 {dimension_numbers = #tpu.dot_dimension_numbers<[1], [0], [0], [1], [0, 0, 1, 1], [], []>} : vector<8x8xbf16>, vector<8x8xbf16>, vector<8x8xf32> -> vector<8x8xf32>
    %c0_34 = arith.constant 0 : index
    %c16 = arith.constant 16 : index
    %97 = vector.load %arg33[%c0_34, %c16] : memref<16x32xf32, #tpu.memory_space<vmem>>, vector<8x8xf32>
    tpu.vector_store %arg33[%c0_34, %c16], %96 {strides = array<i32>} : memref<16x32xf32, #tpu.memory_space<vmem>>, vector<8x8xf32>,
    %98 = vector.extract_strided_slice %33 {offsets = [0, 24], sizes = [8, 8], strides = [1, 1]} : vector<8x96xbf16> to vector<8x8xbf16>
    %99 = vector.extract_strided_slice %33 {offsets = [0, 56], sizes = [8, 8], strides = [1, 1]} : vector<8x96xbf16> to vector<8x8xbf16>
    %100 = vector.extract_strided_slice %33 {offsets = [0, 88], sizes = [8, 8], strides = [1, 1]} : vector<8x96xbf16> to vector<8x8xbf16>
    %cst_35 = arith.constant dense<0.000000e+00> : vector<8x8xf32>
    %101 = tpu.matmul %98, %99, %cst_35 {dimension_numbers = #tpu.dot_dimension_numbers<[1], [1], [0], [0], [0, 0, 1, 0], [], []>} : vector<8x8xbf16>, vector<8x8xbf16>, vector<8x8xf32> -> vector<8x8xf32>
    %cst_36 = arith.constant 0.353553385 : f32
    %102 = vector.broadcast %cst_36 : f32 to vector<8x8xf32>
    %103 = arith.mulf %101, %102 : vector<8x8xf32>
    %104 = vector.broadcast %34 : vector<1x8xf32> to vector<8x8xf32>
    %105 = arith.addf %103, %104 : vector<8x8xf32>
    %cst_37 = arith.constant dense<0xFF800000> : vector<8xf32>
    %106 = vector.multi_reduction <maximumf>, %105, %cst_37 [1] : vector<8x8xf32> to vector<8xf32>
    %107 = vector.shape_cast %106 : vector<8xf32> to vector<8x1xf32>
    %108 = vector.broadcast %107 : vector<8x1xf32> to vector<8x8xf32>
    %109 = arith.subf %105, %108 : vector<8x8xf32>
    %110 = math.exp %109 : vector<8x8xf32>
    %cst_38 = arith.constant dense<0.000000e+00> : vector<8xf32>
    %111 = vector.multi_reduction <add>, %110, %cst_38 [1] : vector<8x8xf32> to vector<8xf32>
    %112 = vector.shape_cast %111 : vector<8xf32> to vector<8x1xf32>
    %113 = tpu.reciprocal %112 {approx = true} : vector<8x1xf32> -> vector<8x1xf32>
    %114 = vector.broadcast %113 : vector<8x1xf32> to vector<8x8xf32>
    %115 = arith.mulf %110, %114 : vector<8x8xf32>
    %116 = arith.truncf %115 : vector<8x8xf32> to vector<8x8xbf16>
    %cst_39 = arith.constant dense<0.000000e+00> : vector<8x8xf32>
    %117 = tpu.matmul %116, %100, %cst_39 {dimension_numbers = #tpu.dot_dimension_numbers<[1], [0], [0], [1], [0, 0, 1, 1], [], []>} : vector<8x8xbf16>, vector<8x8xbf16>, vector<8x8xf32> -> vector<8x8xf32>
    %c0_40 = arith.constant 0 : index
    %c24 = arith.constant 24 : index
    %118 = vector.load %arg33[%c0_40, %c24] : memref<16x32xf32, #tpu.memory_space<vmem>>, vector<8x8xf32>
    tpu.vector_store %arg33[%c0_40, %c24], %117 {strides = array<i32>} : memref<16x32xf32, #tpu.memory_space<vmem>>, vector<8x8xf32>,
    %119 = vector.extract_strided_slice %32 {offsets = [8, 0], sizes = [8, 96], strides = [1, 1]} : vector<16x96xbf16> to vector<8x96xbf16>
    %120 = vector.extract_strided_slice %25 {offsets = [1, 0], sizes = [1, 8], strides = [1, 1]} : vector<2x8xf32> to vector<1x8xf32>
    %121 = vector.extract_strided_slice %119 {offsets = [0, 0], sizes = [8, 8], strides = [1, 1]} : vector<8x96xbf16> to vector<8x8xbf16>
    %122 = vector.extract_strided_slice %119 {offsets = [0, 32], sizes = [8, 8], strides = [1, 1]} : vector<8x96xbf16> to vector<8x8xbf16>
    %123 = vector.extract_strided_slice %119 {offsets = [0, 64], sizes = [8, 8], strides = [1, 1]} : vector<8x96xbf16> to vector<8x8xbf16>
    %cst_41 = arith.constant dense<0.000000e+00> : vector<8x8xf32>
    %124 = tpu.matmul %121, %122, %cst_41 {dimension_numbers = #tpu.dot_dimension_numbers<[1], [1], [0], [0], [0, 0, 1, 0], [], []>} : vector<8x8xbf16>, vector<8x8xbf16>, vector<8x8xf32> -> vector<8x8xf32>
    %cst_42 = arith.constant 0.353553385 : f32
    %125 = vector.broadcast %cst_42 : f32 to vector<8x8xf32>
    %126 = arith.mulf %124, %125 : vector<8x8xf32>
    %127 = vector.broadcast %120 : vector<1x8xf32> to vector<8x8xf32>
    %128 = arith.addf %126, %127 : vector<8x8xf32>
    %cst_43 = arith.constant dense<0xFF800000> : vector<8xf32>
    %129 = vector.multi_reduction <maximumf>, %128, %cst_43 [1] : vector<8x8xf32> to vector<8xf32>
    %130 = vector.shape_cast %129 : vector<8xf32> to vector<8x1xf32>
    %131 = vector.broadcast %130 : vector<8x1xf32> to vector<8x8xf32>
    %132 = arith.subf %128, %131 : vector<8x8xf32>
    %133 = math.exp %132 : vector<8x8xf32>
    %cst_44 = arith.constant dense<0.000000e+00> : vector<8xf32>
    %134 = vector.multi_reduction <add>, %133, %cst_44 [1] : vector<8x8xf32> to vector<8xf32>
    %135 = vector.shape_cast %134 : vector<8xf32> to vector<8x1xf32>
    %136 = tpu.reciprocal %135 {approx = true} : vector<8x1xf32> -> vector<8x1xf32>
    %137 = vector.broadcast %136 : vector<8x1xf32> to vector<8x8xf32>
    %138 = arith.mulf %133, %137 : vector<8x8xf32>
    %139 = arith.truncf %138 : vector<8x8xf32> to vector<8x8xbf16>
    %cst_45 = arith.constant dense<0.000000e+00> : vector<8x8xf32>
    %140 = tpu.matmul %139, %123, %cst_45 {dimension_numbers = #tpu.dot_dimension_numbers<[1], [0], [0], [1], [0, 0, 1, 1], [], []>} : vector<8x8xbf16>, vector<8x8xbf16>, vector<8x8xf32> -> vector<8x8xf32>
    %c8_46 = arith.constant 8 : index
    %c0_47 = arith.constant 0 : index
    %141 = vector.load %arg33[%c8_46, %c0_47] : memref<16x32xf32, #tpu.memory_space<vmem>>, vector<8x8xf32>
    tpu.vector_store %arg33[%c8_46, %c0_47], %140 {strides = array<i32>} : memref<16x32xf32, #tpu.memory_space<vmem>>, vector<8x8xf32>,
    %142 = vector.extract_strided_slice %119 {offsets = [0, 8], sizes = [8, 8], strides = [1, 1]} : vector<8x96xbf16> to vector<8x8xbf16>
    %143 = vector.extract_strided_slice %119 {offsets = [0, 40], sizes = [8, 8], strides = [1, 1]} : vector<8x96xbf16> to vector<8x8xbf16>
    %144 = vector.extract_strided_slice %119 {offsets = [0, 72], sizes = [8, 8], strides = [1, 1]} : vector<8x96xbf16> to vector<8x8xbf16>
    %cst_48 = arith.constant dense<0.000000e+00> : vector<8x8xf32>
    %145 = tpu.matmul %142, %143, %cst_48 {dimension_numbers = #tpu.dot_dimension_numbers<[1], [1], [0], [0], [0, 0, 1, 0], [], []>} : vector<8x8xbf16>, vector<8x8xbf16>, vector<8x8xf32> -> vector<8x8xf32>
    %cst_49 = arith.constant 0.353553385 : f32
    %146 = vector.broadcast %cst_49 : f32 to vector<8x8xf32>
    %147 = arith.mulf %145, %146 : vector<8x8xf32>
    %148 = vector.broadcast %120 : vector<1x8xf32> to vector<8x8xf32>
    %149 = arith.addf %147, %148 : vector<8x8xf32>
    %cst_50 = arith.constant dense<0xFF800000> : vector<8xf32>
    %150 = vector.multi_reduction <maximumf>, %149, %cst_50 [1] : vector<8x8xf32> to vector<8xf32>
    %151 = vector.shape_cast %150 : vector<8xf32> to vector<8x1xf32>
    %152 = vector.broadcast %151 : vector<8x1xf32> to vector<8x8xf32>
    %153 = arith.subf %149, %152 : vector<8x8xf32>
    %154 = math.exp %153 : vector<8x8xf32>
    %cst_51 = arith.constant dense<0.000000e+00> : vector<8xf32>
    %155 = vector.multi_reduction <add>, %154, %cst_51 [1] : vector<8x8xf32> to vector<8xf32>
    %156 = vector.shape_cast %155 : vector<8xf32> to vector<8x1xf32>
    %157 = tpu.reciprocal %156 {approx = true} : vector<8x1xf32> -> vector<8x1xf32>
    %158 = vector.broadcast %157 : vector<8x1xf32> to vector<8x8xf32>
    %159 = arith.mulf %154, %158 : vector<8x8xf32>
    %160 = arith.truncf %159 : vector<8x8xf32> to vector<8x8xbf16>
    %cst_52 = arith.constant dense<0.000000e+00> : vector<8x8xf32>
    %161 = tpu.matmul %160, %144, %cst_52 {dimension_numbers = #tpu.dot_dimension_numbers<[1], [0], [0], [1], [0, 0, 1, 1], [], []>} : vector<8x8xbf16>, vector<8x8xbf16>, vector<8x8xf32> -> vector<8x8xf32>
    %c8_53 = arith.constant 8 : index
    %c8_54 = arith.constant 8 : index
    %162 = vector.load %arg33[%c8_53, %c8_54] : memref<16x32xf32, #tpu.memory_space<vmem>>, vector<8x8xf32>
    tpu.vector_store %arg33[%c8_53, %c8_54], %161 {strides = array<i32>} : memref<16x32xf32, #tpu.memory_space<vmem>>, vector<8x8xf32>,
    %163 = vector.extract_strided_slice %119 {offsets = [0, 16], sizes = [8, 8], strides = [1, 1]} : vector<8x96xbf16> to vector<8x8xbf16>
    %164 = vector.extract_strided_slice %119 {offsets = [0, 48], sizes = [8, 8], strides = [1, 1]} : vector<8x96xbf16> to vector<8x8xbf16>
    %165 = vector.extract_strided_slice %119 {offsets = [0, 80], sizes = [8, 8], strides = [1, 1]} : vector<8x96xbf16> to vector<8x8xbf16>
    %cst_55 = arith.constant dense<0.000000e+00> : vector<8x8xf32>
    %166 = tpu.matmul %163, %164, %cst_55 {dimension_numbers = #tpu.dot_dimension_numbers<[1], [1], [0], [0], [0, 0, 1, 0], [], []>} : vector<8x8xbf16>, vector<8x8xbf16>, vector<8x8xf32> -> vector<8x8xf32>
    %cst_56 = arith.constant 0.353553385 : f32
    %167 = vector.broadcast %cst_56 : f32 to vector<8x8xf32>
    %168 = arith.mulf %166, %167 : vector<8x8xf32>
    %169 = vector.broadcast %120 : vector<1x8xf32> to vector<8x8xf32>
    %170 = arith.addf %168, %169 : vector<8x8xf32>
    %cst_57 = arith.constant dense<0xFF800000> : vector<8xf32>
    %171 = vector.multi_reduction <maximumf>, %170, %cst_57 [1] : vector<8x8xf32> to vector<8xf32>
    %172 = vector.shape_cast %171 : vector<8xf32> to vector<8x1xf32>
    %173 = vector.broadcast %172 : vector<8x1xf32> to vector<8x8xf32>
    %174 = arith.subf %170, %173 : vector<8x8xf32>
    %175 = math.exp %174 : vector<8x8xf32>
    %cst_58 = arith.constant dense<0.000000e+00> : vector<8xf32>
    %176 = vector.multi_reduction <add>, %175, %cst_58 [1] : vector<8x8xf32> to vector<8xf32>
    %177 = vector.shape_cast %176 : vector<8xf32> to vector<8x1xf32>
    %178 = tpu.reciprocal %177 {approx = true} : vector<8x1xf32> -> vector<8x1xf32>
    %179 = vector.broadcast %178 : vector<8x1xf32> to vector<8x8xf32>
    %180 = arith.mulf %175, %179 : vector<8x8xf32>
    %181 = arith.truncf %180 : vector<8x8xf32> to vector<8x8xbf16>
    %cst_59 = arith.constant dense<0.000000e+00> : vector<8x8xf32>
    %182 = tpu.matmul %181, %165, %cst_59 {dimension_numbers = #tpu.dot_dimension_numbers<[1], [0], [0], [1], [0, 0, 1, 1], [], []>} : vector<8x8xbf16>, vector<8x8xbf16>, vector<8x8xf32> -> vector<8x8xf32>
    %c8_60 = arith.constant 8 : index
    %c16_61 = arith.constant 16 : index
    %183 = vector.load %arg33[%c8_60, %c16_61] : memref<16x32xf32, #tpu.memory_space<vmem>>, vector<8x8xf32>
    tpu.vector_store %arg33[%c8_60, %c16_61], %182 {strides = array<i32>} : memref<16x32xf32, #tpu.memory_space<vmem>>, vector<8x8xf32>,
    %184 = vector.extract_strided_slice %119 {offsets = [0, 24], sizes = [8, 8], strides = [1, 1]} : vector<8x96xbf16> to vector<8x8xbf16>
    %185 = vector.extract_strided_slice %119 {offsets = [0, 56], sizes = [8, 8], strides = [1, 1]} : vector<8x96xbf16> to vector<8x8xbf16>
    %186 = vector.extract_strided_slice %119 {offsets = [0, 88], sizes = [8, 8], strides = [1, 1]} : vector<8x96xbf16> to vector<8x8xbf16>
    %cst_62 = arith.constant dense<0.000000e+00> : vector<8x8xf32>
    %187 = tpu.matmul %184, %185, %cst_62 {dimension_numbers = #tpu.dot_dimension_numbers<[1], [1], [0], [0], [0, 0, 1, 0], [], []>} : vector<8x8xbf16>, vector<8x8xbf16>, vector<8x8xf32> -> vector<8x8xf32>
    %cst_63 = arith.constant 0.353553385 : f32
    %188 = vector.broadcast %cst_63 : f32 to vector<8x8xf32>
    %189 = arith.mulf %187, %188 : vector<8x8xf32>
    %190 = vector.broadcast %120 : vector<1x8xf32> to vector<8x8xf32>
    %191 = arith.addf %189, %190 : vector<8x8xf32>
    %cst_64 = arith.constant dense<0xFF800000> : vector<8xf32>
    %192 = vector.multi_reduction <maximumf>, %191, %cst_64 [1] : vector<8x8xf32> to vector<8xf32>
    %193 = vector.shape_cast %192 : vector<8xf32> to vector<8x1xf32>
    %194 = vector.broadcast %193 : vector<8x1xf32> to vector<8x8xf32>
    %195 = arith.subf %191, %194 : vector<8x8xf32>
    %196 = math.exp %195 : vector<8x8xf32>
    %cst_65 = arith.constant dense<0.000000e+00> : vector<8xf32>
    %197 = vector.multi_reduction <add>, %196, %cst_65 [1] : vector<8x8xf32> to vector<8xf32>
    %198 = vector.shape_cast %197 : vector<8xf32> to vector<8x1xf32>
    %199 = tpu.reciprocal %198 {approx = true} : vector<8x1xf32> -> vector<8x1xf32>
    %200 = vector.broadcast %199 : vector<8x1xf32> to vector<8x8xf32>
    %201 = arith.mulf %196, %200 : vector<8x8xf32>
    %202 = arith.truncf %201 : vector<8x8xf32> to vector<8x8xbf16>
    %cst_66 = arith.constant dense<0.000000e+00> : vector<8x8xf32>
    %203 = tpu.matmul %202, %186, %cst_66 {dimension_numbers = #tpu.dot_dimension_numbers<[1], [0], [0], [1], [0, 0, 1, 1], [], []>} : vector<8x8xbf16>, vector<8x8xbf16>, vector<8x8xf32> -> vector<8x8xf32>
    %c8_67 = arith.constant 8 : index
    %c24_68 = arith.constant 24 : index
    %204 = vector.load %arg33[%c8_67, %c24_68] : memref<16x32xf32, #tpu.memory_space<vmem>>, vector<8x8xf32>
    tpu.vector_store %arg33[%c8_67, %c24_68], %203 {strides = array<i32>} : memref<16x32xf32, #tpu.memory_space<vmem>>, vector<8x8xf32>,
    %c0_69 = arith.constant 0 : index
    %c0_70 = arith.constant 0 : index
    %205 = vector.load %arg33[%c0_69, %c0_70] : memref<16x32xf32, #tpu.memory_space<vmem>>, vector<16x32xf32>
    %c0_71 = arith.constant 0 : index
    %c0_72 = arith.constant 0 : index
    %206 = vector.load %arg6[%c0_71, %c0_72] : memref<32x32xbf16, #tpu.memory_space<vmem>>, vector<32x32xbf16>
    %207 = arith.truncf %205 : vector<16x32xf32> to vector<16x32xbf16>
    %cst_73 = arith.constant dense<0.000000e+00> : vector<16x32xf32>
    %208 = tpu.matmul %207, %206, %cst_73 {dimension_numbers = #tpu.dot_dimension_numbers<[1], [0], [0], [1], [0, 0, 1, 1], [], []>} : vector<16x32xbf16>, vector<32x32xbf16>, vector<16x32xf32> -> vector<16x32xf32>
    %c0_74 = arith.constant 0 : index
    %c0_75 = arith.constant 0 : index
    %209 = vector.load %arg7[%c0_74, %c0_75] : memref<1x32xf32, #tpu.memory_space<vmem>>, vector<1x32xf32>
    %210 = vector.broadcast %209 : vector<1x32xf32> to vector<16x32xf32>
    %211 = arith.addf %208, %210 : vector<16x32xf32>
    %212 = arith.addf %211, %24 : vector<16x32xf32>
    %c0_76 = arith.constant 0 : index
    %c0_77 = arith.constant 0 : index
    %213 = vector.load %arg8[%c0_76, %c0_77] : memref<1x32xf32, #tpu.memory_space<vmem>>, vector<1x32xf32>
    %c0_78 = arith.constant 0 : index
    %c0_79 = arith.constant 0 : index
    %214 = vector.load %arg9[%c0_78, %c0_79] : memref<1x32xf32, #tpu.memory_space<vmem>>, vector<1x32xf32>
    %cst_80 = arith.constant dense<0.000000e+00> : vector<16xf32>
    %215 = vector.multi_reduction <add>, %212, %cst_80 [1] : vector<16x32xf32> to vector<16xf32>
    %216 = vector.shape_cast %215 : vector<16xf32> to vector<16x1xf32>
    %cst_81 = arith.constant 3.200000e+01 : f32
    %217 = vector.broadcast %cst_81 : f32 to vector<16x1xf32>
    %218 = arith.divf %216, %217 : vector<16x1xf32>
    %219 = vector.broadcast %218 : vector<16x1xf32> to vector<16x32xf32>
    %220 = arith.subf %212, %219 : vector<16x32xf32>
    %221 = arith.mulf %220, %220 : vector<16x32xf32>
    %cst_82 = arith.constant dense<0.000000e+00> : vector<16xf32>
    %222 = vector.multi_reduction <add>, %221, %cst_82 [1] : vector<16x32xf32> to vector<16xf32>
    %223 = vector.shape_cast %222 : vector<16xf32> to vector<16x1xf32>
    %cst_83 = arith.constant 3.200000e+01 : f32
    %224 = vector.broadcast %cst_83 : f32 to vector<16x1xf32>
    %225 = arith.divf %223, %224 : vector<16x1xf32>
    %226 = vector.broadcast %218 : vector<16x1xf32> to vector<16x32xf32>
    %227 = arith.subf %212, %226 : vector<16x32xf32>
    %cst_84 = arith.constant 9.99999996E-13 : f32
    %228 = vector.broadcast %cst_84 : f32 to vector<16x1xf32>
    %229 = arith.addf %225, %228 : vector<16x1xf32>
    %230 = math.rsqrt %229 : vector<16x1xf32>
    %231 = vector.broadcast %230 : vector<16x1xf32> to vector<16x32xf32>
    %232 = arith.mulf %227, %231 : vector<16x32xf32>
    %233 = vector.broadcast %213 : vector<1x32xf32> to vector<16x32xf32>
    %234 = arith.mulf %232, %233 : vector<16x32xf32>
    %235 = vector.broadcast %214 : vector<1x32xf32> to vector<16x32xf32>
    %236 = arith.addf %234, %235 : vector<16x32xf32>
    %c0_85 = arith.constant 0 : index
    %c0_86 = arith.constant 0 : index
    %237 = vector.load %arg10[%c0_85, %c0_86] : memref<32x64xbf16, #tpu.memory_space<vmem>>, vector<32x64xbf16>
    %238 = arith.truncf %236 : vector<16x32xf32> to vector<16x32xbf16>
    %cst_87 = arith.constant dense<0.000000e+00> : vector<16x64xf32>
    %239 = tpu.matmul %238, %237, %cst_87 {dimension_numbers = #tpu.dot_dimension_numbers<[1], [0], [0], [1], [0, 0, 1, 1], [], []>} : vector<16x32xbf16>, vector<32x64xbf16>, vector<16x64xf32> -> vector<16x64xf32>
    %c0_88 = arith.constant 0 : index
    %c0_89 = arith.constant 0 : index
    %240 = vector.load %arg11[%c0_88, %c0_89] : memref<1x64xf32, #tpu.memory_space<vmem>>, vector<1x64xf32>
    %241 = vector.broadcast %240 : vector<1x64xf32> to vector<16x64xf32>
    %242 = arith.addf %239, %241 : vector<16x64xf32>
    %cst_90 = arith.constant 5.000000e-01 : f32
    %243 = vector.broadcast %cst_90 : f32 to vector<16x64xf32>
    %244 = arith.mulf %243, %242 : vector<16x64xf32>
    %cst_91 = arith.constant 4.471500e-02 : f32
    %245 = vector.broadcast %cst_91 : f32 to vector<16x64xf32>
    %246 = arith.mulf %245, %242 : vector<16x64xf32>
    %247 = arith.mulf %246, %242 : vector<16x64xf32>
    %248 = arith.mulf %247, %242 : vector<16x64xf32>
    %249 = arith.addf %242, %248 : vector<16x64xf32>
    %cst_92 = arith.constant 0.797884583 : f32
    %250 = vector.broadcast %cst_92 : f32 to vector<16x64xf32>
    %251 = arith.mulf %250, %249 : vector<16x64xf32>
    %252 = math.tanh %251 : vector<16x64xf32>
    %cst_93 = arith.constant 1.000000e+00 : f32
    %253 = vector.broadcast %cst_93 : f32 to vector<16x64xf32>
    %254 = arith.addf %253, %252 : vector<16x64xf32>
    %255 = arith.mulf %244, %254 : vector<16x64xf32>
    %c0_94 = arith.constant 0 : index
    %c0_95 = arith.constant 0 : index
    %256 = vector.load %arg12[%c0_94, %c0_95] : memref<64x32xbf16, #tpu.memory_space<vmem>>, vector<64x32xbf16>
    %257 = arith.truncf %255 : vector<16x64xf32> to vector<16x64xbf16>
    %cst_96 = arith.constant dense<0.000000e+00> : vector<16x32xf32>
    %258 = tpu.matmul %257, %256, %cst_96 {dimension_numbers = #tpu.dot_dimension_numbers<[1], [0], [0], [1], [0, 0, 1, 1], [], []>} : vector<16x64xbf16>, vector<64x32xbf16>, vector<16x32xf32> -> vector<16x32xf32>
    %c0_97 = arith.constant 0 : index
    %c0_98 = arith.constant 0 : index
    %259 = vector.load %arg13[%c0_97, %c0_98] : memref<1x32xf32, #tpu.memory_space<vmem>>, vector<1x32xf32>
    %260 = vector.broadcast %259 : vector<1x32xf32> to vector<16x32xf32>
    %261 = arith.addf %258, %260 : vector<16x32xf32>
    %262 = arith.addf %261, %236 : vector<16x32xf32>
    %c0_99 = arith.constant 0 : index
    %c0_100 = arith.constant 0 : index
    %263 = vector.load %arg14[%c0_99, %c0_100] : memref<1x32xf32, #tpu.memory_space<vmem>>, vector<1x32xf32>
    %c0_101 = arith.constant 0 : index
    %c0_102 = arith.constant 0 : index
    %264 = vector.load %arg15[%c0_101, %c0_102] : memref<1x32xf32, #tpu.memory_space<vmem>>, vector<1x32xf32>
    %cst_103 = arith.constant dense<0.000000e+00> : vector<16xf32>
    %265 = vector.multi_reduction <add>, %262, %cst_103 [1] : vector<16x32xf32> to vector<16xf32>
    %266 = vector.shape_cast %265 : vector<16xf32> to vector<16x1xf32>
    %cst_104 = arith.constant 3.200000e+01 : f32
    %267 = vector.broadcast %cst_104 : f32 to vector<16x1xf32>
    %268 = arith.divf %266, %267 : vector<16x1xf32>
    %269 = vector.broadcast %268 : vector<16x1xf32> to vector<16x32xf32>
    %270 = arith.subf %262, %269 : vector<16x32xf32>
    %271 = arith.mulf %270, %270 : vector<16x32xf32>
    %cst_105 = arith.constant dense<0.000000e+00> : vector<16xf32>
    %272 = vector.multi_reduction <add>, %271, %cst_105 [1] : vector<16x32xf32> to vector<16xf32>
    %273 = vector.shape_cast %272 : vector<16xf32> to vector<16x1xf32>
    %cst_106 = arith.constant 3.200000e+01 : f32
    %274 = vector.broadcast %cst_106 : f32 to vector<16x1xf32>
    %275 = arith.divf %273, %274 : vector<16x1xf32>
    %276 = vector.broadcast %268 : vector<16x1xf32> to vector<16x32xf32>
    %277 = arith.subf %262, %276 : vector<16x32xf32>
    %cst_107 = arith.constant 9.99999996E-13 : f32
    %278 = vector.broadcast %cst_107 : f32 to vector<16x1xf32>
    %279 = arith.addf %275, %278 : vector<16x1xf32>
    %280 = math.rsqrt %279 : vector<16x1xf32>
    %281 = vector.broadcast %280 : vector<16x1xf32> to vector<16x32xf32>
    %282 = arith.mulf %277, %281 : vector<16x32xf32>
    %283 = vector.broadcast %263 : vector<1x32xf32> to vector<16x32xf32>
    %284 = arith.mulf %282, %283 : vector<16x32xf32>
    %285 = vector.broadcast %264 : vector<1x32xf32> to vector<16x32xf32>
    %286 = arith.addf %284, %285 : vector<16x32xf32>
    %c0_108 = arith.constant 0 : index
    %c0_109 = arith.constant 0 : index
    %287 = vector.load %arg16[%c0_108, %c0_109] : memref<32x96xbf16, #tpu.memory_space<vmem>>, vector<32x96xbf16>
    %288 = arith.truncf %286 : vector<16x32xf32> to vector<16x32xbf16>
    %cst_110 = arith.constant dense<0.000000e+00> : vector<16x96xf32>
    %289 = tpu.matmul %288, %287, %cst_110 {dimension_numbers = #tpu.dot_dimension_numbers<[1], [0], [0], [1], [0, 0, 1, 1], [], []>} : vector<16x32xbf16>, vector<32x96xbf16>, vector<16x96xf32> -> vector<16x96xf32>
    %c0_111 = arith.constant 0 : index
    %c0_112 = arith.constant 0 : index
    %290 = vector.load %arg17[%c0_111, %c0_112] : memref<1x96xf32, #tpu.memory_space<vmem>>, vector<1x96xf32>
    %291 = vector.broadcast %290 : vector<1x96xf32> to vector<16x96xf32>
    %292 = arith.addf %289, %291 : vector<16x96xf32>
    %293 = arith.truncf %292 : vector<16x96xf32> to vector<16x96xbf16>
    %294 = vector.extract_strided_slice %293 {offsets = [0, 0], sizes = [8, 96], strides = [1, 1]} : vector<16x96xbf16> to vector<8x96xbf16>
    %295 = vector.extract_strided_slice %25 {offsets = [0, 0], sizes = [1, 8], strides = [1, 1]} : vector<2x8xf32> to vector<1x8xf32>
    %296 = vector.extract_strided_slice %294 {offsets = [0, 0], sizes = [8, 8], strides = [1, 1]} : vector<8x96xbf16> to vector<8x8xbf16>
    %297 = vector.extract_strided_slice %294 {offsets = [0, 32], sizes = [8, 8], strides = [1, 1]} : vector<8x96xbf16> to vector<8x8xbf16>
    %298 = vector.extract_strided_slice %294 {offsets = [0, 64], sizes = [8, 8], strides = [1, 1]} : vector<8x96xbf16> to vector<8x8xbf16>
    %cst_113 = arith.constant dense<0.000000e+00> : vector<8x8xf32>
    %299 = tpu.matmul %296, %297, %cst_113 {dimension_numbers = #tpu.dot_dimension_numbers<[1], [1], [0], [0], [0, 0, 1, 0], [], []>} : vector<8x8xbf16>, vector<8x8xbf16>, vector<8x8xf32> -> vector<8x8xf32>
    %cst_114 = arith.constant 0.353553385 : f32
    %300 = vector.broadcast %cst_114 : f32 to vector<8x8xf32>
    %301 = arith.mulf %299, %300 : vector<8x8xf32>
    %302 = vector.broadcast %295 : vector<1x8xf32> to vector<8x8xf32>
    %303 = arith.addf %301, %302 : vector<8x8xf32>
    %cst_115 = arith.constant dense<0xFF800000> : vector<8xf32>
    %304 = vector.multi_reduction <maximumf>, %303, %cst_115 [1] : vector<8x8xf32> to vector<8xf32>
    %305 = vector.shape_cast %304 : vector<8xf32> to vector<8x1xf32>
    %306 = vector.broadcast %305 : vector<8x1xf32> to vector<8x8xf32>
    %307 = arith.subf %303, %306 : vector<8x8xf32>
    %308 = math.exp %307 : vector<8x8xf32>
    %cst_116 = arith.constant dense<0.000000e+00> : vector<8xf32>
    %309 = vector.multi_reduction <add>, %308, %cst_116 [1] : vector<8x8xf32> to vector<8xf32>
    %310 = vector.shape_cast %309 : vector<8xf32> to vector<8x1xf32>
    %311 = tpu.reciprocal %310 {approx = true} : vector<8x1xf32> -> vector<8x1xf32>
    %312 = vector.broadcast %311 : vector<8x1xf32> to vector<8x8xf32>
    %313 = arith.mulf %308, %312 : vector<8x8xf32>
    %314 = arith.truncf %313 : vector<8x8xf32> to vector<8x8xbf16>
    %cst_117 = arith.constant dense<0.000000e+00> : vector<8x8xf32>
    %315 = tpu.matmul %314, %298, %cst_117 {dimension_numbers = #tpu.dot_dimension_numbers<[1], [0], [0], [1], [0, 0, 1, 1], [], []>} : vector<8x8xbf16>, vector<8x8xbf16>, vector<8x8xf32> -> vector<8x8xf32>
    %c0_118 = arith.constant 0 : index
    %c0_119 = arith.constant 0 : index
    %316 = vector.load %arg33[%c0_118, %c0_119] : memref<16x32xf32, #tpu.memory_space<vmem>>, vector<8x8xf32>
    tpu.vector_store %arg33[%c0_118, %c0_119], %315 {strides = array<i32>} : memref<16x32xf32, #tpu.memory_space<vmem>>, vector<8x8xf32>,
    %317 = vector.extract_strided_slice %294 {offsets = [0, 8], sizes = [8, 8], strides = [1, 1]} : vector<8x96xbf16> to vector<8x8xbf16>
    %318 = vector.extract_strided_slice %294 {offsets = [0, 40], sizes = [8, 8], strides = [1, 1]} : vector<8x96xbf16> to vector<8x8xbf16>
    %319 = vector.extract_strided_slice %294 {offsets = [0, 72], sizes = [8, 8], strides = [1, 1]} : vector<8x96xbf16> to vector<8x8xbf16>
    %cst_120 = arith.constant dense<0.000000e+00> : vector<8x8xf32>
    %320 = tpu.matmul %317, %318, %cst_120 {dimension_numbers = #tpu.dot_dimension_numbers<[1], [1], [0], [0], [0, 0, 1, 0], [], []>} : vector<8x8xbf16>, vector<8x8xbf16>, vector<8x8xf32> -> vector<8x8xf32>
    %cst_121 = arith.constant 0.353553385 : f32
    %321 = vector.broadcast %cst_121 : f32 to vector<8x8xf32>
    %322 = arith.mulf %320, %321 : vector<8x8xf32>
    %323 = vector.broadcast %295 : vector<1x8xf32> to vector<8x8xf32>
    %324 = arith.addf %322, %323 : vector<8x8xf32>
    %cst_122 = arith.constant dense<0xFF800000> : vector<8xf32>
    %325 = vector.multi_reduction <maximumf>, %324, %cst_122 [1] : vector<8x8xf32> to vector<8xf32>
    %326 = vector.shape_cast %325 : vector<8xf32> to vector<8x1xf32>
    %327 = vector.broadcast %326 : vector<8x1xf32> to vector<8x8xf32>
    %328 = arith.subf %324, %327 : vector<8x8xf32>
    %329 = math.exp %328 : vector<8x8xf32>
    %cst_123 = arith.constant dense<0.000000e+00> : vector<8xf32>
    %330 = vector.multi_reduction <add>, %329, %cst_123 [1] : vector<8x8xf32> to vector<8xf32>
    %331 = vector.shape_cast %330 : vector<8xf32> to vector<8x1xf32>
    %332 = tpu.reciprocal %331 {approx = true} : vector<8x1xf32> -> vector<8x1xf32>
    %333 = vector.broadcast %332 : vector<8x1xf32> to vector<8x8xf32>
    %334 = arith.mulf %329, %333 : vector<8x8xf32>
    %335 = arith.truncf %334 : vector<8x8xf32> to vector<8x8xbf16>
    %cst_124 = arith.constant dense<0.000000e+00> : vector<8x8xf32>
    %336 = tpu.matmul %335, %319, %cst_124 {dimension_numbers = #tpu.dot_dimension_numbers<[1], [0], [0], [1], [0, 0, 1, 1], [], []>} : vector<8x8xbf16>, vector<8x8xbf16>, vector<8x8xf32> -> vector<8x8xf32>
    %c0_125 = arith.constant 0 : index
    %c8_126 = arith.constant 8 : index
    %337 = vector.load %arg33[%c0_125, %c8_126] : memref<16x32xf32, #tpu.memory_space<vmem>>, vector<8x8xf32>
    tpu.vector_store %arg33[%c0_125, %c8_126], %336 {strides = array<i32>} : memref<16x32xf32, #tpu.memory_space<vmem>>, vector<8x8xf32>,
    %338 = vector.extract_strided_slice %294 {offsets = [0, 16], sizes = [8, 8], strides = [1, 1]} : vector<8x96xbf16> to vector<8x8xbf16>
    %339 = vector.extract_strided_slice %294 {offsets = [0, 48], sizes = [8, 8], strides = [1, 1]} : vector<8x96xbf16> to vector<8x8xbf16>
    %340 = vector.extract_strided_slice %294 {offsets = [0, 80], sizes = [8, 8], strides = [1, 1]} : vector<8x96xbf16> to vector<8x8xbf16>
    %cst_127 = arith.constant dense<0.000000e+00> : vector<8x8xf32>
    %341 = tpu.matmul %338, %339, %cst_127 {dimension_numbers = #tpu.dot_dimension_numbers<[1], [1], [0], [0], [0, 0, 1, 0], [], []>} : vector<8x8xbf16>, vector<8x8xbf16>, vector<8x8xf32> -> vector<8x8xf32>
    %cst_128 = arith.constant 0.353553385 : f32
    %342 = vector.broadcast %cst_128 : f32 to vector<8x8xf32>
    %343 = arith.mulf %341, %342 : vector<8x8xf32>
    %344 = vector.broadcast %295 : vector<1x8xf32> to vector<8x8xf32>
    %345 = arith.addf %343, %344 : vector<8x8xf32>
    %cst_129 = arith.constant dense<0xFF800000> : vector<8xf32>
    %346 = vector.multi_reduction <maximumf>, %345, %cst_129 [1] : vector<8x8xf32> to vector<8xf32>
    %347 = vector.shape_cast %346 : vector<8xf32> to vector<8x1xf32>
    %348 = vector.broadcast %347 : vector<8x1xf32> to vector<8x8xf32>
    %349 = arith.subf %345, %348 : vector<8x8xf32>
    %350 = math.exp %349 : vector<8x8xf32>
    %cst_130 = arith.constant dense<0.000000e+00> : vector<8xf32>
    %351 = vector.multi_reduction <add>, %350, %cst_130 [1] : vector<8x8xf32> to vector<8xf32>
    %352 = vector.shape_cast %351 : vector<8xf32> to vector<8x1xf32>
    %353 = tpu.reciprocal %352 {approx = true} : vector<8x1xf32> -> vector<8x1xf32>
    %354 = vector.broadcast %353 : vector<8x1xf32> to vector<8x8xf32>
    %355 = arith.mulf %350, %354 : vector<8x8xf32>
    %356 = arith.truncf %355 : vector<8x8xf32> to vector<8x8xbf16>
    %cst_131 = arith.constant dense<0.000000e+00> : vector<8x8xf32>
    %357 = tpu.matmul %356, %340, %cst_131 {dimension_numbers = #tpu.dot_dimension_numbers<[1], [0], [0], [1], [0, 0, 1, 1], [], []>} : vector<8x8xbf16>, vector<8x8xbf16>, vector<8x8xf32> -> vector<8x8xf32>
    %c0_132 = arith.constant 0 : index
    %c16_133 = arith.constant 16 : index
    %358 = vector.load %arg33[%c0_132, %c16_133] : memref<16x32xf32, #tpu.memory_space<vmem>>, vector<8x8xf32>
    tpu.vector_store %arg33[%c0_132, %c16_133], %357 {strides = array<i32>} : memref<16x32xf32, #tpu.memory_space<vmem>>, vector<8x8xf32>,
    %359 = vector.extract_strided_slice %294 {offsets = [0, 24], sizes = [8, 8], strides = [1, 1]} : vector<8x96xbf16> to vector<8x8xbf16>
    %360 = vector.extract_strided_slice %294 {offsets = [0, 56], sizes = [8, 8], strides = [1, 1]} : vector<8x96xbf16> to vector<8x8xbf16>
    %361 = vector.extract_strided_slice %294 {offsets = [0, 88], sizes = [8, 8], strides = [1, 1]} : vector<8x96xbf16> to vector<8x8xbf16>
    %cst_134 = arith.constant dense<0.000000e+00> : vector<8x8xf32>
    %362 = tpu.matmul %359, %360, %cst_134 {dimension_numbers = #tpu.dot_dimension_numbers<[1], [1], [0], [0], [0, 0, 1, 0], [], []>} : vector<8x8xbf16>, vector<8x8xbf16>, vector<8x8xf32> -> vector<8x8xf32>
    %cst_135 = arith.constant 0.353553385 : f32
    %363 = vector.broadcast %cst_135 : f32 to vector<8x8xf32>
    %364 = arith.mulf %362, %363 : vector<8x8xf32>
    %365 = vector.broadcast %295 : vector<1x8xf32> to vector<8x8xf32>
    %366 = arith.addf %364, %365 : vector<8x8xf32>
    %cst_136 = arith.constant dense<0xFF800000> : vector<8xf32>
    %367 = vector.multi_reduction <maximumf>, %366, %cst_136 [1] : vector<8x8xf32> to vector<8xf32>
    %368 = vector.shape_cast %367 : vector<8xf32> to vector<8x1xf32>
    %369 = vector.broadcast %368 : vector<8x1xf32> to vector<8x8xf32>
    %370 = arith.subf %366, %369 : vector<8x8xf32>
    %371 = math.exp %370 : vector<8x8xf32>
    %cst_137 = arith.constant dense<0.000000e+00> : vector<8xf32>
    %372 = vector.multi_reduction <add>, %371, %cst_137 [1] : vector<8x8xf32> to vector<8xf32>
    %373 = vector.shape_cast %372 : vector<8xf32> to vector<8x1xf32>
    %374 = tpu.reciprocal %373 {approx = true} : vector<8x1xf32> -> vector<8x1xf32>
    %375 = vector.broadcast %374 : vector<8x1xf32> to vector<8x8xf32>
    %376 = arith.mulf %371, %375 : vector<8x8xf32>
    %377 = arith.truncf %376 : vector<8x8xf32> to vector<8x8xbf16>
    %cst_138 = arith.constant dense<0.000000e+00> : vector<8x8xf32>
    %378 = tpu.matmul %377, %361, %cst_138 {dimension_numbers = #tpu.dot_dimension_numbers<[1], [0], [0], [1], [0, 0, 1, 1], [], []>} : vector<8x8xbf16>, vector<8x8xbf16>, vector<8x8xf32> -> vector<8x8xf32>
    %c0_139 = arith.constant 0 : index
    %c24_140 = arith.constant 24 : index
    %379 = vector.load %arg33[%c0_139, %c24_140] : memref<16x32xf32, #tpu.memory_space<vmem>>, vector<8x8xf32>
    tpu.vector_store %arg33[%c0_139, %c24_140], %378 {strides = array<i32>} : memref<16x32xf32, #tpu.memory_space<vmem>>, vector<8x8xf32>,
    %380 = vector.extract_strided_slice %293 {offsets = [8, 0], sizes = [8, 96], strides = [1, 1]} : vector<16x96xbf16> to vector<8x96xbf16>
    %381 = vector.extract_strided_slice %25 {offsets = [1, 0], sizes = [1, 8], strides = [1, 1]} : vector<2x8xf32> to vector<1x8xf32>
    %382 = vector.extract_strided_slice %380 {offsets = [0, 0], sizes = [8, 8], strides = [1, 1]} : vector<8x96xbf16> to vector<8x8xbf16>
    %383 = vector.extract_strided_slice %380 {offsets = [0, 32], sizes = [8, 8], strides = [1, 1]} : vector<8x96xbf16> to vector<8x8xbf16>
    %384 = vector.extract_strided_slice %380 {offsets = [0, 64], sizes = [8, 8], strides = [1, 1]} : vector<8x96xbf16> to vector<8x8xbf16>
    %cst_141 = arith.constant dense<0.000000e+00> : vector<8x8xf32>
    %385 = tpu.matmul %382, %383, %cst_141 {dimension_numbers = #tpu.dot_dimension_numbers<[1], [1], [0], [0], [0, 0, 1, 0], [], []>} : vector<8x8xbf16>, vector<8x8xbf16>, vector<8x8xf32> -> vector<8x8xf32>
    %cst_142 = arith.constant 0.353553385 : f32
    %386 = vector.broadcast %cst_142 : f32 to vector<8x8xf32>
    %387 = arith.mulf %385, %386 : vector<8x8xf32>
    %388 = vector.broadcast %381 : vector<1x8xf32> to vector<8x8xf32>
    %389 = arith.addf %387, %388 : vector<8x8xf32>
    %cst_143 = arith.constant dense<0xFF800000> : vector<8xf32>
    %390 = vector.multi_reduction <maximumf>, %389, %cst_143 [1] : vector<8x8xf32> to vector<8xf32>
    %391 = vector.shape_cast %390 : vector<8xf32> to vector<8x1xf32>
    %392 = vector.broadcast %391 : vector<8x1xf32> to vector<8x8xf32>
    %393 = arith.subf %389, %392 : vector<8x8xf32>
    %394 = math.exp %393 : vector<8x8xf32>
    %cst_144 = arith.constant dense<0.000000e+00> : vector<8xf32>
    %395 = vector.multi_reduction <add>, %394, %cst_144 [1] : vector<8x8xf32> to vector<8xf32>
    %396 = vector.shape_cast %395 : vector<8xf32> to vector<8x1xf32>
    %397 = tpu.reciprocal %396 {approx = true} : vector<8x1xf32> -> vector<8x1xf32>
    %398 = vector.broadcast %397 : vector<8x1xf32> to vector<8x8xf32>
    %399 = arith.mulf %394, %398 : vector<8x8xf32>
    %400 = arith.truncf %399 : vector<8x8xf32> to vector<8x8xbf16>
    %cst_145 = arith.constant dense<0.000000e+00> : vector<8x8xf32>
    %401 = tpu.matmul %400, %384, %cst_145 {dimension_numbers = #tpu.dot_dimension_numbers<[1], [0], [0], [1], [0, 0, 1, 1], [], []>} : vector<8x8xbf16>, vector<8x8xbf16>, vector<8x8xf32> -> vector<8x8xf32>
    %c8_146 = arith.constant 8 : index
    %c0_147 = arith.constant 0 : index
    %402 = vector.load %arg33[%c8_146, %c0_147] : memref<16x32xf32, #tpu.memory_space<vmem>>, vector<8x8xf32>
    tpu.vector_store %arg33[%c8_146, %c0_147], %401 {strides = array<i32>} : memref<16x32xf32, #tpu.memory_space<vmem>>, vector<8x8xf32>,
    %403 = vector.extract_strided_slice %380 {offsets = [0, 8], sizes = [8, 8], strides = [1, 1]} : vector<8x96xbf16> to vector<8x8xbf16>
    %404 = vector.extract_strided_slice %380 {offsets = [0, 40], sizes = [8, 8], strides = [1, 1]} : vector<8x96xbf16> to vector<8x8xbf16>
    %405 = vector.extract_strided_slice %380 {offsets = [0, 72], sizes = [8, 8], strides = [1, 1]} : vector<8x96xbf16> to vector<8x8xbf16>
    %cst_148 = arith.constant dense<0.000000e+00> : vector<8x8xf32>
    %406 = tpu.matmul %403, %404, %cst_148 {dimension_numbers = #tpu.dot_dimension_numbers<[1], [1], [0], [0], [0, 0, 1, 0], [], []>} : vector<8x8xbf16>, vector<8x8xbf16>, vector<8x8xf32> -> vector<8x8xf32>
    %cst_149 = arith.constant 0.353553385 : f32
    %407 = vector.broadcast %cst_149 : f32 to vector<8x8xf32>
    %408 = arith.mulf %406, %407 : vector<8x8xf32>
    %409 = vector.broadcast %381 : vector<1x8xf32> to vector<8x8xf32>
    %410 = arith.addf %408, %409 : vector<8x8xf32>
    %cst_150 = arith.constant dense<0xFF800000> : vector<8xf32>
    %411 = vector.multi_reduction <maximumf>, %410, %cst_150 [1] : vector<8x8xf32> to vector<8xf32>
    %412 = vector.shape_cast %411 : vector<8xf32> to vector<8x1xf32>
    %413 = vector.broadcast %412 : vector<8x1xf32> to vector<8x8xf32>
    %414 = arith.subf %410, %413 : vector<8x8xf32>
    %415 = math.exp %414 : vector<8x8xf32>
    %cst_151 = arith.constant dense<0.000000e+00> : vector<8xf32>
    %416 = vector.multi_reduction <add>, %415, %cst_151 [1] : vector<8x8xf32> to vector<8xf32>
    %417 = vector.shape_cast %416 : vector<8xf32> to vector<8x1xf32>
    %418 = tpu.reciprocal %417 {approx = true} : vector<8x1xf32> -> vector<8x1xf32>
    %419 = vector.broadcast %418 : vector<8x1xf32> to vector<8x8xf32>
    %420 = arith.mulf %415, %419 : vector<8x8xf32>
    %421 = arith.truncf %420 : vector<8x8xf32> to vector<8x8xbf16>
    %cst_152 = arith.constant dense<0.000000e+00> : vector<8x8xf32>
    %422 = tpu.matmul %421, %405, %cst_152 {dimension_numbers = #tpu.dot_dimension_numbers<[1], [0], [0], [1], [0, 0, 1, 1], [], []>} : vector<8x8xbf16>, vector<8x8xbf16>, vector<8x8xf32> -> vector<8x8xf32>
    %c8_153 = arith.constant 8 : index
    %c8_154 = arith.constant 8 : index
    %423 = vector.load %arg33[%c8_153, %c8_154] : memref<16x32xf32, #tpu.memory_space<vmem>>, vector<8x8xf32>
    tpu.vector_store %arg33[%c8_153, %c8_154], %422 {strides = array<i32>} : memref<16x32xf32, #tpu.memory_space<vmem>>, vector<8x8xf32>,
    %424 = vector.extract_strided_slice %380 {offsets = [0, 16], sizes = [8, 8], strides = [1, 1]} : vector<8x96xbf16> to vector<8x8xbf16>
    %425 = vector.extract_strided_slice %380 {offsets = [0, 48], sizes = [8, 8], strides = [1, 1]} : vector<8x96xbf16> to vector<8x8xbf16>
    %426 = vector.extract_strided_slice %380 {offsets = [0, 80], sizes = [8, 8], strides = [1, 1]} : vector<8x96xbf16> to vector<8x8xbf16>
    %cst_155 = arith.constant dense<0.000000e+00> : vector<8x8xf32>
    %427 = tpu.matmul %424, %425, %cst_155 {dimension_numbers = #tpu.dot_dimension_numbers<[1], [1], [0], [0], [0, 0, 1, 0], [], []>} : vector<8x8xbf16>, vector<8x8xbf16>, vector<8x8xf32> -> vector<8x8xf32>
    %cst_156 = arith.constant 0.353553385 : f32
    %428 = vector.broadcast %cst_156 : f32 to vector<8x8xf32>
    %429 = arith.mulf %427, %428 : vector<8x8xf32>
    %430 = vector.broadcast %381 : vector<1x8xf32> to vector<8x8xf32>
    %431 = arith.addf %429, %430 : vector<8x8xf32>
    %cst_157 = arith.constant dense<0xFF800000> : vector<8xf32>
    %432 = vector.multi_reduction <maximumf>, %431, %cst_157 [1] : vector<8x8xf32> to vector<8xf32>
    %433 = vector.shape_cast %432 : vector<8xf32> to vector<8x1xf32>
    %434 = vector.broadcast %433 : vector<8x1xf32> to vector<8x8xf32>
    %435 = arith.subf %431, %434 : vector<8x8xf32>
    %436 = math.exp %435 : vector<8x8xf32>
    %cst_158 = arith.constant dense<0.000000e+00> : vector<8xf32>
    %437 = vector.multi_reduction <add>, %436, %cst_158 [1] : vector<8x8xf32> to vector<8xf32>
    %438 = vector.shape_cast %437 : vector<8xf32> to vector<8x1xf32>
    %439 = tpu.reciprocal %438 {approx = true} : vector<8x1xf32> -> vector<8x1xf32>
    %440 = vector.broadcast %439 : vector<8x1xf32> to vector<8x8xf32>
    %441 = arith.mulf %436, %440 : vector<8x8xf32>
    %442 = arith.truncf %441 : vector<8x8xf32> to vector<8x8xbf16>
    %cst_159 = arith.constant dense<0.000000e+00> : vector<8x8xf32>
    %443 = tpu.matmul %442, %426, %cst_159 {dimension_numbers = #tpu.dot_dimension_numbers<[1], [0], [0], [1], [0, 0, 1, 1], [], []>} : vector<8x8xbf16>, vector<8x8xbf16>, vector<8x8xf32> -> vector<8x8xf32>
    %c8_160 = arith.constant 8 : index
    %c16_161 = arith.constant 16 : index
    %444 = vector.load %arg33[%c8_160, %c16_161] : memref<16x32xf32, #tpu.memory_space<vmem>>, vector<8x8xf32>
    tpu.vector_store %arg33[%c8_160, %c16_161], %443 {strides = array<i32>} : memref<16x32xf32, #tpu.memory_space<vmem>>, vector<8x8xf32>,
    %445 = vector.extract_strided_slice %380 {offsets = [0, 24], sizes = [8, 8], strides = [1, 1]} : vector<8x96xbf16> to vector<8x8xbf16>
    %446 = vector.extract_strided_slice %380 {offsets = [0, 56], sizes = [8, 8], strides = [1, 1]} : vector<8x96xbf16> to vector<8x8xbf16>
    %447 = vector.extract_strided_slice %380 {offsets = [0, 88], sizes = [8, 8], strides = [1, 1]} : vector<8x96xbf16> to vector<8x8xbf16>
    %cst_162 = arith.constant dense<0.000000e+00> : vector<8x8xf32>
    %448 = tpu.matmul %445, %446, %cst_162 {dimension_numbers = #tpu.dot_dimension_numbers<[1], [1], [0], [0], [0, 0, 1, 0], [], []>} : vector<8x8xbf16>, vector<8x8xbf16>, vector<8x8xf32> -> vector<8x8xf32>
    %cst_163 = arith.constant 0.353553385 : f32
    %449 = vector.broadcast %cst_163 : f32 to vector<8x8xf32>
    %450 = arith.mulf %448, %449 : vector<8x8xf32>
    %451 = vector.broadcast %381 : vector<1x8xf32> to vector<8x8xf32>
    %452 = arith.addf %450, %451 : vector<8x8xf32>
    %cst_164 = arith.constant dense<0xFF800000> : vector<8xf32>
    %453 = vector.multi_reduction <maximumf>, %452, %cst_164 [1] : vector<8x8xf32> to vector<8xf32>
    %454 = vector.shape_cast %453 : vector<8xf32> to vector<8x1xf32>
    %455 = vector.broadcast %454 : vector<8x1xf32> to vector<8x8xf32>
    %456 = arith.subf %452, %455 : vector<8x8xf32>
    %457 = math.exp %456 : vector<8x8xf32>
    %cst_165 = arith.constant dense<0.000000e+00> : vector<8xf32>
    %458 = vector.multi_reduction <add>, %457, %cst_165 [1] : vector<8x8xf32> to vector<8xf32>
    %459 = vector.shape_cast %458 : vector<8xf32> to vector<8x1xf32>
    %460 = tpu.reciprocal %459 {approx = true} : vector<8x1xf32> -> vector<8x1xf32>
    %461 = vector.broadcast %460 : vector<8x1xf32> to vector<8x8xf32>
    %462 = arith.mulf %457, %461 : vector<8x8xf32>
    %463 = arith.truncf %462 : vector<8x8xf32> to vector<8x8xbf16>
    %cst_166 = arith.constant dense<0.000000e+00> : vector<8x8xf32>
    %464 = tpu.matmul %463, %447, %cst_166 {dimension_numbers = #tpu.dot_dimension_numbers<[1], [0], [0], [1], [0, 0, 1, 1], [], []>} : vector<8x8xbf16>, vector<8x8xbf16>, vector<8x8xf32> -> vector<8x8xf32>
    %c8_167 = arith.constant 8 : index
    %c24_168 = arith.constant 24 : index
    %465 = vector.load %arg33[%c8_167, %c24_168] : memref<16x32xf32, #tpu.memory_space<vmem>>, vector<8x8xf32>
    tpu.vector_store %arg33[%c8_167, %c24_168], %464 {strides = array<i32>} : memref<16x32xf32, #tpu.memory_space<vmem>>, vector<8x8xf32>,
    %c0_169 = arith.constant 0 : index
    %c0_170 = arith.constant 0 : index
    %466 = vector.load %arg33[%c0_169, %c0_170] : memref<16x32xf32, #tpu.memory_space<vmem>>, vector<16x32xf32>
    %c0_171 = arith.constant 0 : index
    %c0_172 = arith.constant 0 : index
    %467 = vector.load %arg18[%c0_171, %c0_172] : memref<32x32xbf16, #tpu.memory_space<vmem>>, vector<32x32xbf16>
    %468 = arith.truncf %466 : vector<16x32xf32> to vector<16x32xbf16>
    %cst_173 = arith.constant dense<0.000000e+00> : vector<16x32xf32>
    %469 = tpu.matmul %468, %467, %cst_173 {dimension_numbers = #tpu.dot_dimension_numbers<[1], [0], [0], [1], [0, 0, 1, 1], [], []>} : vector<16x32xbf16>, vector<32x32xbf16>, vector<16x32xf32> -> vector<16x32xf32>
    %c0_174 = arith.constant 0 : index
    %c0_175 = arith.constant 0 : index
    %470 = vector.load %arg19[%c0_174, %c0_175] : memref<1x32xf32, #tpu.memory_space<vmem>>, vector<1x32xf32>
    %471 = vector.broadcast %470 : vector<1x32xf32> to vector<16x32xf32>
    %472 = arith.addf %469, %471 : vector<16x32xf32>
    %473 = arith.addf %472, %286 : vector<16x32xf32>
    %c0_176 = arith.constant 0 : index
    %c0_177 = arith.constant 0 : index
    %474 = vector.load %arg20[%c0_176, %c0_177] : memref<1x32xf32, #tpu.memory_space<vmem>>, vector<1x32xf32>
    %c0_178 = arith.constant 0 : index
    %c0_179 = arith.constant 0 : index
    %475 = vector.load %arg21[%c0_178, %c0_179] : memref<1x32xf32, #tpu.memory_space<vmem>>, vector<1x32xf32>
    %cst_180 = arith.constant dense<0.000000e+00> : vector<16xf32>
    %476 = vector.multi_reduction <add>, %473, %cst_180 [1] : vector<16x32xf32> to vector<16xf32>
    %477 = vector.shape_cast %476 : vector<16xf32> to vector<16x1xf32>
    %cst_181 = arith.constant 3.200000e+01 : f32
    %478 = vector.broadcast %cst_181 : f32 to vector<16x1xf32>
    %479 = arith.divf %477, %478 : vector<16x1xf32>
    %480 = vector.broadcast %479 : vector<16x1xf32> to vector<16x32xf32>
    %481 = arith.subf %473, %480 : vector<16x32xf32>
    %482 = arith.mulf %481, %481 : vector<16x32xf32>
    %cst_182 = arith.constant dense<0.000000e+00> : vector<16xf32>
    %483 = vector.multi_reduction <add>, %482, %cst_182 [1] : vector<16x32xf32> to vector<16xf32>
    %484 = vector.shape_cast %483 : vector<16xf32> to vector<16x1xf32>
    %cst_183 = arith.constant 3.200000e+01 : f32
    %485 = vector.broadcast %cst_183 : f32 to vector<16x1xf32>
    %486 = arith.divf %484, %485 : vector<16x1xf32>
    %487 = vector.broadcast %479 : vector<16x1xf32> to vector<16x32xf32>
    %488 = arith.subf %473, %487 : vector<16x32xf32>
    %cst_184 = arith.constant 9.99999996E-13 : f32
    %489 = vector.broadcast %cst_184 : f32 to vector<16x1xf32>
    %490 = arith.addf %486, %489 : vector<16x1xf32>
    %491 = math.rsqrt %490 : vector<16x1xf32>
    %492 = vector.broadcast %491 : vector<16x1xf32> to vector<16x32xf32>
    %493 = arith.mulf %488, %492 : vector<16x32xf32>
    %494 = vector.broadcast %474 : vector<1x32xf32> to vector<16x32xf32>
    %495 = arith.mulf %493, %494 : vector<16x32xf32>
    %496 = vector.broadcast %475 : vector<1x32xf32> to vector<16x32xf32>
    %497 = arith.addf %495, %496 : vector<16x32xf32>
    %c0_185 = arith.constant 0 : index
    %c0_186 = arith.constant 0 : index
    %498 = vector.load %arg22[%c0_185, %c0_186] : memref<32x64xbf16, #tpu.memory_space<vmem>>, vector<32x64xbf16>
    %499 = arith.truncf %497 : vector<16x32xf32> to vector<16x32xbf16>
    %cst_187 = arith.constant dense<0.000000e+00> : vector<16x64xf32>
    %500 = tpu.matmul %499, %498, %cst_187 {dimension_numbers = #tpu.dot_dimension_numbers<[1], [0], [0], [1], [0, 0, 1, 1], [], []>} : vector<16x32xbf16>, vector<32x64xbf16>, vector<16x64xf32> -> vector<16x64xf32>
    %c0_188 = arith.constant 0 : index
    %c0_189 = arith.constant 0 : index
    %501 = vector.load %arg23[%c0_188, %c0_189] : memref<1x64xf32, #tpu.memory_space<vmem>>, vector<1x64xf32>
    %502 = vector.broadcast %501 : vector<1x64xf32> to vector<16x64xf32>
    %503 = arith.addf %500, %502 : vector<16x64xf32>
    %cst_190 = arith.constant 5.000000e-01 : f32
    %504 = vector.broadcast %cst_190 : f32 to vector<16x64xf32>
    %505 = arith.mulf %504, %503 : vector<16x64xf32>
    %cst_191 = arith.constant 4.471500e-02 : f32
    %506 = vector.broadcast %cst_191 : f32 to vector<16x64xf32>
    %507 = arith.mulf %506, %503 : vector<16x64xf32>
    %508 = arith.mulf %507, %503 : vector<16x64xf32>
    %509 = arith.mulf %508, %503 : vector<16x64xf32>
    %510 = arith.addf %503, %509 : vector<16x64xf32>
    %cst_192 = arith.constant 0.797884583 : f32
    %511 = vector.broadcast %cst_192 : f32 to vector<16x64xf32>
    %512 = arith.mulf %511, %510 : vector<16x64xf32>
    %513 = math.tanh %512 : vector<16x64xf32>
    %cst_193 = arith.constant 1.000000e+00 : f32
    %514 = vector.broadcast %cst_193 : f32 to vector<16x64xf32>
    %515 = arith.addf %514, %513 : vector<16x64xf32>
    %516 = arith.mulf %505, %515 : vector<16x64xf32>
    %c0_194 = arith.constant 0 : index
    %c0_195 = arith.constant 0 : index
    %517 = vector.load %arg24[%c0_194, %c0_195] : memref<64x32xbf16, #tpu.memory_space<vmem>>, vector<64x32xbf16>
    %518 = arith.truncf %516 : vector<16x64xf32> to vector<16x64xbf16>
    %cst_196 = arith.constant dense<0.000000e+00> : vector<16x32xf32>
    %519 = tpu.matmul %518, %517, %cst_196 {dimension_numbers = #tpu.dot_dimension_numbers<[1], [0], [0], [1], [0, 0, 1, 1], [], []>} : vector<16x64xbf16>, vector<64x32xbf16>, vector<16x32xf32> -> vector<16x32xf32>
    %c0_197 = arith.constant 0 : index
    %c0_198 = arith.constant 0 : index
    %520 = vector.load %arg25[%c0_197, %c0_198] : memref<1x32xf32, #tpu.memory_space<vmem>>, vector<1x32xf32>
    %521 = vector.broadcast %520 : vector<1x32xf32> to vector<16x32xf32>
    %522 = arith.addf %519, %521 : vector<16x32xf32>
    %523 = arith.addf %522, %497 : vector<16x32xf32>
    %c0_199 = arith.constant 0 : index
    %c0_200 = arith.constant 0 : index
    %524 = vector.load %arg26[%c0_199, %c0_200] : memref<1x32xf32, #tpu.memory_space<vmem>>, vector<1x32xf32>
    %c0_201 = arith.constant 0 : index
    %c0_202 = arith.constant 0 : index
    %525 = vector.load %arg27[%c0_201, %c0_202] : memref<1x32xf32, #tpu.memory_space<vmem>>, vector<1x32xf32>
    %cst_203 = arith.constant dense<0.000000e+00> : vector<16xf32>
    %526 = vector.multi_reduction <add>, %523, %cst_203 [1] : vector<16x32xf32> to vector<16xf32>
    %527 = vector.shape_cast %526 : vector<16xf32> to vector<16x1xf32>
    %cst_204 = arith.constant 3.200000e+01 : f32
    %528 = vector.broadcast %cst_204 : f32 to vector<16x1xf32>
    %529 = arith.divf %527, %528 : vector<16x1xf32>
    %530 = vector.broadcast %529 : vector<16x1xf32> to vector<16x32xf32>
    %531 = arith.subf %523, %530 : vector<16x32xf32>
    %532 = arith.mulf %531, %531 : vector<16x32xf32>
    %cst_205 = arith.constant dense<0.000000e+00> : vector<16xf32>
    %533 = vector.multi_reduction <add>, %532, %cst_205 [1] : vector<16x32xf32> to vector<16xf32>
    %534 = vector.shape_cast %533 : vector<16xf32> to vector<16x1xf32>
    %cst_206 = arith.constant 3.200000e+01 : f32
    %535 = vector.broadcast %cst_206 : f32 to vector<16x1xf32>
    %536 = arith.divf %534, %535 : vector<16x1xf32>
    %537 = vector.broadcast %529 : vector<16x1xf32> to vector<16x32xf32>
    %538 = arith.subf %523, %537 : vector<16x32xf32>
    %cst_207 = arith.constant 9.99999996E-13 : f32
    %539 = vector.broadcast %cst_207 : f32 to vector<16x1xf32>
    %540 = arith.addf %536, %539 : vector<16x1xf32>
    %541 = math.rsqrt %540 : vector<16x1xf32>
    %542 = vector.broadcast %541 : vector<16x1xf32> to vector<16x32xf32>
    %543 = arith.mulf %538, %542 : vector<16x32xf32>
    %544 = vector.broadcast %524 : vector<1x32xf32> to vector<16x32xf32>
    %545 = arith.mulf %543, %544 : vector<16x32xf32>
    %546 = vector.broadcast %525 : vector<1x32xf32> to vector<16x32xf32>
    %547 = arith.addf %545, %546 : vector<16x32xf32>
    %548 = vector.extract_strided_slice %547 {offsets = [0, 0], sizes = [1, 32], strides = [1, 1]} : vector<16x32xf32> to vector<1x32xf32>
    %549 = vector.extract_strided_slice %547 {offsets = [8, 0], sizes = [1, 32], strides = [1, 1]} : vector<16x32xf32> to vector<1x32xf32>
    %550 = tpu.concatenate %548, %549 in 0 : vector<1x32xf32>, vector<1x32xf32> -> vector<2x32xf32>
    %c0_208 = arith.constant 0 : index
    %c0_209 = arith.constant 0 : index
    %551 = vector.load %arg28[%c0_208, %c0_209] : memref<32x32xbf16, #tpu.memory_space<vmem>>, vector<32x32xbf16>
    %552 = arith.truncf %550 : vector<2x32xf32> to vector<2x32xbf16>
    %cst_210 = arith.constant dense<0.000000e+00> : vector<2x32xf32>
    %553 = tpu.matmul %552, %551, %cst_210 {dimension_numbers = #tpu.dot_dimension_numbers<[1], [0], [0], [1], [0, 0, 1, 1], [], []>} : vector<2x32xbf16>, vector<32x32xbf16>, vector<2x32xf32> -> vector<2x32xf32>
    %c0_211 = arith.constant 0 : index
    %c0_212 = arith.constant 0 : index
    %554 = vector.load %arg29[%c0_211, %c0_212] : memref<1x32xf32, #tpu.memory_space<vmem>>, vector<1x32xf32>
    %555 = vector.broadcast %554 : vector<1x32xf32> to vector<2x32xf32>
    %556 = arith.addf %553, %555 : vector<2x32xf32>
    %557 = math.tanh %556 : vector<2x32xf32>
    %c0_213 = arith.constant 0 : index
    %c0_214 = arith.constant 0 : index
    %558 = vector.load %arg30[%c0_213, %c0_214] : memref<32x128xbf16, #tpu.memory_space<vmem>>, vector<32x128xbf16>
    %559 = arith.truncf %557 : vector<2x32xf32> to vector<2x32xbf16>
    %cst_215 = arith.constant dense<0.000000e+00> : vector<2x128xf32>
    %560 = tpu.matmul %559, %558, %cst_215 {dimension_numbers = #tpu.dot_dimension_numbers<[1], [0], [0], [1], [0, 0, 1, 1], [], []>} : vector<2x32xbf16>, vector<32x128xbf16>, vector<2x128xf32> -> vector<2x128xf32>
    %c0_216 = arith.constant 0 : index
    %c0_217 = arith.constant 0 : index
    %561 = vector.load %arg31[%c0_216, %c0_217] : memref<1x128xf32, #tpu.memory_space<vmem>>, vector<1x128xf32>
    %562 = vector.broadcast %561 : vector<1x128xf32> to vector<2x128xf32>
    %563 = arith.addf %560, %562 : vector<2x128xf32>
    %c0_218 = arith.constant 0 : index
    %c0_219 = arith.constant 0 : index
    %564 = vector.load %arg32[%c0_218, %c0_219] : memref<2x128xf32, #tpu.memory_space<vmem>>, vector<2x128xf32>
    tpu.vector_store %arg32[%c0_218, %c0_219], %563 {strides = array<i32>} : memref<2x128xf32, #tpu.memory_space<vmem>>, vector<2x128xf32>,
    return
  }
}

</mosaic_0001>

<llo_original>
// kernel: tpu_custom_call.1
$region0: #{tpu_custom_call.1}
  #allocation0 [shape = 'u32[]', space=smem, size = 0x4, offset = 0x4, fixed_abs, tag = 'smem constant byte address 0x4 - core index']
  #allocation1 [shape = 'u32[144,128]{1,0:T(1,128)}', space=vmem, size = 0x12000, scoped, tag = 'internal scratch']
  #allocation2 [shape = 'f32[16,32]{1,0:T(8,128)}', space=vmem, size = 0x2000, scoped, tag = 'scratch operand']
  %s0 = inlined_call_operand.smem [shape: u32[33], index: -1, kind: input, shape index: {}]
  %s1 = sld [smem:[%s0]]
  %s2 = scalar_lea.smem %s0, 1
  %s3 = sld [smem:[%s2]]
  %s4 = scalar_lea.smem %s0, 2
  %s5 = sld [smem:[%s4]]
  %s6 = scalar_lea.smem %s0, 3
  %s7 = sld [smem:[%s6]]
  %s8 = scalar_lea.smem %s0, 4
  %s9 = sld [smem:[%s8]]
  %s10 = scalar_lea.smem %s0, 5
  %s11 = sld [smem:[%s10]]
  %s12 = scalar_lea.smem %s0, 6
  %s13 = sld [smem:[%s12]]
  %s14 = scalar_lea.smem %s0, 7
  %s15 = sld [smem:[%s14]]
  %s16 = scalar_lea.smem %s0, 8
  %s17 = sld [smem:[%s16]]
  %s18 = scalar_lea.smem %s0, 9
  %s19 = sld [smem:[%s18]]
  %s20 = scalar_lea.smem %s0, 10
  %s21 = sld [smem:[%s20]]
  %s22 = scalar_lea.smem %s0, 11
  %s23 = sld [smem:[%s22]]
  %s24 = scalar_lea.smem %s0, 12
  %s25 = sld [smem:[%s24]]
  %s26 = scalar_lea.smem %s0, 13
  %s27 = sld [smem:[%s26]]
  %s28 = scalar_lea.smem %s0, 14
  %s29 = sld [smem:[%s28]]
  %s30 = scalar_lea.smem %s0, 15
  %s31 = sld [smem:[%s30]]
  %s32 = scalar_lea.smem %s0, 16
  %s33 = sld [smem:[%s32]]
  %s34 = scalar_lea.smem %s0, 17
  %s35 = sld [smem:[%s34]]
  %s36 = scalar_lea.smem %s0, 18
  %s37 = sld [smem:[%s36]]
  %s38 = scalar_lea.smem %s0, 19
  %s39 = sld [smem:[%s38]]
  %s40 = scalar_lea.smem %s0, 20
  %s41 = sld [smem:[%s40]]
  %s42 = scalar_lea.smem %s0, 21
  %s43 = sld [smem:[%s42]]
  %s44 = scalar_lea.smem %s0, 22
  %s45 = sld [smem:[%s44]]
  %s46 = scalar_lea.smem %s0, 23
  %s47 = sld [smem:[%s46]]
  %s48 = scalar_lea.smem %s0, 24
  %s49 = sld [smem:[%s48]]
  %s50 = scalar_lea.smem %s0, 25
  %s51 = sld [smem:[%s50]]
  %s52 = scalar_lea.smem %s0, 26
  %s53 = sld [smem:[%s52]]
  %s54 = scalar_lea.smem %s0, 27
  %s55 = sld [smem:[%s54]]
  %s56 = scalar_lea.smem %s0, 28
  %s57 = sld [smem:[%s56]]
  %s58 = scalar_lea.smem %s0, 29
  %s59 = sld [smem:[%s58]]
  %s60 = scalar_lea.smem %s0, 30
  %s61 = sld [smem:[%s60]]
  %s62 = scalar_lea.smem %s0, 31
  %s63 = sld [smem:[%s62]]
  %s64 = scalar_lea.smem %s0, 32
  %s65 = sld [smem:[%s64]]
  %s66 = sld [smem:[#allocation0]]
  $region186: #{tpu_custom_call.1} parent=0
    _
  %s68 = ssub.s32 1, %s66
  %s69 = scalar_select 0, %s68, %s66
  $region1: #{tpu_custom_call.1} parent=0
    #allocation3 [shape = 'u8[1024]{0}', space=vmem, size = 0x400, scoped, tag = 'input window, operand 1, single buffered']
    #allocation4 [shape = 's32[1]{0}', space=sflag, size = 0x4, scoped, tag = 'scoped memory for tpu_custom_call.1']
    #allocation5 [shape = 's32[1]{0}', space=sflag, size = 0x4, scoped, tag = 'scoped memory for tpu_custom_call.1']
    #allocation6 [shape = 'u8[512]{0}', space=vmem, size = 0x400, scoped, tag = 'input window, operand 2, single buffered']
    #allocation7 [shape = 's32[1]{0}', space=sflag, size = 0x4, scoped, tag = 'scoped memory for tpu_custom_call.1']
    #allocation8 [shape = 'u8[512]{0}', space=vmem, size = 0x400, scoped, tag = 'input window, operand 3, single buffered']
    #allocation9 [shape = 'u8[512]{0}', space=vmem, size = 0x400, scoped, tag = 'input window, operand 5, single buffered']
    #allocation10 [shape = 's32[1]{0}', space=sflag, size = 0x4, scoped, tag = 'scoped memory for tpu_custom_call.1']
    #allocation11 [shape = 'u8[512]{0}', space=vmem, size = 0x400, scoped, tag = 'input window, operand 7, single buffered']
    #allocation12 [shape = 'u8[512]{0}', space=vmem, size = 0x400, scoped, tag = 'input window, operand 8, single buffered']
    #allocation13 [shape = 's32[1]{0}', space=sflag, size = 0x4, scoped, tag = 'scoped memory for tpu_custom_call.1']
    #allocation14 [shape = 'u8[512]{0}', space=vmem, size = 0x400, scoped, tag = 'input window, operand 9, single buffered']
    #allocation15 [shape = 'u8[512]{0}', space=vmem, size = 0x400, scoped, tag = 'input window, operand 11, single buffered']
    #allocation16 [shape = 's32[1]{0}', space=sflag, size = 0x4, scoped, tag = 'scoped memory for tpu_custom_call.1']
    #allocation17 [shape = 'u8[512]{0}', space=vmem, size = 0x400, scoped, tag = 'input window, operand 13, single buffered']
    #allocation18 [shape = 'u8[512]{0}', space=vmem, size = 0x400, scoped, tag = 'input window, operand 14, single buffered']
    #allocation19 [shape = 's32[1]{0}', space=sflag, size = 0x4, scoped, tag = 'scoped memory for tpu_custom_call.1']
    #allocation20 [shape = 'u8[512]{0}', space=vmem, size = 0x400, scoped, tag = 'input window, operand 15, single buffered']
    #allocation21 [shape = 'u8[512]{0}', space=vmem, size = 0x400, scoped, tag = 'input window, operand 17, single buffered']
    #allocation22 [shape = 's32[1]{0}', space=sflag, size = 0x4, scoped, tag = 'scoped memory for tpu_custom_call.1']
    #allocation23 [shape = 'u8[1024]{0}', space=vmem, size = 0x400, scoped, tag = 'output window, operand 0, single buffered']
    %70 = vsyncpa [#allocation4], 0
    %71 = vsyncpa [#allocation7], 0
    %72 = vsyncpa [#allocation10], 0
    %73 = vsyncpa [#allocation13], 0
    %74 = vsyncpa [#allocation16], 0
    %75 = vsyncpa [#allocation19], 0
    %76 = vsyncpa [#allocation22], 0
    %77 = vsyncpa [#allocation5], 0
    // Predicated region
    $region2: #{tpu_custom_call.1} parent=1 // pred_check
      _
    $region3: #{tpu_custom_call.1} parent=1 // pred_check_branch
      %79 = sbr.rel (0) target = $region5
    $region4: #{tpu_custom_call.1} parent=1 // pred_region
      _
    $region5: #{tpu_custom_call.1} parent=1 // pred_fallthru
      _
    // Predicated region
    $region6: #{tpu_custom_call.1} parent=1 // pred_check
      _
    $region7: #{tpu_custom_call.1} parent=1 // pred_check_branch
      %81 = sbr.rel (0) target = $region9
    $region8: #{tpu_custom_call.1} parent=1 // pred_region
      %s83 = ssub.s32 32, 32
      %84 = vsyncadd [#allocation4], %s83
      %s86 = sshll.u32 [#allocation3], 4
      %s87 = int_to_ptr.vmem [resolvable:$true] %s86
      %89 = dma.hbm_to_vmem [thread:$0]  %s3, 32, %s87, [#allocation4]
    $region9: #{tpu_custom_call.1} parent=1 // pred_fallthru
      _
    // Predicated region
    $region10: #{tpu_custom_call.1} parent=1 // pred_check
      _
    $region11: #{tpu_custom_call.1} parent=1 // pred_check_branch
      %91 = sbr.rel (0) target = $region13
    $region12: #{tpu_custom_call.1} parent=1 // pred_region
      %s93 = ssub.s32 16, 16
      %94 = vsyncadd [#allocation7], %s93
      %s96 = sshll.u32 [#allocation6], 4
      %s97 = int_to_ptr.vmem [resolvable:$true] %s96
      %99 = dma.hbm_to_vmem [thread:$0]  %s5, 16, %s97, [#allocation7]
    $region13: #{tpu_custom_call.1} parent=1 // pred_fallthru
      _
    // Predicated region
    $region14: #{tpu_custom_call.1} parent=1 // pred_check
      _
    $region15: #{tpu_custom_call.1} parent=1 // pred_check_branch
      %101 = sbr.rel (0) target = $region17
    $region16: #{tpu_custom_call.1} parent=1 // pred_region
      %s103 = ssub.s32 16, 16
      %104 = vsyncadd [#allocation7], %s103
      %s106 = sshll.u32 [#allocation8], 4
      %s107 = int_to_ptr.vmem [resolvable:$true] %s106
      %109 = dma.hbm_to_vmem [thread:$0]  %s7, 16, %s107, [#allocation7]
    $region17: #{tpu_custom_call.1} parent=1 // pred_fallthru
      _
    // Predicated region
    $region18: #{tpu_custom_call.1} parent=1 // pred_check
      _
    $region19: #{tpu_custom_call.1} parent=1 // pred_check_branch
      %111 = sbr.rel (0) target = $region21
    $region20: #{tpu_custom_call.1} parent=1 // pred_region
      _
    $region21: #{tpu_custom_call.1} parent=1 // pred_fallthru
      _
    // Predicated region
    $region22: #{tpu_custom_call.1} parent=1 // pred_check
      _
    $region23: #{tpu_custom_call.1} parent=1 // pred_check_branch
      %113 = sbr.rel (0) target = $region25
    $region24: #{tpu_custom_call.1} parent=1 // pred_region
      %s115 = ssub.s32 16, 16
      %116 = vsyncadd [#allocation10], %s115
      %s118 = sshll.u32 [#allocation9], 4
      %s119 = int_to_ptr.vmem [resolvable:$true] %s118
      %121 = dma.hbm_to_vmem [thread:$0]  %s11, 16, %s119, [#allocation10]
    $region25: #{tpu_custom_call.1} parent=1 // pred_fallthru
      _
    // Predicated region
    $region26: #{tpu_custom_call.1} parent=1 // pred_check
      _
    $region27: #{tpu_custom_call.1} parent=1 // pred_check_branch
      %123 = sbr.rel (0) target = $region29
    $region28: #{tpu_custom_call.1} parent=1 // pred_region
      _
    $region29: #{tpu_custom_call.1} parent=1 // pred_fallthru
      _
    // Predicated region
    $region30: #{tpu_custom_call.1} parent=1 // pred_check
      _
    $region31: #{tpu_custom_call.1} parent=1 // pred_check_branch
      %125 = sbr.rel (0) target = $region33
    $region32: #{tpu_custom_call.1} parent=1 // pred_region
      %s127 = ssub.s32 16, 16
      %128 = vsyncadd [#allocation10], %s127
      %s130 = sshll.u32 [#allocation11], 4
      %s131 = int_to_ptr.vmem [resolvable:$true] %s130
      %133 = dma.hbm_to_vmem [thread:$0]  %s15, 16, %s131, [#allocation10]
    $region33: #{tpu_custom_call.1} parent=1 // pred_fallthru
      _
    // Predicated region
    $region34: #{tpu_custom_call.1} parent=1 // pred_check
      _
    $region35: #{tpu_custom_call.1} parent=1 // pred_check_branch
      %135 = sbr.rel (0) target = $region37
    $region36: #{tpu_custom_call.1} parent=1 // pred_region
      %s137 = ssub.s32 16, 16
      %138 = vsyncadd [#allocation13], %s137
      %s140 = sshll.u32 [#allocation12], 4
      %s141 = int_to_ptr.vmem [resolvable:$true] %s140
      %143 = dma.hbm_to_vmem [thread:$0]  %s17, 16, %s141, [#allocation13]
    $region37: #{tpu_custom_call.1} parent=1 // pred_fallthru
      _
    // Predicated region
    $region38: #{tpu_custom_call.1} parent=1 // pred_check
      _
    $region39: #{tpu_custom_call.1} parent=1 // pred_check_branch
      %145 = sbr.rel (0) target = $region41
    $region40: #{tpu_custom_call.1} parent=1 // pred_region
      %s147 = ssub.s32 16, 16
      %148 = vsyncadd [#allocation13], %s147
      %s150 = sshll.u32 [#allocation14], 4
      %s151 = int_to_ptr.vmem [resolvable:$true] %s150
      %153 = dma.hbm_to_vmem [thread:$0]  %s19, 16, %s151, [#allocation13]
    $region41: #{tpu_custom_call.1} parent=1 // pred_fallthru
      _
    // Predicated region
    $region42: #{tpu_custom_call.1} parent=1 // pred_check
      _
    $region43: #{tpu_custom_call.1} parent=1 // pred_check_branch
      %155 = sbr.rel (0) target = $region45
    $region44: #{tpu_custom_call.1} parent=1 // pred_region
      _
    $region45: #{tpu_custom_call.1} parent=1 // pred_fallthru
      _
    // Predicated region
    $region46: #{tpu_custom_call.1} parent=1 // pred_check
      _
    $region47: #{tpu_custom_call.1} parent=1 // pred_check_branch
      %157 = sbr.rel (0) target = $region49
    $region48: #{tpu_custom_call.1} parent=1 // pred_region
      %s159 = ssub.s32 16, 16
      %160 = vsyncadd [#allocation16], %s159
      %s162 = sshll.u32 [#allocation15], 4
      %s163 = int_to_ptr.vmem [resolvable:$true] %s162
      %165 = dma.hbm_to_vmem [thread:$0]  %s23, 16, %s163, [#allocation16]
    $region49: #{tpu_custom_call.1} parent=1 // pred_fallthru
      _
    // Predicated region
    $region50: #{tpu_custom_call.1} parent=1 // pred_check
      _
    $region51: #{tpu_custom_call.1} parent=1 // pred_check_branch
      %167 = sbr.rel (0) target = $region53
    $region52: #{tpu_custom_call.1} parent=1 // pred_region
      _
    $region53: #{tpu_custom_call.1} parent=1 // pred_fallthru
      _
    // Predicated region
    $region54: #{tpu_custom_call.1} parent=1 // pred_check
      _
    $region55: #{tpu_custom_call.1} parent=1 // pred_check_branch
      %169 = sbr.rel (0) target = $region57
    $region56: #{tpu_custom_call.1} parent=1 // pred_region
      %s171 = ssub.s32 16, 16
      %172 = vsyncadd [#allocation16], %s171
      %s174 = sshll.u32 [#allocation17], 4
      %s175 = int_to_ptr.vmem [resolvable:$true] %s174
      %177 = dma.hbm_to_vmem [thread:$0]  %s27, 16, %s175, [#allocation16]
    $region57: #{tpu_custom_call.1} parent=1 // pred_fallthru
      _
    // Predicated region
    $region58: #{tpu_custom_call.1} parent=1 // pred_check
      _
    $region59: #{tpu_custom_call.1} parent=1 // pred_check_branch
      %179 = sbr.rel (0) target = $region61
    $region60: #{tpu_custom_call.1} parent=1 // pred_region
      %s181 = ssub.s32 16, 16
      %182 = vsyncadd [#allocation19], %s181
      %s184 = sshll.u32 [#allocation18], 4
      %s185 = int_to_ptr.vmem [resolvable:$true] %s184
      %187 = dma.hbm_to_vmem [thread:$0]  %s29, 16, %s185, [#allocation19]
    $region61: #{tpu_custom_call.1} parent=1 // pred_fallthru
      _
    // Predicated region
    $region62: #{tpu_custom_call.1} parent=1 // pred_check
      _
    $region63: #{tpu_custom_call.1} parent=1 // pred_check_branch
      %189 = sbr.rel (0) target = $region65
    $region64: #{tpu_custom_call.1} parent=1 // pred_region
      %s191 = ssub.s32 16, 16
      %192 = vsyncadd [#allocation19], %s191
      %s194 = sshll.u32 [#allocation20], 4
      %s195 = int_to_ptr.vmem [resolvable:$true] %s194
      %197 = dma.hbm_to_vmem [thread:$0]  %s31, 16, %s195, [#allocation19]
    $region65: #{tpu_custom_call.1} parent=1 // pred_fallthru
      _
    // Predicated region
    $region66: #{tpu_custom_call.1} parent=1 // pred_check
      _
    $region67: #{tpu_custom_call.1} parent=1 // pred_check_branch
      %199 = sbr.rel (0) target = $region69
    $region68: #{tpu_custom_call.1} parent=1 // pred_region
      _
    $region69: #{tpu_custom_call.1} parent=1 // pred_fallthru
      _
    // Predicated region
    $region70: #{tpu_custom_call.1} parent=1 // pred_check
      _
    $region71: #{tpu_custom_call.1} parent=1 // pred_check_branch
      %201 = sbr.rel (0) target = $region73
    $region72: #{tpu_custom_call.1} parent=1 // pred_region
      %s203 = ssub.s32 16, 16
      %204 = vsyncadd [#allocation22], %s203
      %s206 = sshll.u32 [#allocation21], 4
      %s207 = int_to_ptr.vmem [resolvable:$true] %s206
      %209 = dma.hbm_to_vmem [thread:$0]  %s35, 16, %s207, [#allocation22]
    $region73: #{tpu_custom_call.1} parent=1 // pred_fallthru
      _
    // Predicated region
    $region74: #{tpu_custom_call.1} parent=1 // pred_check
      _
    $region75: #{tpu_custom_call.1} parent=1 // pred_check_branch
      %211 = sbr.rel (0) target = $region77
    $region76: #{tpu_custom_call.1} parent=1 // pred_region
      _
    $region77: #{tpu_custom_call.1} parent=1 // pred_fallthru
      _
    // Predicated region
    $region78: #{tpu_custom_call.1} parent=1 // pred_check
      _
    $region79: #{tpu_custom_call.1} parent=1 // pred_check_branch
      %213 = sbr.rel (0) target = $region81
    $region80: #{tpu_custom_call.1} parent=1 // pred_region
      _
    $region81: #{tpu_custom_call.1} parent=1 // pred_fallthru
      _
    // Predicated region
    $region82: #{tpu_custom_call.1} parent=1 // pred_check
      _
    $region83: #{tpu_custom_call.1} parent=1 // pred_check_branch
      %215 = sbr.rel (0) target = $region85
    $region84: #{tpu_custom_call.1} parent=1 // pred_region
      _
    $region85: #{tpu_custom_call.1} parent=1 // pred_fallthru
      _
    // Predicated region
    $region86: #{tpu_custom_call.1} parent=1 // pred_check
      _
    $region87: #{tpu_custom_call.1} parent=1 // pred_check_branch
      %217 = sbr.rel (0) target = $region89
    $region88: #{tpu_custom_call.1} parent=1 // pred_region
      _
    $region89: #{tpu_custom_call.1} parent=1 // pred_fallthru
      _
    // Predicated region
    $region90: #{tpu_custom_call.1} parent=1 // pred_check
      _
    $region91: #{tpu_custom_call.1} parent=1 // pred_check_branch
      %219 = sbr.rel (0) target = $region93
    $region92: #{tpu_custom_call.1} parent=1 // pred_region
      _
    $region93: #{tpu_custom_call.1} parent=1 // pred_fallthru
      _
    // Predicated region
    $region94: #{tpu_custom_call.1} parent=1 // pred_check
      _
    $region95: #{tpu_custom_call.1} parent=1 // pred_check_branch
      %221 = sbr.rel (0) target = $region97
    $region96: #{tpu_custom_call.1} parent=1 // pred_region
      _
    $region97: #{tpu_custom_call.1} parent=1 // pred_fallthru
      _
    // Predicated region
    $region98: #{tpu_custom_call.1} parent=1 // pred_check
      _
    $region99: #{tpu_custom_call.1} parent=1 // pred_check_branch
      %223 = sbr.rel (0) target = $region101
    $region100: #{tpu_custom_call.1} parent=1 // pred_region
      _
    $region101: #{tpu_custom_call.1} parent=1 // pred_fallthru
      _
    // Predicated region
    $region102: #{tpu_custom_call.1} parent=1 // pred_check
      _
    $region103: #{tpu_custom_call.1} parent=1 // pred_check_branch
      %225 = sbr.rel (0) target = $region105
    $region104: #{tpu_custom_call.1} parent=1 // pred_region
      _
    $region105: #{tpu_custom_call.1} parent=1 // pred_fallthru
      _
    // Predicated region
    $region106: #{tpu_custom_call.1} parent=1 // pred_check
      _
    $region107: #{tpu_custom_call.1} parent=1 // pred_check_branch
      %227 = sbr.rel (0) target = $region109
    $region108: #{tpu_custom_call.1} parent=1 // pred_region
      _
    $region109: #{tpu_custom_call.1} parent=1 // pred_fallthru
      _
    // Predicated region
    $region110: #{tpu_custom_call.1} parent=1 // pred_check
      _
    $region111: #{tpu_custom_call.1} parent=1 // pred_check_branch
      %229 = sbr.rel (0) target = $region113
    $region112: #{tpu_custom_call.1} parent=1 // pred_region
      _
    $region113: #{tpu_custom_call.1} parent=1 // pred_fallthru
      _
    // Predicated region
    $region114: #{tpu_custom_call.1} parent=1 // pred_check
      _
    $region115: #{tpu_custom_call.1} parent=1 // pred_check_branch
      %231 = sbr.rel (0) target = $region117
    $region116: #{tpu_custom_call.1} parent=1 // pred_region
      _
    $region117: #{tpu_custom_call.1} parent=1 // pred_fallthru
      _
    // Predicated region
    $region118: #{tpu_custom_call.1} parent=1 // pred_check
      _
    $region119: #{tpu_custom_call.1} parent=1 // pred_check_branch
      %233 = sbr.rel (0) target = $region121
    $region120: #{tpu_custom_call.1} parent=1 // pred_region
      _
    $region121: #{tpu_custom_call.1} parent=1 // pred_fallthru
      _
    // Predicated region
    $region122: #{tpu_custom_call.1} parent=1 // pred_check
      _
    $region123: #{tpu_custom_call.1} parent=1 // pred_check_branch
      %235 = sbr.rel (0) target = $region125
    $region124: #{tpu_custom_call.1} parent=1 // pred_region
      _
    $region125: #{tpu_custom_call.1} parent=1 // pred_fallthru
      _
    // Predicated region
    $region126: #{tpu_custom_call.1} parent=1 // pred_check
      _
    $region127: #{tpu_custom_call.1} parent=1 // pred_check_branch
      %237 = sbr.rel (0) target = $region129
    $region128: #{tpu_custom_call.1} parent=1 // pred_region
      _
    $region129: #{tpu_custom_call.1} parent=1 // pred_fallthru
      _
    // Predicated region
    $region130: #{tpu_custom_call.1} parent=1 // pred_check
      _
    $region131: #{tpu_custom_call.1} parent=1 // pred_check_branch
      %239 = sbr.rel (0) target = $region133
    $region132: #{tpu_custom_call.1} parent=1 // pred_region
      %240 = dma.done [#allocation4], 32
    $region133: #{tpu_custom_call.1} parent=1 // pred_fallthru
      _
    // Predicated region
    $region134: #{tpu_custom_call.1} parent=1 // pred_check
      _
    $region135: #{tpu_custom_call.1} parent=1 // pred_check_branch
      %242 = sbr.rel (0) target = $region137
    $region136: #{tpu_custom_call.1} parent=1 // pred_region
      %243 = dma.done [#allocation7], 16
    $region137: #{tpu_custom_call.1} parent=1 // pred_fallthru
      _
    // Predicated region
    $region138: #{tpu_custom_call.1} parent=1 // pred_check
      _
    $region139: #{tpu_custom_call.1} parent=1 // pred_check_branch
      %245 = sbr.rel (0) target = $region141
    $region140: #{tpu_custom_call.1} parent=1 // pred_region
      %246 = dma.done [#allocation7], 16
    $region141: #{tpu_custom_call.1} parent=1 // pred_fallthru
      _
    // Predicated region
    $region142: #{tpu_custom_call.1} parent=1 // pred_check
      _
    $region143: #{tpu_custom_call.1} parent=1 // pred_check_branch
      %248 = sbr.rel (0) target = $region145
    $region144: #{tpu_custom_call.1} parent=1 // pred_region
      %249 = dma.done [#allocation10], 16
    $region145: #{tpu_custom_call.1} parent=1 // pred_fallthru
      _
    // Predicated region
    $region146: #{tpu_custom_call.1} parent=1 // pred_check
      _
    $region147: #{tpu_custom_call.1} parent=1 // pred_check_branch
      %251 = sbr.rel (0) target = $region149
    $region148: #{tpu_custom_call.1} parent=1 // pred_region
      %252 = dma.done [#allocation10], 16
    $region149: #{tpu_custom_call.1} parent=1 // pred_fallthru
      _
    // Predicated region
    $region150: #{tpu_custom_call.1} parent=1 // pred_check
      _
    $region151: #{tpu_custom_call.1} parent=1 // pred_check_branch
      %254 = sbr.rel (0) target = $region153
    $region152: #{tpu_custom_call.1} parent=1 // pred_region
      %255 = dma.done [#allocation13], 16
    $region153: #{tpu_custom_call.1} parent=1 // pred_fallthru
      _
    // Predicated region
    $region154: #{tpu_custom_call.1} parent=1 // pred_check
      _
    $region155: #{tpu_custom_call.1} parent=1 // pred_check_branch
      %257 = sbr.rel (0) target = $region157
    $region156: #{tpu_custom_call.1} parent=1 // pred_region
      %258 = dma.done [#allocation13], 16
    $region157: #{tpu_custom_call.1} parent=1 // pred_fallthru
      _
    // Predicated region
    $region158: #{tpu_custom_call.1} parent=1 // pred_check
      _
    $region159: #{tpu_custom_call.1} parent=1 // pred_check_branch
      %260 = sbr.rel (0) target = $region161
    $region160: #{tpu_custom_call.1} parent=1 // pred_region
      %261 = dma.done [#allocation16], 16
    $region161: #{tpu_custom_call.1} parent=1 // pred_fallthru
      _
    // Predicated region
    $region162: #{tpu_custom_call.1} parent=1 // pred_check
      _
    $region163: #{tpu_custom_call.1} parent=1 // pred_check_branch
      %263 = sbr.rel (0) target = $region165
    $region164: #{tpu_custom_call.1} parent=1 // pred_region
      %264 = dma.done [#allocation16], 16
    $region165: #{tpu_custom_call.1} parent=1 // pred_fallthru
      _
    // Predicated region
    $region166: #{tpu_custom_call.1} parent=1 // pred_check
      _
    $region167: #{tpu_custom_call.1} parent=1 // pred_check_branch
      %266 = sbr.rel (0) target = $region169
    $region168: #{tpu_custom_call.1} parent=1 // pred_region
      %267 = dma.done [#allocation19], 16
    $region169: #{tpu_custom_call.1} parent=1 // pred_fallthru
      _
    // Predicated region
    $region170: #{tpu_custom_call.1} parent=1 // pred_check
      _
    $region171: #{tpu_custom_call.1} parent=1 // pred_check_branch
      %269 = sbr.rel (0) target = $region173
    $region172: #{tpu_custom_call.1} parent=1 // pred_region
      %270 = dma.done [#allocation19], 16
    $region173: #{tpu_custom_call.1} parent=1 // pred_fallthru
      _
    // Predicated region
    $region174: #{tpu_custom_call.1} parent=1 // pred_check
      _
    $region175: #{tpu_custom_call.1} parent=1 // pred_check_branch
      %272 = sbr.rel (0) target = $region177
    $region176: #{tpu_custom_call.1} parent=1 // pred_region
      %273 = dma.done [#allocation22], 16
    $region177: #{tpu_custom_call.1} parent=1 // pred_fallthru
      _
    %v275 = vld [vmem:[%s1] sm:$0xff]
    %v276 = vld [vmem:[%s1 + $0x8] sm:$0xff]
    %v277 = vld [vmem:[#allocation6] sm:$0x1]
    %v278 = vld [vmem:[#allocation8] sm:$0x1]
    %vm279 = vcmask 261120
    %v280 = vsel %vm279, %v275, 0.0
    %281 = vadd.xlane.f32.xlu0 %v280
    %v282 = vpop.xlane.xlu0 %281
    %v283 = vsel %vm279, %v276, 0.0
    %284 = vadd.xlane.f32.xlu0 %v283
    %v285 = vpop.xlane.xlu0 %284
    %v286 = vrcp.pop 32.0
    %v287 = vmul.f32 %v282, %v286
    %v288 = vmul.f32 %v285, %v286
    %v289 = vsub.f32 %v275, %v287
    %v290 = vsub.f32 %v276, %v288
    %v291 = vmul.f32 %v289, %v289
    %v292 = vmul.f32 %v290, %v290
    %v293 = vsel %vm279, %v291, 0.0
    %294 = vadd.xlane.f32.xlu0 %v293
    %v295 = vpop.xlane.xlu0 %294
    %v296 = vsel %vm279, %v292, 0.0
    %297 = vadd.xlane.f32.xlu0 %v296
    %v298 = vpop.xlane.xlu0 %297
    %v299 = vmul.f32 %v295, %v286
    %v300 = vmul.f32 %v298, %v286
    %v301 = vadd.f32 %v299, 1e-12
    %v302 = vadd.f32 %v300, 1e-12
    %v303 = vrsqrt.pop %v301
    %v304 = vrsqrt.pop %v302
    %v305 = vmul.f32 %v289, %v303
    %v306 = vmul.f32 %v290, %v304
    %v308 = vlaneseq
    %v309 = vshrl.u32 %v308, 7
    %v310 = vsub.s32 0, %v309
    %v311 = vrot.slane %v277, %v310
    %v313 = vmul.f32 %v305, %v311
    %v314 = vmul.f32 %v306, %v311
    %v316 = vlaneseq
    %v317 = vshrl.u32 %v316, 7
    %v318 = vsub.s32 0, %v317
    %v319 = vrot.slane %v278, %v318
    %v321 = vadd.f32 %v313, %v319
    %v322 = vadd.f32 %v314, %v319
    %v323 = vld [vmem:[#allocation3] sm:$0x3]
    %v324 = vld [vmem:[%s9] sm:$0xf]
    %v325 = vld [vmem:[%s9 + $0x4] sm:$0xf]
    %v326 = vld [vmem:[%s9 + $0x8] sm:$0xf]
    %v327 = vld [vmem:[%s9 + $0xc] sm:$0xf]
    %v328 = vpack.c.bf16 %v322, %v321
    %v329 = vld [vmem:[#allocation9] sm:$0x1]
    %v331 = vlaneseq
    %v332 = vshrl.u32 %v331, 7
    %v333 = vsub.s32 0, %v332
    %v334 = vrot.slane %v329, %v333
    %v340 = vunpack.c.l.b16 %v324
    %v341 = vunpack.c.l.b16 %v325
    %v342 = vunpack.c.l.b16 %v326
    %v343 = vunpack.c.l.b16 %v327
    %v344 = vpack.c.b16 %v341, %v340
    %v345 = vpack.c.b16 %v343, %v342
    %v349 = vsel %vm279, %v328, 0
    %351 = vmatprep.subr.bf16.mxu0 0
    %352 = vmatpush1.bf16.msra.mxu0 %v344
    %353 = vmatprep.subr.bf16.mxu0 0
    %354 = vmatpush1.bf16.msra.mxu0 %v345
    %355 = vmatprep.subr.bf16.mxu0 0
    %356 = vmatpush1.bf16.msra.mxu0 0
    %357 = vmatprep.subr.bf16.mxu0 0
    %358 = vmatpush1.bf16.msra.mxu0 0
    %359 = vmatprep.subr.bf16.mxu0 0
    %360 = vmatpush1.bf16.msra.mxu0 0
    %361 = vmatprep.subr.bf16.mxu0 0
    %362 = vmatpush1.bf16.msra.mxu0 0
    %363 = vmatprep.subr.bf16.mxu0 0
    %364 = vmatpush1.bf16.msra.mxu0 0
    %365 = vmatprep.subr.bf16.mxu0 0
    %366 = vmatpush1.bf16.msra.mxu0 0
    %367 = vmatprep.subr.bf16.mxu0 0
    %368 = vmatpush1.bf16.msra.mxu0 0
    %369 = vmatprep.subr.bf16.mxu0 0
    %370 = vmatpush1.bf16.msra.mxu0 0
    %371 = vmatprep.subr.bf16.mxu0 0
    %372 = vmatpush1.bf16.msra.mxu0 0
    %373 = vmatprep.subr.bf16.mxu0 0
    %374 = vmatpush1.bf16.msra.mxu0 0
    %375 = vmatprep.subr.bf16.mxu0 0
    %376 = vmatpush1.bf16.msra.mxu0 0
    %377 = vmatprep.subr.bf16.mxu0 0
    %378 = vmatpush1.bf16.msra.mxu0 0
    %379 = vmatprep.subr.bf16.mxu0 0
    %380 = vmatpush1.bf16.msra.mxu0 0
    %381 = vmatprep.subr.bf16.mxu0 0
    %382 = vmatpush1.bf16.msra.mxu0 0
    %383 = vmatprep.mubr.bf16.mxu0 0
    %384 = vmatmul.mubr.bf16.gmra.mrb[0].mxu0 %v349
    %v385 = vpop.f32.mrb[0].mxu0
    %v386 = vadd.f32 %v334, %v385
    %v387 = vpop.f32.mrb[0].mxu0
    %v388 = vpop.f32.mrb[0].mxu0
    %v389 = vadd.f32 %v334, %v388
    %v390 = vpop.f32.mrb[0].mxu0
    %391 = vdwg.mxu0
    %v392 = vpack.c.bf16 %v389, %v386
    %394 = vrot.lane.b32.xlu0 %v392, 96
    %v395 = vpop.permute.xlu0 %394
    %vm396 = vcmask 64512
    %v398 = vsel %vm396, %v392, 0
    %v401 = vsel %vm396, %v395, 0
    %403 = vmatprep.subr.bf16.mxu0 0
    %404 = vmatpush1.bf16.xpose.msra.mxu0 %v401
    %405 = vmatprep.subr.bf16.mxu0 0
    %406 = vmatpush1.bf16.xpose.msra.mxu0 0
    %407 = vmatprep.subr.bf16.mxu0 0
    %408 = vmatpush1.bf16.xpose.msra.mxu0 0
    %409 = vmatprep.subr.bf16.mxu0 0
    %410 = vmatpush1.bf16.xpose.msra.mxu0 0
    %411 = vmatprep.subr.bf16.mxu0 0
    %412 = vmatpush1.bf16.xpose.msra.mxu0 0
    %413 = vmatprep.subr.bf16.mxu0 0
    %414 = vmatpush1.bf16.xpose.msra.mxu0 0
    %415 = vmatprep.subr.bf16.mxu0 0
    %416 = vmatpush1.bf16.xpose.msra.mxu0 0
    %417 = vmatprep.subr.bf16.mxu0 0
    %418 = vmatpush1.bf16.xpose.msra.mxu0 0
    %419 = vmatprep.subr.bf16.mxu0 0
    %420 = vmatpush1.bf16.xpose.msra.mxu0 0
    %421 = vmatprep.subr.bf16.mxu0 0
    %422 = vmatpush1.bf16.xpose.msra.mxu0 0
    %423 = vmatprep.subr.bf16.mxu0 0
    %424 = vmatpush1.bf16.xpose.msra.mxu0 0
    %425 = vmatprep.subr.bf16.mxu0 0
    %426 = vmatpush1.bf16.xpose.msra.mxu0 0
    %427 = vmatprep.subr.bf16.mxu0 0
    %428 = vmatpush1.bf16.xpose.msra.mxu0 0
    %429 = vmatprep.subr.bf16.mxu0 0
    %430 = vmatpush1.bf16.xpose.msra.mxu0 0
    %431 = vmatprep.subr.bf16.mxu0 0
    %432 = vmatpush1.bf16.xpose.msra.mxu0 0
    %433 = vmatprep.subr.bf16.mxu0 0
    %434 = vmatpush1.bf16.xpose.msra.mxu0 0
    %435 = vmatprep.mubr.bf16.mxu0 0
    %436 = vmatmul.mubr.bf16.gmra.mrb[0].mxu0 %v398
    %v437 = vpop.f32.mrb[0].mxu0
    %v438 = vadd.f32 0.0, %v437
    %v439 = vpop.f32.mrb[0].mxu0
    %v440 = vpop.f32.mrb[0].mxu0
    %v441 = vpop.f32.mrb[0].mxu0
    %442 = vdwg.mxu0
    %v443 = vmul.f32 %v438, 0.35355338
    %v444 = vlaneseq
    %v445 = vshrl.u32 %v444, 7
    %v446 = vsub.s32 0, %v445
    %v447 = vrot.slane %v323, %v446
    %v448 = vadd.f32 %v443, %v447
    %v449 = vsel %vm396, %v448, -inf
    %450 = vmax.xlane.f32.xlu0 %v449
    %v451 = vpop.xlane.xlu0 %450
    %v452 = vsub.f32 %v448, %v451
    %v453 = vmul.f32 %v452, 1.442695
    %v454 = vpow.pop %v453
    %v455 = vsel %vm396, %v454, 0.0
    %456 = vadd.xlane.f32.xlu0 %v455
    %v457 = vpop.xlane.xlu0 %456
    %v458 = vrcp.pop %v457
    %v459 = vmul.f32 %v454, %v458
    %v460 = vpack.c.bf16 %v459, %v459
    %461 = vrot.lane.b32.xlu0 %v392, 64
    %v462 = vpop.permute.xlu0 %461
    %v464 = vsel %vm396, %v460, 0
    %vm466 = vcmask 1043456
    %v468 = vsel %vm466, %v462, 0
    %470 = vmatprep.subr.bf16.mxu0 0
    %471 = vmatpush1.bf16.msra.mxu0 %v468
    %472 = vmatprep.subr.bf16.mxu0 0
    %473 = vmatpush1.bf16.msra.mxu0 0
    %474 = vmatprep.subr.bf16.mxu0 0
    %475 = vmatpush1.bf16.msra.mxu0 0
    %476 = vmatprep.subr.bf16.mxu0 0
    %477 = vmatpush1.bf16.msra.mxu0 0
    %478 = vmatprep.subr.bf16.mxu0 0
    %479 = vmatpush1.bf16.msra.mxu0 0
    %480 = vmatprep.subr.bf16.mxu0 0
    %481 = vmatpush1.bf16.msra.mxu0 0
    %482 = vmatprep.subr.bf16.mxu0 0
    %483 = vmatpush1.bf16.msra.mxu0 0
    %484 = vmatprep.subr.bf16.mxu0 0
    %485 = vmatpush1.bf16.msra.mxu0 0
    %486 = vmatprep.subr.bf16.mxu0 0
    %487 = vmatpush1.bf16.msra.mxu0 0
    %488 = vmatprep.subr.bf16.mxu0 0
    %489 = vmatpush1.bf16.msra.mxu0 0
    %490 = vmatprep.subr.bf16.mxu0 0
    %491 = vmatpush1.bf16.msra.mxu0 0
    %492 = vmatprep.subr.bf16.mxu0 0
    %493 = vmatpush1.bf16.msra.mxu0 0
    %494 = vmatprep.subr.bf16.mxu0 0
    %495 = vmatpush1.bf16.msra.mxu0 0
    %496 = vmatprep.subr.bf16.mxu0 0
    %497 = vmatpush1.bf16.msra.mxu0 0
    %498 = vmatprep.subr.bf16.mxu0 0
    %499 = vmatpush1.bf16.msra.mxu0 0
    %500 = vmatprep.subr.bf16.mxu0 0
    %501 = vmatpush1.bf16.msra.mxu0 0
    %502 = vmatprep.mubr.bf16.mxu0 0
    %503 = vmatmul.mubr.bf16.gmra.mrb[0].mxu0 %v464
    %v504 = vpop.f32.mrb[0].mxu0
    %v505 = vadd.f32 0.0, %v504
    %v506 = vpop.f32.mrb[0].mxu0
    %v507 = vpop.f32.mrb[0].mxu0
    %v508 = vpop.f32.mrb[0].mxu0
    %509 = vdwg.mxu0
    %510 = vst.msk [vmem:[#allocation2] sm:$0xff] %vm396, %v505
    %511 = vrot.lane.b32.xlu0 %v392, 120
    %v512 = vpop.permute.xlu0 %511
    %513 = vrot.lane.b32.xlu0 %v392, 88
    %v514 = vpop.permute.xlu0 %513
    %v516 = vsel %vm396, %v512, 0
    %v519 = vsel %vm396, %v514, 0
    %521 = vmatprep.subr.bf16.mxu0 0
    %522 = vmatpush1.bf16.xpose.msra.mxu0 %v519
    %523 = vmatprep.subr.bf16.mxu0 0
    %524 = vmatpush1.bf16.xpose.msra.mxu0 0
    %525 = vmatprep.subr.bf16.mxu0 0
    %526 = vmatpush1.bf16.xpose.msra.mxu0 0
    %527 = vmatprep.subr.bf16.mxu0 0
    %528 = vmatpush1.bf16.xpose.msra.mxu0 0
    %529 = vmatprep.subr.bf16.mxu0 0
    %530 = vmatpush1.bf16.xpose.msra.mxu0 0
    %531 = vmatprep.subr.bf16.mxu0 0
    %532 = vmatpush1.bf16.xpose.msra.mxu0 0
    %533 = vmatprep.subr.bf16.mxu0 0
    %534 = vmatpush1.bf16.xpose.msra.mxu0 0
    %535 = vmatprep.subr.bf16.mxu0 0
    %536 = vmatpush1.bf16.xpose.msra.mxu0 0
    %537 = vmatprep.subr.bf16.mxu0 0
    %538 = vmatpush1.bf16.xpose.msra.mxu0 0
    %539 = vmatprep.subr.bf16.mxu0 0
    %540 = vmatpush1.bf16.xpose.msra.mxu0 0
    %541 = vmatprep.subr.bf16.mxu0 0
    %542 = vmatpush1.bf16.xpose.msra.mxu0 0
    %543 = vmatprep.subr.bf16.mxu0 0
    %544 = vmatpush1.bf16.xpose.msra.mxu0 0
    %545 = vmatprep.subr.bf16.mxu0 0
    %546 = vmatpush1.bf16.xpose.msra.mxu0 0
    %547 = vmatprep.subr.bf16.mxu0 0
    %548 = vmatpush1.bf16.xpose.msra.mxu0 0
    %549 = vmatprep.subr.bf16.mxu0 0
    %550 = vmatpush1.bf16.xpose.msra.mxu0 0
    %551 = vmatprep.subr.bf16.mxu0 0
    %552 = vmatpush1.bf16.xpose.msra.mxu0 0
    %553 = vmatprep.mubr.bf16.mxu0 0
    %554 = vmatmul.mubr.bf16.gmra.mrb[0].mxu0 %v516
    %v555 = vpop.f32.mrb[0].mxu0
    %v556 = vadd.f32 0.0, %v555
    %v557 = vpop.f32.mrb[0].mxu0
    %v558 = vpop.f32.mrb[0].mxu0
    %v559 = vpop.f32.mrb[0].mxu0
    %560 = vdwg.mxu0
    %v561 = vmul.f32 %v556, 0.35355338
    %v562 = vadd.f32 %v561, %v447
    %v563 = vsel %vm396, %v562, -inf
    %564 = vmax.xlane.f32.xlu0 %v563
    %v565 = vpop.xlane.xlu0 %564
    %v566 = vsub.f32 %v562, %v565
    %v567 = vmul.f32 %v566, 1.442695
    %v568 = vpow.pop %v567
    %v569 = vsel %vm396, %v568, 0.0
    %570 = vadd.xlane.f32.xlu0 %v569
    %v571 = vpop.xlane.xlu0 %570
    %v572 = vrcp.pop %v571
    %v573 = vmul.f32 %v568, %v572
    %v574 = vpack.c.bf16 %v573, %v573
    %575 = vrot.lane.b32.xlu0 %v392, 56
    %v576 = vpop.permute.xlu0 %575
    %v578 = vsel %vm396, %v574, 0
    %v581 = vsel %vm466, %v576, 0
    %583 = vmatprep.subr.bf16.mxu0 0
    %584 = vmatpush1.bf16.msra.mxu0 %v581
    %585 = vmatprep.subr.bf16.mxu0 0
    %586 = vmatpush1.bf16.msra.mxu0 0
    %587 = vmatprep.subr.bf16.mxu0 0
    %588 = vmatpush1.bf16.msra.mxu0 0
    %589 = vmatprep.subr.bf16.mxu0 0
    %590 = vmatpush1.bf16.msra.mxu0 0
    %591 = vmatprep.subr.bf16.mxu0 0
    %592 = vmatpush1.bf16.msra.mxu0 0
    %593 = vmatprep.subr.bf16.mxu0 0
    %594 = vmatpush1.bf16.msra.mxu0 0
    %595 = vmatprep.subr.bf16.mxu0 0
    %596 = vmatpush1.bf16.msra.mxu0 0
    %597 = vmatprep.subr.bf16.mxu0 0
    %598 = vmatpush1.bf16.msra.mxu0 0
    %599 = vmatprep.subr.bf16.mxu0 0
    %600 = vmatpush1.bf16.msra.mxu0 0
    %601 = vmatprep.subr.bf16.mxu0 0
    %602 = vmatpush1.bf16.msra.mxu0 0
    %603 = vmatprep.subr.bf16.mxu0 0
    %604 = vmatpush1.bf16.msra.mxu0 0
    %605 = vmatprep.subr.bf16.mxu0 0
    %606 = vmatpush1.bf16.msra.mxu0 0
    %607 = vmatprep.subr.bf16.mxu0 0
    %608 = vmatpush1.bf16.msra.mxu0 0
    %609 = vmatprep.subr.bf16.mxu0 0
    %610 = vmatpush1.bf16.msra.mxu0 0
    %611 = vmatprep.subr.bf16.mxu0 0
    %612 = vmatpush1.bf16.msra.mxu0 0
    %613 = vmatprep.subr.bf16.mxu0 0
    %614 = vmatpush1.bf16.msra.mxu0 0
    %615 = vmatprep.mubr.bf16.mxu0 0
    %616 = vmatmul.mubr.bf16.gmra.mrb[0].mxu0 %v578
    %v617 = vpop.f32.mrb[0].mxu0
    %v618 = vadd.f32 0.0, %v617
    %v619 = vpop.f32.mrb[0].mxu0
    %v620 = vpop.f32.mrb[0].mxu0
    %v621 = vpop.f32.mrb[0].mxu0
    %622 = vdwg.mxu0
    %624 = vrot.lane.b32.xlu0 %v618, 8
    %v625 = vpop.permute.xlu0 %624
    %vm627 = vcmask 130112
    %628 = vst.msk [vmem:[#allocation2] sm:$0xff] %vm627, %v625
    %629 = vrot.lane.b32.xlu0 %v392, 112
    %v630 = vpop.permute.xlu0 %629
    %631 = vrot.lane.b32.xlu0 %v392, 80
    %v632 = vpop.permute.xlu0 %631
    %v634 = vsel %vm396, %v630, 0
    %v637 = vsel %vm396, %v632, 0
    %639 = vmatprep.subr.bf16.mxu0 0
    %640 = vmatpush1.bf16.xpose.msra.mxu0 %v637
    %641 = vmatprep.subr.bf16.mxu0 0
    %642 = vmatpush1.bf16.xpose.msra.mxu0 0
    %643 = vmatprep.subr.bf16.mxu0 0
    %644 = vmatpush1.bf16.xpose.msra.mxu0 0
    %645 = vmatprep.subr.bf16.mxu0 0
    %646 = vmatpush1.bf16.xpose.msra.mxu0 0
    %647 = vmatprep.subr.bf16.mxu0 0
    %648 = vmatpush1.bf16.xpose.msra.mxu0 0
    %649 = vmatprep.subr.bf16.mxu0 0
    %650 = vmatpush1.bf16.xpose.msra.mxu0 0
    %651 = vmatprep.subr.bf16.mxu0 0
    %652 = vmatpush1.bf16.xpose.msra.mxu0 0
    %653 = vmatprep.subr.bf16.mxu0 0
    %654 = vmatpush1.bf16.xpose.msra.mxu0 0
    %655 = vmatprep.subr.bf16.mxu0 0
    %656 = vmatpush1.bf16.xpose.msra.mxu0 0
    %657 = vmatprep.subr.bf16.mxu0 0
    %658 = vmatpush1.bf16.xpose.msra.mxu0 0
    %659 = vmatprep.subr.bf16.mxu0 0
    %660 = vmatpush1.bf16.xpose.msra.mxu0 0
    %661 = vmatprep.subr.bf16.mxu0 0
    %662 = vmatpush1.bf16.xpose.msra.mxu0 0
    %663 = vmatprep.subr.bf16.mxu0 0
    %664 = vmatpush1.bf16.xpose.msra.mxu0 0
    %665 = vmatprep.subr.bf16.mxu0 0
    %666 = vmatpush1.bf16.xpose.msra.mxu0 0
    %667 = vmatprep.subr.bf16.mxu0 0
    %668 = vmatpush1.bf16.xpose.msra.mxu0 0
    %669 = vmatprep.subr.bf16.mxu0 0
    %670 = vmatpush1.bf16.xpose.msra.mxu0 0
    %671 = vmatprep.mubr.bf16.mxu0 0
    %672 = vmatmul.mubr.bf16.gmra.mrb[0].mxu0 %v634
    %v673 = vpop.f32.mrb[0].mxu0
    %v674 = vadd.f32 0.0, %v673
    %v675 = vpop.f32.mrb[0].mxu0
    %v676 = vpop.f32.mrb[0].mxu0
    %v677 = vpop.f32.mrb[0].mxu0
    %678 = vdwg.mxu0
    %v679 = vmul.f32 %v674, 0.35355338
    %v680 = vadd.f32 %v679, %v447
    %v681 = vsel %vm396, %v680, -inf
    %682 = vmax.xlane.f32.xlu0 %v681
    %v683 = vpop.xlane.xlu0 %682
    %v684 = vsub.f32 %v680, %v683
    %v685 = vmul.f32 %v684, 1.442695
    %v686 = vpow.pop %v685
    %v687 = vsel %vm396, %v686, 0.0
    %688 = vadd.xlane.f32.xlu0 %v687
    %v689 = vpop.xlane.xlu0 %688
    %v690 = vrcp.pop %v689
    %v691 = vmul.f32 %v686, %v690
    %v692 = vpack.c.bf16 %v691, %v691
    %693 = vrot.lane.b32.xlu0 %v392, 48
    %v694 = vpop.permute.xlu0 %693
    %v696 = vsel %vm396, %v692, 0
    %v699 = vsel %vm466, %v694, 0
    %701 = vmatprep.subr.bf16.mxu0 0
    %702 = vmatpush1.bf16.msra.mxu0 %v699
    %703 = vmatprep.subr.bf16.mxu0 0
    %704 = vmatpush1.bf16.msra.mxu0 0
    %705 = vmatprep.subr.bf16.mxu0 0
    %706 = vmatpush1.bf16.msra.mxu0 0
    %707 = vmatprep.subr.bf16.mxu0 0
    %708 = vmatpush1.bf16.msra.mxu0 0
    %709 = vmatprep.subr.bf16.mxu0 0
    %710 = vmatpush1.bf16.msra.mxu0 0
    %711 = vmatprep.subr.bf16.mxu0 0
    %712 = vmatpush1.bf16.msra.mxu0 0
    %713 = vmatprep.subr.bf16.mxu0 0
    %714 = vmatpush1.bf16.msra.mxu0 0
    %715 = vmatprep.subr.bf16.mxu0 0
    %716 = vmatpush1.bf16.msra.mxu0 0
    %717 = vmatprep.subr.bf16.mxu0 0
    %718 = vmatpush1.bf16.msra.mxu0 0
    %719 = vmatprep.subr.bf16.mxu0 0
    %720 = vmatpush1.bf16.msra.mxu0 0
    %721 = vmatprep.subr.bf16.mxu0 0
    %722 = vmatpush1.bf16.msra.mxu0 0
    %723 = vmatprep.subr.bf16.mxu0 0
    %724 = vmatpush1.bf16.msra.mxu0 0
    %725 = vmatprep.subr.bf16.mxu0 0
    %726 = vmatpush1.bf16.msra.mxu0 0
    %727 = vmatprep.subr.bf16.mxu0 0
    %728 = vmatpush1.bf16.msra.mxu0 0
    %729 = vmatprep.subr.bf16.mxu0 0
    %730 = vmatpush1.bf16.msra.mxu0 0
    %731 = vmatprep.subr.bf16.mxu0 0
    %732 = vmatpush1.bf16.msra.mxu0 0
    %733 = vmatprep.mubr.bf16.mxu0 0
    %734 = vmatmul.mubr.bf16.gmra.mrb[0].mxu0 %v696
    %v735 = vpop.f32.mrb[0].mxu0
    %v736 = vadd.f32 0.0, %v735
    %v737 = vpop.f32.mrb[0].mxu0
    %v738 = vpop.f32.mrb[0].mxu0
    %v739 = vpop.f32.mrb[0].mxu0
    %740 = vdwg.mxu0
    %742 = vrot.lane.b32.xlu0 %v736, 16
    %v743 = vpop.permute.xlu0 %742
    %vm745 = vcmask 195712
    %746 = vst.msk [vmem:[#allocation2] sm:$0xff] %vm745, %v743
    %747 = vrot.lane.b32.xlu0 %v392, 104
    %v748 = vpop.permute.xlu0 %747
    %749 = vrot.lane.b32.xlu0 %v392, 72
    %v750 = vpop.permute.xlu0 %749
    %v752 = vsel %vm396, %v748, 0
    %v755 = vsel %vm396, %v750, 0
    %757 = vmatprep.subr.bf16.mxu0 0
    %758 = vmatpush1.bf16.xpose.msra.mxu0 %v755
    %759 = vmatprep.subr.bf16.mxu0 0
    %760 = vmatpush1.bf16.xpose.msra.mxu0 0
    %761 = vmatprep.subr.bf16.mxu0 0
    %762 = vmatpush1.bf16.xpose.msra.mxu0 0
    %763 = vmatprep.subr.bf16.mxu0 0
    %764 = vmatpush1.bf16.xpose.msra.mxu0 0
    %765 = vmatprep.subr.bf16.mxu0 0
    %766 = vmatpush1.bf16.xpose.msra.mxu0 0
    %767 = vmatprep.subr.bf16.mxu0 0
    %768 = vmatpush1.bf16.xpose.msra.mxu0 0
    %769 = vmatprep.subr.bf16.mxu0 0
    %770 = vmatpush1.bf16.xpose.msra.mxu0 0
    %771 = vmatprep.subr.bf16.mxu0 0
    %772 = vmatpush1.bf16.xpose.msra.mxu0 0
    %773 = vmatprep.subr.bf16.mxu0 0
    %774 = vmatpush1.bf16.xpose.msra.mxu0 0
    %775 = vmatprep.subr.bf16.mxu0 0
    %776 = vmatpush1.bf16.xpose.msra.mxu0 0
    %777 = vmatprep.subr.bf16.mxu0 0
    %778 = vmatpush1.bf16.xpose.msra.mxu0 0
    %779 = vmatprep.subr.bf16.mxu0 0
    %780 = vmatpush1.bf16.xpose.msra.mxu0 0
    %781 = vmatprep.subr.bf16.mxu0 0
    %782 = vmatpush1.bf16.xpose.msra.mxu0 0
    %783 = vmatprep.subr.bf16.mxu0 0
    %784 = vmatpush1.bf16.xpose.msra.mxu0 0
    %785 = vmatprep.subr.bf16.mxu0 0
    %786 = vmatpush1.bf16.xpose.msra.mxu0 0
    %787 = vmatprep.subr.bf16.mxu0 0
    %788 = vmatpush1.bf16.xpose.msra.mxu0 0
    %789 = vmatprep.mubr.bf16.mxu0 0
    %790 = vmatmul.mubr.bf16.gmra.mrb[0].mxu0 %v752
    %v791 = vpop.f32.mrb[0].mxu0
    %v792 = vadd.f32 0.0, %v791
    %v793 = vpop.f32.mrb[0].mxu0
    %v794 = vpop.f32.mrb[0].mxu0
    %v795 = vpop.f32.mrb[0].mxu0
    %796 = vdwg.mxu0
    %v797 = vmul.f32 %v792, 0.35355338
    %v798 = vadd.f32 %v797, %v447
    %v799 = vsel %vm396, %v798, -inf
    %800 = vmax.xlane.f32.xlu0 %v799
    %v801 = vpop.xlane.xlu0 %800
    %v802 = vsub.f32 %v798, %v801
    %v803 = vmul.f32 %v802, 1.442695
    %v804 = vpow.pop %v803
    %v805 = vsel %vm396, %v804, 0.0
    %806 = vadd.xlane.f32.xlu0 %v805
    %v807 = vpop.xlane.xlu0 %806
    %v808 = vrcp.pop %v807
    %v809 = vmul.f32 %v804, %v808
    %v810 = vpack.c.bf16 %v809, %v809
    %811 = vrot.lane.b32.xlu0 %v392, 40
    %v812 = vpop.permute.xlu0 %811
    %v814 = vsel %vm396, %v810, 0
    %v817 = vsel %vm466, %v812, 0
    %819 = vmatprep.subr.bf16.mxu0 0
    %820 = vmatpush1.bf16.msra.mxu0 %v817
    %821 = vmatprep.subr.bf16.mxu0 0
    %822 = vmatpush1.bf16.msra.mxu0 0
    %823 = vmatprep.subr.bf16.mxu0 0
    %824 = vmatpush1.bf16.msra.mxu0 0
    %825 = vmatprep.subr.bf16.mxu0 0
    %826 = vmatpush1.bf16.msra.mxu0 0
    %827 = vmatprep.subr.bf16.mxu0 0
    %828 = vmatpush1.bf16.msra.mxu0 0
    %829 = vmatprep.subr.bf16.mxu0 0
    %830 = vmatpush1.bf16.msra.mxu0 0
    %831 = vmatprep.subr.bf16.mxu0 0
    %832 = vmatpush1.bf16.msra.mxu0 0
    %833 = vmatprep.subr.bf16.mxu0 0
    %834 = vmatpush1.bf16.msra.mxu0 0
    %835 = vmatprep.subr.bf16.mxu0 0
    %836 = vmatpush1.bf16.msra.mxu0 0
    %837 = vmatprep.subr.bf16.mxu0 0
    %838 = vmatpush1.bf16.msra.mxu0 0
    %839 = vmatprep.subr.bf16.mxu0 0
    %840 = vmatpush1.bf16.msra.mxu0 0
    %841 = vmatprep.subr.bf16.mxu0 0
    %842 = vmatpush1.bf16.msra.mxu0 0
    %843 = vmatprep.subr.bf16.mxu0 0
    %844 = vmatpush1.bf16.msra.mxu0 0
    %845 = vmatprep.subr.bf16.mxu0 0
    %846 = vmatpush1.bf16.msra.mxu0 0
    %847 = vmatprep.subr.bf16.mxu0 0
    %848 = vmatpush1.bf16.msra.mxu0 0
    %849 = vmatprep.subr.bf16.mxu0 0
    %850 = vmatpush1.bf16.msra.mxu0 0
    %851 = vmatprep.mubr.bf16.mxu0 0
    %852 = vmatmul.mubr.bf16.gmra.mrb[0].mxu0 %v814
    %v853 = vpop.f32.mrb[0].mxu0
    %v854 = vadd.f32 0.0, %v853
    %v855 = vpop.f32.mrb[0].mxu0
    %v856 = vpop.f32.mrb[0].mxu0
    %v857 = vpop.f32.mrb[0].mxu0
    %858 = vdwg.mxu0
    %860 = vrot.lane.b32.xlu0 %v854, 24
    %v861 = vpop.permute.xlu0 %860
    %vm863 = vcmask 261312
    %864 = vst.msk [vmem:[#allocation2] sm:$0xff] %vm863, %v861
    %v865 = vrot.slane %v392, 4
    %866 = vrot.lane.b32.xlu0 %v865, 96
    %v867 = vpop.permute.xlu0 %866
    %v869 = vsel %vm396, %v865, 0
    %v872 = vsel %vm396, %v867, 0
    %874 = vmatprep.subr.bf16.mxu0 0
    %875 = vmatpush1.bf16.xpose.msra.mxu0 %v872
    %876 = vmatprep.subr.bf16.mxu0 0
    %877 = vmatpush1.bf16.xpose.msra.mxu0 0
    %878 = vmatprep.subr.bf16.mxu0 0
    %879 = vmatpush1.bf16.xpose.msra.mxu0 0
    %880 = vmatprep.subr.bf16.mxu0 0
    %881 = vmatpush1.bf16.xpose.msra.mxu0 0
    %882 = vmatprep.subr.bf16.mxu0 0
    %883 = vmatpush1.bf16.xpose.msra.mxu0 0
    %884 = vmatprep.subr.bf16.mxu0 0
    %885 = vmatpush1.bf16.xpose.msra.mxu0 0
    %886 = vmatprep.subr.bf16.mxu0 0
    %887 = vmatpush1.bf16.xpose.msra.mxu0 0
    %888 = vmatprep.subr.bf16.mxu0 0
    %889 = vmatpush1.bf16.xpose.msra.mxu0 0
    %890 = vmatprep.subr.bf16.mxu0 0
    %891 = vmatpush1.bf16.xpose.msra.mxu0 0
    %892 = vmatprep.subr.bf16.mxu0 0
    %893 = vmatpush1.bf16.xpose.msra.mxu0 0
    %894 = vmatprep.subr.bf16.mxu0 0
    %895 = vmatpush1.bf16.xpose.msra.mxu0 0
    %896 = vmatprep.subr.bf16.mxu0 0
    %897 = vmatpush1.bf16.xpose.msra.mxu0 0
    %898 = vmatprep.subr.bf16.mxu0 0
    %899 = vmatpush1.bf16.xpose.msra.mxu0 0
    %900 = vmatprep.subr.bf16.mxu0 0
    %901 = vmatpush1.bf16.xpose.msra.mxu0 0
    %902 = vmatprep.subr.bf16.mxu0 0
    %903 = vmatpush1.bf16.xpose.msra.mxu0 0
    %904 = vmatprep.subr.bf16.mxu0 0
    %905 = vmatpush1.bf16.xpose.msra.mxu0 0
    %906 = vmatprep.mubr.bf16.mxu0 0
    %907 = vmatmul.mubr.bf16.gmra.mrb[0].mxu0 %v869
    %v908 = vpop.f32.mrb[0].mxu0
    %v909 = vadd.f32 0.0, %v908
    %v910 = vpop.f32.mrb[0].mxu0
    %v911 = vpop.f32.mrb[0].mxu0
    %v912 = vpop.f32.mrb[0].mxu0
    %913 = vdwg.mxu0
    %v914 = vmul.f32 %v909, 0.35355338
    %v915 = vlaneseq
    %v916 = vshrl.u32 %v915, 7
    %v917 = vsub.s32 1, %v916
    %v918 = vrot.slane %v323, %v917
    %v919 = vadd.f32 %v914, %v918
    %v920 = vsel %vm396, %v919, -inf
    %921 = vmax.xlane.f32.xlu0 %v920
    %v922 = vpop.xlane.xlu0 %921
    %v923 = vsub.f32 %v919, %v922
    %v924 = vmul.f32 %v923, 1.442695
    %v925 = vpow.pop %v924
    %v926 = vsel %vm396, %v925, 0.0
    %927 = vadd.xlane.f32.xlu0 %v926
    %v928 = vpop.xlane.xlu0 %927
    %v929 = vrcp.pop %v928
    %v930 = vmul.f32 %v925, %v929
    %v931 = vpack.c.bf16 %v930, %v930
    %932 = vrot.lane.b32.xlu0 %v865, 64
    %v933 = vpop.permute.xlu0 %932
    %v935 = vsel %vm396, %v931, 0
    %v938 = vsel %vm466, %v933, 0
    %940 = vmatprep.subr.bf16.mxu0 0
    %941 = vmatpush1.bf16.msra.mxu0 %v938
    %942 = vmatprep.subr.bf16.mxu0 0
    %943 = vmatpush1.bf16.msra.mxu0 0
    %944 = vmatprep.subr.bf16.mxu0 0
    %945 = vmatpush1.bf16.msra.mxu0 0
    %946 = vmatprep.subr.bf16.mxu0 0
    %947 = vmatpush1.bf16.msra.mxu0 0
    %948 = vmatprep.subr.bf16.mxu0 0
    %949 = vmatpush1.bf16.msra.mxu0 0
    %950 = vmatprep.subr.bf16.mxu0 0
    %951 = vmatpush1.bf16.msra.mxu0 0
    %952 = vmatprep.subr.bf16.mxu0 0
    %953 = vmatpush1.bf16.msra.mxu0 0
    %954 = vmatprep.subr.bf16.mxu0 0
    %955 = vmatpush1.bf16.msra.mxu0 0
    %956 = vmatprep.subr.bf16.mxu0 0
    %957 = vmatpush1.bf16.msra.mxu0 0
    %958 = vmatprep.subr.bf16.mxu0 0
    %959 = vmatpush1.bf16.msra.mxu0 0
    %960 = vmatprep.subr.bf16.mxu0 0
    %961 = vmatpush1.bf16.msra.mxu0 0
    %962 = vmatprep.subr.bf16.mxu0 0
    %963 = vmatpush1.bf16.msra.mxu0 0
    %964 = vmatprep.subr.bf16.mxu0 0
    %965 = vmatpush1.bf16.msra.mxu0 0
    %966 = vmatprep.subr.bf16.mxu0 0
    %967 = vmatpush1.bf16.msra.mxu0 0
    %968 = vmatprep.subr.bf16.mxu0 0
    %969 = vmatpush1.bf16.msra.mxu0 0
    %970 = vmatprep.subr.bf16.mxu0 0
    %971 = vmatpush1.bf16.msra.mxu0 0
    %972 = vmatprep.mubr.bf16.mxu0 0
    %973 = vmatmul.mubr.bf16.gmra.mrb[0].mxu0 %v935
    %v974 = vpop.f32.mrb[0].mxu0
    %v975 = vadd.f32 0.0, %v974
    %v976 = vpop.f32.mrb[0].mxu0
    %v977 = vpop.f32.mrb[0].mxu0
    %v978 = vpop.f32.mrb[0].mxu0
    %979 = vdwg.mxu0
    %980 = vst.msk [vmem:[#allocation2 + $0x8] sm:$0xff] %vm396, %v975
    %981 = vrot.lane.b32.xlu0 %v865, 120
    %v982 = vpop.permute.xlu0 %981
    %983 = vrot.lane.b32.xlu0 %v865, 88
    %v984 = vpop.permute.xlu0 %983
    %v986 = vsel %vm396, %v982, 0
    %v989 = vsel %vm396, %v984, 0
    %991 = vmatprep.subr.bf16.mxu0 0
    %992 = vmatpush1.bf16.xpose.msra.mxu0 %v989
    %993 = vmatprep.subr.bf16.mxu0 0
    %994 = vmatpush1.bf16.xpose.msra.mxu0 0
    %995 = vmatprep.subr.bf16.mxu0 0
    %996 = vmatpush1.bf16.xpose.msra.mxu0 0
    %997 = vmatprep.subr.bf16.mxu0 0
    %998 = vmatpush1.bf16.xpose.msra.mxu0 0
    %999 = vmatprep.subr.bf16.mxu0 0
    %1000 = vmatpush1.bf16.xpose.msra.mxu0 0
    %1001 = vmatprep.subr.bf16.mxu0 0
    %1002 = vmatpush1.bf16.xpose.msra.mxu0 0
    %1003 = vmatprep.subr.bf16.mxu0 0
    %1004 = vmatpush1.bf16.xpose.msra.mxu0 0
    %1005 = vmatprep.subr.bf16.mxu0 0
    %1006 = vmatpush1.bf16.xpose.msra.mxu0 0
    %1007 = vmatprep.subr.bf16.mxu0 0
    %1008 = vmatpush1.bf16.xpose.msra.mxu0 0
    %1009 = vmatprep.subr.bf16.mxu0 0
    %1010 = vmatpush1.bf16.xpose.msra.mxu0 0
    %1011 = vmatprep.subr.bf16.mxu0 0
    %1012 = vmatpush1.bf16.xpose.msra.mxu0 0
    %1013 = vmatprep.subr.bf16.mxu0 0
    %1014 = vmatpush1.bf16.xpose.msra.mxu0 0
    %1015 = vmatprep.subr.bf16.mxu0 0
    %1016 = vmatpush1.bf16.xpose.msra.mxu0 0
    %1017 = vmatprep.subr.bf16.mxu0 0
    %1018 = vmatpush1.bf16.xpose.msra.mxu0 0
    %1019 = vmatprep.subr.bf16.mxu0 0
    %1020 = vmatpush1.bf16.xpose.msra.mxu0 0
    %1021 = vmatprep.subr.bf16.mxu0 0
    %1022 = vmatpush1.bf16.xpose.msra.mxu0 0
    %1023 = vmatprep.mubr.bf16.mxu0 0
    %1024 = vmatmul.mubr.bf16.gmra.mrb[0].mxu0 %v986
    %v1025 = vpop.f32.mrb[0].mxu0
    %v1026 = vadd.f32 0.0, %v1025
    %v1027 = vpop.f32.mrb[0].mxu0
    %v1028 = vpop.f32.mrb[0].mxu0
    %v1029 = vpop.f32.mrb[0].mxu0
    %1030 = vdwg.mxu0
    %v1031 = vmul.f32 %v1026, 0.35355338
    %v1032 = vadd.f32 %v1031, %v918
    %v1033 = vsel %vm396, %v1032, -inf
    %1034 = vmax.xlane.f32.xlu0 %v1033
    %v1035 = vpop.xlane.xlu0 %1034
    %v1036 = vsub.f32 %v1032, %v1035
    %v1037 = vmul.f32 %v1036, 1.442695
    %v1038 = vpow.pop %v1037
    %v1039 = vsel %vm396, %v1038, 0.0
    %1040 = vadd.xlane.f32.xlu0 %v1039
    %v1041 = vpop.xlane.xlu0 %1040
    %v1042 = vrcp.pop %v1041
    %v1043 = vmul.f32 %v1038, %v1042
    %v1044 = vpack.c.bf16 %v1043, %v1043
    %1045 = vrot.lane.b32.xlu0 %v865, 56
    %v1046 = vpop.permute.xlu0 %1045
    %v1048 = vsel %vm396, %v1044, 0
    %v1051 = vsel %vm466, %v1046, 0
    %1053 = vmatprep.subr.bf16.mxu0 0
    %1054 = vmatpush1.bf16.msra.mxu0 %v1051
    %1055 = vmatprep.subr.bf16.mxu0 0
    %1056 = vmatpush1.bf16.msra.mxu0 0
    %1057 = vmatprep.subr.bf16.mxu0 0
    %1058 = vmatpush1.bf16.msra.mxu0 0
    %1059 = vmatprep.subr.bf16.mxu0 0
    %1060 = vmatpush1.bf16.msra.mxu0 0
    %1061 = vmatprep.subr.bf16.mxu0 0
    %1062 = vmatpush1.bf16.msra.mxu0 0
    %1063 = vmatprep.subr.bf16.mxu0 0
    %1064 = vmatpush1.bf16.msra.mxu0 0
    %1065 = vmatprep.subr.bf16.mxu0 0
    %1066 = vmatpush1.bf16.msra.mxu0 0
    %1067 = vmatprep.subr.bf16.mxu0 0
    %1068 = vmatpush1.bf16.msra.mxu0 0
    %1069 = vmatprep.subr.bf16.mxu0 0
    %1070 = vmatpush1.bf16.msra.mxu0 0
    %1071 = vmatprep.subr.bf16.mxu0 0
    %1072 = vmatpush1.bf16.msra.mxu0 0
    %1073 = vmatprep.subr.bf16.mxu0 0
    %1074 = vmatpush1.bf16.msra.mxu0 0
    %1075 = vmatprep.subr.bf16.mxu0 0
    %1076 = vmatpush1.bf16.msra.mxu0 0
    %1077 = vmatprep.subr.bf16.mxu0 0
    %1078 = vmatpush1.bf16.msra.mxu0 0
    %1079 = vmatprep.subr.bf16.mxu0 0
    %1080 = vmatpush1.bf16.msra.mxu0 0
    %1081 = vmatprep.subr.bf16.mxu0 0
    %1082 = vmatpush1.bf16.msra.mxu0 0
    %1083 = vmatprep.subr.bf16.mxu0 0
    %1084 = vmatpush1.bf16.msra.mxu0 0
    %1085 = vmatprep.mubr.bf16.mxu0 0
    %1086 = vmatmul.mubr.bf16.gmra.mrb[0].mxu0 %v1048
    %v1087 = vpop.f32.mrb[0].mxu0
    %v1088 = vadd.f32 0.0, %v1087
    %v1089 = vpop.f32.mrb[0].mxu0
    %v1090 = vpop.f32.mrb[0].mxu0
    %v1091 = vpop.f32.mrb[0].mxu0
    %1092 = vdwg.mxu0
    %1094 = vrot.lane.b32.xlu0 %v1088, 8
    %v1095 = vpop.permute.xlu0 %1094
    %1097 = vst.msk [vmem:[#allocation2 + $0x8] sm:$0xff] %vm627, %v1095
    %1098 = vrot.lane.b32.xlu0 %v865, 112
    %v1099 = vpop.permute.xlu0 %1098
    %1100 = vrot.lane.b32.xlu0 %v865, 80
    %v1101 = vpop.permute.xlu0 %1100
    %v1103 = vsel %vm396, %v1099, 0
    %v1106 = vsel %vm396, %v1101, 0
    %1108 = vmatprep.subr.bf16.mxu0 0
    %1109 = vmatpush1.bf16.xpose.msra.mxu0 %v1106
    %1110 = vmatprep.subr.bf16.mxu0 0
    %1111 = vmatpush1.bf16.xpose.msra.mxu0 0
    %1112 = vmatprep.subr.bf16.mxu0 0
    %1113 = vmatpush1.bf16.xpose.msra.mxu0 0
    %1114 = vmatprep.subr.bf16.mxu0 0
    %1115 = vmatpush1.bf16.xpose.msra.mxu0 0
    %1116 = vmatprep.subr.bf16.mxu0 0
    %1117 = vmatpush1.bf16.xpose.msra.mxu0 0
    %1118 = vmatprep.subr.bf16.mxu0 0
    %1119 = vmatpush1.bf16.xpose.msra.mxu0 0
    %1120 = vmatprep.subr.bf16.mxu0 0
    %1121 = vmatpush1.bf16.xpose.msra.mxu0 0
    %1122 = vmatprep.subr.bf16.mxu0 0
    %1123 = vmatpush1.bf16.xpose.msra.mxu0 0
    %1124 = vmatprep.subr.bf16.mxu0 0
    %1125 = vmatpush1.bf16.xpose.msra.mxu0 0
    %1126 = vmatprep.subr.bf16.mxu0 0
    %1127 = vmatpush1.bf16.xpose.msra.mxu0 0
    %1128 = vmatprep.subr.bf16.mxu0 0
    %1129 = vmatpush1.bf16.xpose.msra.mxu0 0
    %1130 = vmatprep.subr.bf16.mxu0 0
    %1131 = vmatpush1.bf16.xpose.msra.mxu0 0
    %1132 = vmatprep.subr.bf16.mxu0 0
    %1133 = vmatpush1.bf16.xpose.msra.mxu0 0
    %1134 = vmatprep.subr.bf16.mxu0 0
    %1135 = vmatpush1.bf16.xpose.msra.mxu0 0
    %1136 = vmatprep.subr.bf16.mxu0 0
    %1137 = vmatpush1.bf16.xpose.msra.mxu0 0
    %1138 = vmatprep.subr.bf16.mxu0 0
    %1139 = vmatpush1.bf16.xpose.msra.mxu0 0
    %1140 = vmatprep.mubr.bf16.mxu0 0
    %1141 = vmatmul.mubr.bf16.gmra.mrb[0].mxu0 %v1103
    %v1142 = vpop.f32.mrb[0].mxu0
    %v1143 = vadd.f32 0.0, %v1142
    %v1144 = vpop.f32.mrb[0].mxu0
    %v1145 = vpop.f32.mrb[0].mxu0
    %v1146 = vpop.f32.mrb[0].mxu0
    %1147 = vdwg.mxu0
    %v1148 = vmul.f32 %v1143, 0.35355338
    %v1149 = vadd.f32 %v1148, %v918
    %v1150 = vsel %vm396, %v1149, -inf
    %1151 = vmax.xlane.f32.xlu0 %v1150
    %v1152 = vpop.xlane.xlu0 %1151
    %v1153 = vsub.f32 %v1149, %v1152
    %v1154 = vmul.f32 %v1153, 1.442695
    %v1155 = vpow.pop %v1154
    %v1156 = vsel %vm396, %v1155, 0.0
    %1157 = vadd.xlane.f32.xlu0 %v1156
    %v1158 = vpop.xlane.xlu0 %1157
    %v1159 = vrcp.pop %v1158
    %v1160 = vmul.f32 %v1155, %v1159
    %v1161 = vpack.c.bf16 %v1160, %v1160
    %1162 = vrot.lane.b32.xlu0 %v865, 48
    %v1163 = vpop.permute.xlu0 %1162
    %v1165 = vsel %vm396, %v1161, 0
    %v1168 = vsel %vm466, %v1163, 0
    %1170 = vmatprep.subr.bf16.mxu0 0
    %1171 = vmatpush1.bf16.msra.mxu0 %v1168
    %1172 = vmatprep.subr.bf16.mxu0 0
    %1173 = vmatpush1.bf16.msra.mxu0 0
    %1174 = vmatprep.subr.bf16.mxu0 0
    %1175 = vmatpush1.bf16.msra.mxu0 0
    %1176 = vmatprep.subr.bf16.mxu0 0
    %1177 = vmatpush1.bf16.msra.mxu0 0
    %1178 = vmatprep.subr.bf16.mxu0 0
    %1179 = vmatpush1.bf16.msra.mxu0 0
    %1180 = vmatprep.subr.bf16.mxu0 0
    %1181 = vmatpush1.bf16.msra.mxu0 0
    %1182 = vmatprep.subr.bf16.mxu0 0
    %1183 = vmatpush1.bf16.msra.mxu0 0
    %1184 = vmatprep.subr.bf16.mxu0 0
    %1185 = vmatpush1.bf16.msra.mxu0 0
    %1186 = vmatprep.subr.bf16.mxu0 0
    %1187 = vmatpush1.bf16.msra.mxu0 0
    %1188 = vmatprep.subr.bf16.mxu0 0
    %1189 = vmatpush1.bf16.msra.mxu0 0
    %1190 = vmatprep.subr.bf16.mxu0 0
    %1191 = vmatpush1.bf16.msra.mxu0 0
    %1192 = vmatprep.subr.bf16.mxu0 0
    %1193 = vmatpush1.bf16.msra.mxu0 0
    %1194 = vmatprep.subr.bf16.mxu0 0
    %1195 = vmatpush1.bf16.msra.mxu0 0
    %1196 = vmatprep.subr.bf16.mxu0 0
    %1197 = vmatpush1.bf16.msra.mxu0 0
    %1198 = vmatprep.subr.bf16.mxu0 0
    %1199 = vmatpush1.bf16.msra.mxu0 0
    %1200 = vmatprep.subr.bf16.mxu0 0
    %1201 = vmatpush1.bf16.msra.mxu0 0
    %1202 = vmatprep.mubr.bf16.mxu0 0
    %1203 = vmatmul.mubr.bf16.gmra.mrb[0].mxu0 %v1165
    %v1204 = vpop.f32.mrb[0].mxu0
    %v1205 = vadd.f32 0.0, %v1204
    %v1206 = vpop.f32.mrb[0].mxu0
    %v1207 = vpop.f32.mrb[0].mxu0
    %v1208 = vpop.f32.mrb[0].mxu0
    %1209 = vdwg.mxu0
    %1211 = vrot.lane.b32.xlu0 %v1205, 16
    %v1212 = vpop.permute.xlu0 %1211
    %1214 = vst.msk [vmem:[#allocation2 + $0x8] sm:$0xff] %vm745, %v1212
    %1215 = vrot.lane.b32.xlu0 %v865, 104
    %v1216 = vpop.permute.xlu0 %1215
    %1217 = vrot.lane.b32.xlu0 %v865, 72
    %v1218 = vpop.permute.xlu0 %1217
    %v1220 = vsel %vm396, %v1216, 0
    %v1223 = vsel %vm396, %v1218, 0
    %1225 = vmatprep.subr.bf16.mxu0 0
    %1226 = vmatpush1.bf16.xpose.msra.mxu0 %v1223
    %1227 = vmatprep.subr.bf16.mxu0 0
    %1228 = vmatpush1.bf16.xpose.msra.mxu0 0
    %1229 = vmatprep.subr.bf16.mxu0 0
    %1230 = vmatpush1.bf16.xpose.msra.mxu0 0
    %1231 = vmatprep.subr.bf16.mxu0 0
    %1232 = vmatpush1.bf16.xpose.msra.mxu0 0
    %1233 = vmatprep.subr.bf16.mxu0 0
    %1234 = vmatpush1.bf16.xpose.msra.mxu0 0
    %1235 = vmatprep.subr.bf16.mxu0 0
    %1236 = vmatpush1.bf16.xpose.msra.mxu0 0
    %1237 = vmatprep.subr.bf16.mxu0 0
    %1238 = vmatpush1.bf16.xpose.msra.mxu0 0
    %1239 = vmatprep.subr.bf16.mxu0 0
    %1240 = vmatpush1.bf16.xpose.msra.mxu0 0
    %1241 = vmatprep.subr.bf16.mxu0 0
    %1242 = vmatpush1.bf16.xpose.msra.mxu0 0
    %1243 = vmatprep.subr.bf16.mxu0 0
    %1244 = vmatpush1.bf16.xpose.msra.mxu0 0
    %1245 = vmatprep.subr.bf16.mxu0 0
    %1246 = vmatpush1.bf16.xpose.msra.mxu0 0
    %1247 = vmatprep.subr.bf16.mxu0 0
    %1248 = vmatpush1.bf16.xpose.msra.mxu0 0
    %1249 = vmatprep.subr.bf16.mxu0 0
    %1250 = vmatpush1.bf16.xpose.msra.mxu0 0
    %1251 = vmatprep.subr.bf16.mxu0 0
    %1252 = vmatpush1.bf16.xpose.msra.mxu0 0
    %1253 = vmatprep.subr.bf16.mxu0 0
    %1254 = vmatpush1.bf16.xpose.msra.mxu0 0
    %1255 = vmatprep.subr.bf16.mxu0 0
    %1256 = vmatpush1.bf16.xpose.msra.mxu0 0
    %1257 = vmatprep.mubr.bf16.mxu0 0
    %1258 = vmatmul.mubr.bf16.gmra.mrb[0].mxu0 %v1220
    %v1259 = vpop.f32.mrb[0].mxu0
    %v1260 = vadd.f32 0.0, %v1259
    %v1261 = vpop.f32.mrb[0].mxu0
    %v1262 = vpop.f32.mrb[0].mxu0
    %v1263 = vpop.f32.mrb[0].mxu0
    %1264 = vdwg.mxu0
    %v1265 = vmul.f32 %v1260, 0.35355338
    %v1266 = vadd.f32 %v1265, %v918
    %v1267 = vsel %vm396, %v1266, -inf
    %1268 = vmax.xlane.f32.xlu0 %v1267
    %v1269 = vpop.xlane.xlu0 %1268
    %v1270 = vsub.f32 %v1266, %v1269
    %v1271 = vmul.f32 %v1270, 1.442695
    %v1272 = vpow.pop %v1271
    %v1273 = vsel %vm396, %v1272, 0.0
    %1274 = vadd.xlane.f32.xlu0 %v1273
    %v1275 = vpop.xlane.xlu0 %1274
    %v1276 = vrcp.pop %v1275
    %v1277 = vmul.f32 %v1272, %v1276
    %v1278 = vpack.c.bf16 %v1277, %v1277
    %1279 = vrot.lane.b32.xlu0 %v865, 40
    %v1280 = vpop.permute.xlu0 %1279
    %v1282 = vsel %vm396, %v1278, 0
    %v1285 = vsel %vm466, %v1280, 0
    %1287 = vmatprep.subr.bf16.mxu0 0
    %1288 = vmatpush1.bf16.msra.mxu0 %v1285
    %1289 = vmatprep.subr.bf16.mxu0 0
    %1290 = vmatpush1.bf16.msra.mxu0 0
    %1291 = vmatprep.subr.bf16.mxu0 0
    %1292 = vmatpush1.bf16.msra.mxu0 0
    %1293 = vmatprep.subr.bf16.mxu0 0
    %1294 = vmatpush1.bf16.msra.mxu0 0
    %1295 = vmatprep.subr.bf16.mxu0 0
    %1296 = vmatpush1.bf16.msra.mxu0 0
    %1297 = vmatprep.subr.bf16.mxu0 0
    %1298 = vmatpush1.bf16.msra.mxu0 0
    %1299 = vmatprep.subr.bf16.mxu0 0
    %1300 = vmatpush1.bf16.msra.mxu0 0
    %1301 = vmatprep.subr.bf16.mxu0 0
    %1302 = vmatpush1.bf16.msra.mxu0 0
    %1303 = vmatprep.subr.bf16.mxu0 0
    %1304 = vmatpush1.bf16.msra.mxu0 0
    %1305 = vmatprep.subr.bf16.mxu0 0
    %1306 = vmatpush1.bf16.msra.mxu0 0
    %1307 = vmatprep.subr.bf16.mxu0 0
    %1308 = vmatpush1.bf16.msra.mxu0 0
    %1309 = vmatprep.subr.bf16.mxu0 0
    %1310 = vmatpush1.bf16.msra.mxu0 0
    %1311 = vmatprep.subr.bf16.mxu0 0
    %1312 = vmatpush1.bf16.msra.mxu0 0
    %1313 = vmatprep.subr.bf16.mxu0 0
    %1314 = vmatpush1.bf16.msra.mxu0 0
    %1315 = vmatprep.subr.bf16.mxu0 0
    %1316 = vmatpush1.bf16.msra.mxu0 0
    %1317 = vmatprep.subr.bf16.mxu0 0
    %1318 = vmatpush1.bf16.msra.mxu0 0
    %1319 = vmatprep.mubr.bf16.mxu0 0
    %1320 = vmatmul.mubr.bf16.gmra.mrb[0].mxu0 %v1282
    %v1321 = vpop.f32.mrb[0].mxu0
    %v1322 = vadd.f32 0.0, %v1321
    %v1323 = vpop.f32.mrb[0].mxu0
    %v1324 = vpop.f32.mrb[0].mxu0
    %v1325 = vpop.f32.mrb[0].mxu0
    %1326 = vdwg.mxu0
    %1328 = vrot.lane.b32.xlu0 %v1322, 24
    %v1329 = vpop.permute.xlu0 %1328
    %1331 = vst.msk [vmem:[#allocation2 + $0x8] sm:$0xff] %vm863, %v1329
    %v1332 = vld [vmem:[#allocation2] sm:$0xff]
    %v1333 = vld [vmem:[#allocation2 + $0x8] sm:$0xff]
    %v1334 = vld [vmem:[%s13] sm:$0xf]
    %v1335 = vld [vmem:[%s13 + $0x4] sm:$0xf]
    %v1336 = vld [vmem:[%s13 + $0x8] sm:$0xf]
    %v1337 = vld [vmem:[%s13 + $0xc] sm:$0xf]
    %v1338 = vpack.c.bf16 %v1333, %v1332
    %v1339 = vld [vmem:[#allocation11] sm:$0x1]
    %v1341 = vlaneseq
    %v1342 = vshrl.u32 %v1341, 7
    %v1343 = vsub.s32 0, %v1342
    %v1344 = vrot.slane %v1339, %v1343
    %v1350 = vunpack.c.l.b16 %v1334
    %v1351 = vunpack.c.l.b16 %v1335
    %v1352 = vunpack.c.l.b16 %v1336
    %v1353 = vunpack.c.l.b16 %v1337
    %v1354 = vpack.c.b16 %v1351, %v1350
    %v1355 = vpack.c.b16 %v1353, %v1352
    %v1359 = vsel %vm279, %v1338, 0
    %1361 = vmatprep.subr.bf16.mxu0 0
    %1362 = vmatpush1.bf16.msra.mxu0 %v1354
    %1363 = vmatprep.subr.bf16.mxu0 0
    %1364 = vmatpush1.bf16.msra.mxu0 %v1355
    %1365 = vmatprep.subr.bf16.mxu0 0
    %1366 = vmatpush1.bf16.msra.mxu0 0
    %1367 = vmatprep.subr.bf16.mxu0 0
    %1368 = vmatpush1.bf16.msra.mxu0 0
    %1369 = vmatprep.subr.bf16.mxu0 0
    %1370 = vmatpush1.bf16.msra.mxu0 0
    %1371 = vmatprep.subr.bf16.mxu0 0
    %1372 = vmatpush1.bf16.msra.mxu0 0
    %1373 = vmatprep.subr.bf16.mxu0 0
    %1374 = vmatpush1.bf16.msra.mxu0 0
    %1375 = vmatprep.subr.bf16.mxu0 0
    %1376 = vmatpush1.bf16.msra.mxu0 0
    %1377 = vmatprep.subr.bf16.mxu0 0
    %1378 = vmatpush1.bf16.msra.mxu0 0
    %1379 = vmatprep.subr.bf16.mxu0 0
    %1380 = vmatpush1.bf16.msra.mxu0 0
    %1381 = vmatprep.subr.bf16.mxu0 0
    %1382 = vmatpush1.bf16.msra.mxu0 0
    %1383 = vmatprep.subr.bf16.mxu0 0
    %1384 = vmatpush1.bf16.msra.mxu0 0
    %1385 = vmatprep.subr.bf16.mxu0 0
    %1386 = vmatpush1.bf16.msra.mxu0 0
    %1387 = vmatprep.subr.bf16.mxu0 0
    %1388 = vmatpush1.bf16.msra.mxu0 0
    %1389 = vmatprep.subr.bf16.mxu0 0
    %1390 = vmatpush1.bf16.msra.mxu0 0
    %1391 = vmatprep.subr.bf16.mxu0 0
    %1392 = vmatpush1.bf16.msra.mxu0 0
    %1393 = vmatprep.mubr.bf16.mxu0 0
    %1394 = vmatmul.mubr.bf16.gmra.mrb[0].mxu0 %v1359
    %v1395 = vpop.f32.mrb[0].mxu0
    %v1396 = vadd.f32 %v1344, %v1395
    %v1397 = vpop.f32.mrb[0].mxu0
    %v1398 = vpop.f32.mrb[0].mxu0
    %v1399 = vadd.f32 %v1344, %v1398
    %v1400 = vpop.f32.mrb[0].mxu0
    %1401 = vdwg.mxu0
    %v1402 = vadd.f32 %v1396, %v321
    %v1403 = vadd.f32 %v1399, %v322
    %v1404 = vld [vmem:[#allocation12] sm:$0x1]
    %v1405 = vld [vmem:[#allocation14] sm:$0x1]
    %v1406 = vsel %vm279, %v1402, 0.0
    %1407 = vadd.xlane.f32.xlu0 %v1406
    %v1408 = vpop.xlane.xlu0 %1407
    %v1409 = vsel %vm279, %v1403, 0.0
    %1410 = vadd.xlane.f32.xlu0 %v1409
    %v1411 = vpop.xlane.xlu0 %1410
    %v1412 = vmul.f32 %v1408, %v286
    %v1413 = vmul.f32 %v1411, %v286
    %v1414 = vsub.f32 %v1402, %v1412
    %v1415 = vsub.f32 %v1403, %v1413
    %v1416 = vmul.f32 %v1414, %v1414
    %v1417 = vmul.f32 %v1415, %v1415
    %v1418 = vsel %vm279, %v1416, 0.0
    %1419 = vadd.xlane.f32.xlu0 %v1418
    %v1420 = vpop.xlane.xlu0 %1419
    %v1421 = vsel %vm279, %v1417, 0.0
    %1422 = vadd.xlane.f32.xlu0 %v1421
    %v1423 = vpop.xlane.xlu0 %1422
    %v1424 = vmul.f32 %v1420, %v286
    %v1425 = vmul.f32 %v1423, %v286
    %v1426 = vadd.f32 %v1424, 1e-12
    %v1427 = vadd.f32 %v1425, 1e-12
    %v1428 = vrsqrt.pop %v1426
    %v1429 = vrsqrt.pop %v1427
    %v1430 = vmul.f32 %v1414, %v1428
    %v1431 = vmul.f32 %v1415, %v1429
    %v1433 = vlaneseq
    %v1434 = vshrl.u32 %v1433, 7
    %v1435 = vsub.s32 0, %v1434
    %v1436 = vrot.slane %v1404, %v1435
    %v1438 = vmul.f32 %v1430, %v1436
    %v1439 = vmul.f32 %v1431, %v1436
    %v1441 = vlaneseq
    %v1442 = vshrl.u32 %v1441, 7
    %v1443 = vsub.s32 0, %v1442
    %v1444 = vrot.slane %v1405, %v1443
    %v1446 = vadd.f32 %v1438, %v1444
    %v1447 = vadd.f32 %v1439, %v1444
    %v1448 = vld [vmem:[%s21] sm:$0xf]
    %v1449 = vld [vmem:[%s21 + $0x4] sm:$0xf]
    %v1450 = vld [vmem:[%s21 + $0x8] sm:$0xf]
    %v1451 = vld [vmem:[%s21 + $0xc] sm:$0xf]
    %v1452 = vpack.c.bf16 %v1447, %v1446
    %v1453 = vld [vmem:[#allocation15] sm:$0x1]
    %v1455 = vlaneseq
    %v1456 = vshrl.u32 %v1455, 7
    %v1457 = vsub.s32 0, %v1456
    %v1458 = vrot.slane %v1453, %v1457
    %v1464 = vunpack.c.l.b16 %v1448
    %v1465 = vunpack.c.l.b16 %v1449
    %v1466 = vunpack.c.l.b16 %v1450
    %v1467 = vunpack.c.l.b16 %v1451
    %v1468 = vpack.c.b16 %v1465, %v1464
    %v1469 = vpack.c.b16 %v1467, %v1466
    %v1473 = vsel %vm279, %v1452, 0
    %1475 = vmatprep.subr.bf16.mxu0 0
    %1476 = vmatpush1.bf16.msra.mxu0 %v1468
    %1477 = vmatprep.subr.bf16.mxu0 0
    %1478 = vmatpush1.bf16.msra.mxu0 %v1469
    %1479 = vmatprep.subr.bf16.mxu0 0
    %1480 = vmatpush1.bf16.msra.mxu0 0
    %1481 = vmatprep.subr.bf16.mxu0 0
    %1482 = vmatpush1.bf16.msra.mxu0 0
    %1483 = vmatprep.subr.bf16.mxu0 0
    %1484 = vmatpush1.bf16.msra.mxu0 0
    %1485 = vmatprep.subr.bf16.mxu0 0
    %1486 = vmatpush1.bf16.msra.mxu0 0
    %1487 = vmatprep.subr.bf16.mxu0 0
    %1488 = vmatpush1.bf16.msra.mxu0 0
    %1489 = vmatprep.subr.bf16.mxu0 0
    %1490 = vmatpush1.bf16.msra.mxu0 0
    %1491 = vmatprep.subr.bf16.mxu0 0
    %1492 = vmatpush1.bf16.msra.mxu0 0
    %1493 = vmatprep.subr.bf16.mxu0 0
    %1494 = vmatpush1.bf16.msra.mxu0 0
    %1495 = vmatprep.subr.bf16.mxu0 0
    %1496 = vmatpush1.bf16.msra.mxu0 0
    %1497 = vmatprep.subr.bf16.mxu0 0
    %1498 = vmatpush1.bf16.msra.mxu0 0
    %1499 = vmatprep.subr.bf16.mxu0 0
    %1500 = vmatpush1.bf16.msra.mxu0 0
    %1501 = vmatprep.subr.bf16.mxu0 0
    %1502 = vmatpush1.bf16.msra.mxu0 0
    %1503 = vmatprep.subr.bf16.mxu0 0
    %1504 = vmatpush1.bf16.msra.mxu0 0
    %1505 = vmatprep.subr.bf16.mxu0 0
    %1506 = vmatpush1.bf16.msra.mxu0 0
    %1507 = vmatprep.mubr.bf16.mxu0 0
    %1508 = vmatmul.mubr.bf16.gmra.mrb[0].mxu0 %v1473
    %v1509 = vpop.f32.mrb[0].mxu0
    %v1510 = vadd.f32 %v1458, %v1509
    %v1511 = vpop.f32.mrb[0].mxu0
    %v1512 = vpop.f32.mrb[0].mxu0
    %v1513 = vadd.f32 %v1458, %v1512
    %v1514 = vpop.f32.mrb[0].mxu0
    %1515 = vdwg.mxu0
    %v1516 = vmul.f32 %v1510, 0.5
    %v1517 = vmul.f32 %v1513, 0.5
    %v1518 = vmul.f32 %v1510, 0.044715
    %v1519 = vmul.f32 %v1513, 0.044715
    %v1520 = vmul.f32 %v1518, %v1510
    %v1521 = vmul.f32 %v1519, %v1513
    %v1522 = vmul.f32 %v1520, %v1510
    %v1523 = vmul.f32 %v1521, %v1513
    %v1524 = vadd.f32 %v1510, %v1522
    %v1525 = vadd.f32 %v1513, %v1523
    %v1526 = vmul.f32 %v1524, 0.7978846
    %v1527 = vmul.f32 %v1525, 0.7978846
    %v1528 = vtanh.pop %v1526
    %v1529 = vtanh.pop %v1527
    %v1530 = vadd.f32 %v1528, 1.0
    %v1531 = vadd.f32 %v1529, 1.0
    %v1532 = vmul.f32 %v1516, %v1530
    %v1533 = vmul.f32 %v1517, %v1531
    %v1534 = vld [vmem:[%s25] sm:$0xf]
    %v1535 = vld [vmem:[%s25 + $0x4] sm:$0xf]
    %v1536 = vld [vmem:[%s25 + $0x8] sm:$0xf]
    %v1537 = vld [vmem:[%s25 + $0xc] sm:$0xf]
    %v1538 = vld [vmem:[%s25 + $0x10] sm:$0xf]
    %v1539 = vld [vmem:[%s25 + $0x14] sm:$0xf]
    %v1540 = vld [vmem:[%s25 + $0x18] sm:$0xf]
    %v1541 = vld [vmem:[%s25 + $0x1c] sm:$0xf]
    %v1542 = vpack.c.bf16 %v1533, %v1532
    %v1543 = vld [vmem:[#allocation17] sm:$0x1]
    %v1545 = vlaneseq
    %v1546 = vshrl.u32 %v1545, 7
    %v1547 = vsub.s32 0, %v1546
    %v1548 = vrot.slane %v1543, %v1547
    %v1558 = vunpack.c.l.b16 %v1534
    %v1559 = vunpack.c.l.b16 %v1535
    %v1560 = vunpack.c.l.b16 %v1536
    %v1561 = vunpack.c.l.b16 %v1537
    %v1562 = vunpack.c.l.b16 %v1538
    %v1563 = vunpack.c.l.b16 %v1539
    %v1564 = vunpack.c.l.b16 %v1540
    %v1565 = vunpack.c.l.b16 %v1541
    %v1566 = vpack.c.b16 %v1559, %v1558
    %v1567 = vpack.c.b16 %v1561, %v1560
    %v1568 = vpack.c.b16 %v1563, %v1562
    %v1569 = vpack.c.b16 %v1565, %v1564
    %vm1574 = vcmask 523264
    %v1576 = vsel %vm1574, %v1542, 0
    %1578 = vmatprep.subr.bf16.mxu0 0
    %1579 = vmatpush1.bf16.msra.mxu0 %v1566
    %1580 = vmatprep.subr.bf16.mxu0 0
    %1581 = vmatpush1.bf16.msra.mxu0 %v1567
    %1582 = vmatprep.subr.bf16.mxu0 0
    %1583 = vmatpush1.bf16.msra.mxu0 %v1568
    %1584 = vmatprep.subr.bf16.mxu0 0
    %1585 = vmatpush1.bf16.msra.mxu0 %v1569
    %1586 = vmatprep.subr.bf16.mxu0 0
    %1587 = vmatpush1.bf16.msra.mxu0 0
    %1588 = vmatprep.subr.bf16.mxu0 0
    %1589 = vmatpush1.bf16.msra.mxu0 0
    %1590 = vmatprep.subr.bf16.mxu0 0
    %1591 = vmatpush1.bf16.msra.mxu0 0
    %1592 = vmatprep.subr.bf16.mxu0 0
    %1593 = vmatpush1.bf16.msra.mxu0 0
    %1594 = vmatprep.subr.bf16.mxu0 0
    %1595 = vmatpush1.bf16.msra.mxu0 0
    %1596 = vmatprep.subr.bf16.mxu0 0
    %1597 = vmatpush1.bf16.msra.mxu0 0
    %1598 = vmatprep.subr.bf16.mxu0 0
    %1599 = vmatpush1.bf16.msra.mxu0 0
    %1600 = vmatprep.subr.bf16.mxu0 0
    %1601 = vmatpush1.bf16.msra.mxu0 0
    %1602 = vmatprep.subr.bf16.mxu0 0
    %1603 = vmatpush1.bf16.msra.mxu0 0
    %1604 = vmatprep.subr.bf16.mxu0 0
    %1605 = vmatpush1.bf16.msra.mxu0 0
    %1606 = vmatprep.subr.bf16.mxu0 0
    %1607 = vmatpush1.bf16.msra.mxu0 0
    %1608 = vmatprep.subr.bf16.mxu0 0
    %1609 = vmatpush1.bf16.msra.mxu0 0
    %1610 = vmatprep.mubr.bf16.mxu0 0
    %1611 = vmatmul.mubr.bf16.gmra.mrb[0].mxu0 %v1576
    %v1612 = vpop.f32.mrb[0].mxu0
    %v1613 = vadd.f32 %v1548, %v1612
    %v1614 = vpop.f32.mrb[0].mxu0
    %v1615 = vpop.f32.mrb[0].mxu0
    %v1616 = vadd.f32 %v1548, %v1615
    %v1617 = vpop.f32.mrb[0].mxu0
    %1618 = vdwg.mxu0
    %v1619 = vadd.f32 %v1613, %v1446
    %v1620 = vadd.f32 %v1616, %v1447
    %v1621 = vld [vmem:[#allocation18] sm:$0x1]
    %v1622 = vld [vmem:[#allocation20] sm:$0x1]
    %v1623 = vsel %vm279, %v1619, 0.0
    %1624 = vadd.xlane.f32.xlu0 %v1623
    %v1625 = vpop.xlane.xlu0 %1624
    %v1626 = vsel %vm279, %v1620, 0.0
    %1627 = vadd.xlane.f32.xlu0 %v1626
    %v1628 = vpop.xlane.xlu0 %1627
    %v1629 = vmul.f32 %v1625, %v286
    %v1630 = vmul.f32 %v1628, %v286
    %v1631 = vsub.f32 %v1619, %v1629
    %v1632 = vsub.f32 %v1620, %v1630
    %v1633 = vmul.f32 %v1631, %v1631
    %v1634 = vmul.f32 %v1632, %v1632
    %v1635 = vsel %vm279, %v1633, 0.0
    %1636 = vadd.xlane.f32.xlu0 %v1635
    %v1637 = vpop.xlane.xlu0 %1636
    %v1638 = vsel %vm279, %v1634, 0.0
    %1639 = vadd.xlane.f32.xlu0 %v1638
    %v1640 = vpop.xlane.xlu0 %1639
    %v1641 = vmul.f32 %v1637, %v286
    %v1642 = vmul.f32 %v1640, %v286
    %v1643 = vadd.f32 %v1641, 1e-12
    %v1644 = vadd.f32 %v1642, 1e-12
    %v1645 = vrsqrt.pop %v1643
    %v1646 = vrsqrt.pop %v1644
    %v1647 = vmul.f32 %v1631, %v1645
    %v1648 = vmul.f32 %v1632, %v1646
    %v1650 = vlaneseq
    %v1651 = vshrl.u32 %v1650, 7
    %v1652 = vsub.s32 0, %v1651
    %v1653 = vrot.slane %v1621, %v1652
    %v1655 = vmul.f32 %v1647, %v1653
    %v1656 = vmul.f32 %v1648, %v1653
    %v1658 = vlaneseq
    %v1659 = vshrl.u32 %v1658, 7
    %v1660 = vsub.s32 0, %v1659
    %v1661 = vrot.slane %v1622, %v1660
    %v1663 = vadd.f32 %v1655, %v1661
    %v1664 = vadd.f32 %v1656, %v1661
    %v1665 = vld [vmem:[%s33] sm:$0xf]
    %v1666 = vld [vmem:[%s33 + $0x4] sm:$0xf]
    %v1667 = vld [vmem:[%s33 + $0x8] sm:$0xf]
    %v1668 = vld [vmem:[%s33 + $0xc] sm:$0xf]
    %v1669 = vpack.c.bf16 %v1664, %v1663
    %v1670 = vld [vmem:[#allocation21] sm:$0x1]
    %v1672 = vlaneseq
    %v1673 = vshrl.u32 %v1672, 7
    %v1674 = vsub.s32 0, %v1673
    %v1675 = vrot.slane %v1670, %v1674
    %v1681 = vunpack.c.l.b16 %v1665
    %v1682 = vunpack.c.l.b16 %v1666
    %v1683 = vunpack.c.l.b16 %v1667
    %v1684 = vunpack.c.l.b16 %v1668
    %v1685 = vpack.c.b16 %v1682, %v1681
    %v1686 = vpack.c.b16 %v1684, %v1683
    %v1690 = vsel %vm279, %v1669, 0
    %1692 = vmatprep.subr.bf16.mxu0 0
    %1693 = vmatpush1.bf16.msra.mxu0 %v1685
    %1694 = vmatprep.subr.bf16.mxu0 0
    %1695 = vmatpush1.bf16.msra.mxu0 %v1686
    %1696 = vmatprep.subr.bf16.mxu0 0
    %1697 = vmatpush1.bf16.msra.mxu0 0
    %1698 = vmatprep.subr.bf16.mxu0 0
    %1699 = vmatpush1.bf16.msra.mxu0 0
    %1700 = vmatprep.subr.bf16.mxu0 0
    %1701 = vmatpush1.bf16.msra.mxu0 0
    %1702 = vmatprep.subr.bf16.mxu0 0
    %1703 = vmatpush1.bf16.msra.mxu0 0
    %1704 = vmatprep.subr.bf16.mxu0 0
    %1705 = vmatpush1.bf16.msra.mxu0 0
    %1706 = vmatprep.subr.bf16.mxu0 0
    %1707 = vmatpush1.bf16.msra.mxu0 0
    %1708 = vmatprep.subr.bf16.mxu0 0
    %1709 = vmatpush1.bf16.msra.mxu0 0
    %1710 = vmatprep.subr.bf16.mxu0 0
    %1711 = vmatpush1.bf16.msra.mxu0 0
    %1712 = vmatprep.subr.bf16.mxu0 0
    %1713 = vmatpush1.bf16.msra.mxu0 0
    %1714 = vmatprep.subr.bf16.mxu0 0
    %1715 = vmatpush1.bf16.msra.mxu0 0
    %1716 = vmatprep.subr.bf16.mxu0 0
    %1717 = vmatpush1.bf16.msra.mxu0 0
    %1718 = vmatprep.subr.bf16.mxu0 0
    %1719 = vmatpush1.bf16.msra.mxu0 0
    %1720 = vmatprep.subr.bf16.mxu0 0
    %1721 = vmatpush1.bf16.msra.mxu0 0
    %1722 = vmatprep.subr.bf16.mxu0 0
    %1723 = vmatpush1.bf16.msra.mxu0 0
    %1724 = vmatprep.mubr.bf16.mxu0 0
    %1725 = vmatmul.mubr.bf16.gmra.mrb[0].mxu0 %v1690
    %v1726 = vpop.f32.mrb[0].mxu0
    %v1727 = vadd.f32 %v1675, %v1726
    %v1728 = vpop.f32.mrb[0].mxu0
    %v1729 = vpop.f32.mrb[0].mxu0
    %v1730 = vadd.f32 %v1675, %v1729
    %v1731 = vpop.f32.mrb[0].mxu0
    %1732 = vdwg.mxu0
    %v1733 = vpack.c.bf16 %v1730, %v1727
    %1735 = vrot.lane.b32.xlu0 %v1733, 96
    %v1736 = vpop.permute.xlu0 %1735
    %v1738 = vsel %vm396, %v1733, 0
    %v1741 = vsel %vm396, %v1736, 0
    %1743 = vmatprep.subr.bf16.mxu0 0
    %1744 = vmatpush1.bf16.xpose.msra.mxu0 %v1741
    %1745 = vmatprep.subr.bf16.mxu0 0
    %1746 = vmatpush1.bf16.xpose.msra.mxu0 0
    %1747 = vmatprep.subr.bf16.mxu0 0
    %1748 = vmatpush1.bf16.xpose.msra.mxu0 0
    %1749 = vmatprep.subr.bf16.mxu0 0
    %1750 = vmatpush1.bf16.xpose.msra.mxu0 0
    %1751 = vmatprep.subr.bf16.mxu0 0
    %1752 = vmatpush1.bf16.xpose.msra.mxu0 0
    %1753 = vmatprep.subr.bf16.mxu0 0
    %1754 = vmatpush1.bf16.xpose.msra.mxu0 0
    %1755 = vmatprep.subr.bf16.mxu0 0
    %1756 = vmatpush1.bf16.xpose.msra.mxu0 0
    %1757 = vmatprep.subr.bf16.mxu0 0
    %1758 = vmatpush1.bf16.xpose.msra.mxu0 0
    %1759 = vmatprep.subr.bf16.mxu0 0
    %1760 = vmatpush1.bf16.xpose.msra.mxu0 0
    %1761 = vmatprep.subr.bf16.mxu0 0
    %1762 = vmatpush1.bf16.xpose.msra.mxu0 0
    %1763 = vmatprep.subr.bf16.mxu0 0
    %1764 = vmatpush1.bf16.xpose.msra.mxu0 0
    %1765 = vmatprep.subr.bf16.mxu0 0
    %1766 = vmatpush1.bf16.xpose.msra.mxu0 0
    %1767 = vmatprep.subr.bf16.mxu0 0
    %1768 = vmatpush1.bf16.xpose.msra.mxu0 0
    %1769 = vmatprep.subr.bf16.mxu0 0
    %1770 = vmatpush1.bf16.xpose.msra.mxu0 0
    %1771 = vmatprep.subr.bf16.mxu0 0
    %1772 = vmatpush1.bf16.xpose.msra.mxu0 0
    %1773 = vmatprep.subr.bf16.mxu0 0
    %1774 = vmatpush1.bf16.xpose.msra.mxu0 0
    %1775 = vmatprep.mubr.bf16.mxu0 0
    %1776 = vmatmul.mubr.bf16.gmra.mrb[0].mxu0 %v1738
    %v1777 = vpop.f32.mrb[0].mxu0
    %v1778 = vadd.f32 0.0, %v1777
    %v1779 = vpop.f32.mrb[0].mxu0
    %v1780 = vpop.f32.mrb[0].mxu0
    %v1781 = vpop.f32.mrb[0].mxu0
    %1782 = vdwg.mxu0
    %v1783 = vmul.f32 %v1778, 0.35355338
    %v1784 = vadd.f32 %v1783, %v447
    %v1785 = vsel %vm396, %v1784, -inf
    %1786 = vmax.xlane.f32.xlu0 %v1785
    %v1787 = vpop.xlane.xlu0 %1786
    %v1788 = vsub.f32 %v1784, %v1787
    %v1789 = vmul.f32 %v1788, 1.442695
    %v1790 = vpow.pop %v1789
    %v1791 = vsel %vm396, %v1790, 0.0
    %1792 = vadd.xlane.f32.xlu0 %v1791
    %v1793 = vpop.xlane.xlu0 %1792
    %v1794 = vrcp.pop %v1793
    %v1795 = vmul.f32 %v1790, %v1794
    %v1796 = vpack.c.bf16 %v1795, %v1795
    %1797 = vrot.lane.b32.xlu0 %v1733, 64
    %v1798 = vpop.permute.xlu0 %1797
    %v1800 = vsel %vm396, %v1796, 0
    %v1803 = vsel %vm466, %v1798, 0
    %1805 = vmatprep.subr.bf16.mxu0 0
    %1806 = vmatpush1.bf16.msra.mxu0 %v1803
    %1807 = vmatprep.subr.bf16.mxu0 0
    %1808 = vmatpush1.bf16.msra.mxu0 0
    %1809 = vmatprep.subr.bf16.mxu0 0
    %1810 = vmatpush1.bf16.msra.mxu0 0
    %1811 = vmatprep.subr.bf16.mxu0 0
    %1812 = vmatpush1.bf16.msra.mxu0 0
    %1813 = vmatprep.subr.bf16.mxu0 0
    %1814 = vmatpush1.bf16.msra.mxu0 0
    %1815 = vmatprep.subr.bf16.mxu0 0
    %1816 = vmatpush1.bf16.msra.mxu0 0
    %1817 = vmatprep.subr.bf16.mxu0 0
    %1818 = vmatpush1.bf16.msra.mxu0 0
    %1819 = vmatprep.subr.bf16.mxu0 0
    %1820 = vmatpush1.bf16.msra.mxu0 0
    %1821 = vmatprep.subr.bf16.mxu0 0
    %1822 = vmatpush1.bf16.msra.mxu0 0
    %1823 = vmatprep.subr.bf16.mxu0 0
    %1824 = vmatpush1.bf16.msra.mxu0 0
    %1825 = vmatprep.subr.bf16.mxu0 0
    %1826 = vmatpush1.bf16.msra.mxu0 0
    %1827 = vmatprep.subr.bf16.mxu0 0
    %1828 = vmatpush1.bf16.msra.mxu0 0
    %1829 = vmatprep.subr.bf16.mxu0 0
    %1830 = vmatpush1.bf16.msra.mxu0 0
    %1831 = vmatprep.subr.bf16.mxu0 0
    %1832 = vmatpush1.bf16.msra.mxu0 0
    %1833 = vmatprep.subr.bf16.mxu0 0
    %1834 = vmatpush1.bf16.msra.mxu0 0
    %1835 = vmatprep.subr.bf16.mxu0 0
    %1836 = vmatpush1.bf16.msra.mxu0 0
    %1837 = vmatprep.mubr.bf16.mxu0 0
    %1838 = vmatmul.mubr.bf16.gmra.mrb[0].mxu0 %v1800
    %v1839 = vpop.f32.mrb[0].mxu0
    %v1840 = vadd.f32 0.0, %v1839
    %v1841 = vpop.f32.mrb[0].mxu0
    %v1842 = vpop.f32.mrb[0].mxu0
    %v1843 = vpop.f32.mrb[0].mxu0
    %1844 = vdwg.mxu0
    %1845 = vst.msk [vmem:[#allocation2] sm:$0xff] %vm396, %v1840
    %1846 = vrot.lane.b32.xlu0 %v1733, 120
    %v1847 = vpop.permute.xlu0 %1846
    %1848 = vrot.lane.b32.xlu0 %v1733, 88
    %v1849 = vpop.permute.xlu0 %1848
    %v1851 = vsel %vm396, %v1847, 0
    %v1854 = vsel %vm396, %v1849, 0
    %1856 = vmatprep.subr.bf16.mxu0 0
    %1857 = vmatpush1.bf16.xpose.msra.mxu0 %v1854
    %1858 = vmatprep.subr.bf16.mxu0 0
    %1859 = vmatpush1.bf16.xpose.msra.mxu0 0
    %1860 = vmatprep.subr.bf16.mxu0 0
    %1861 = vmatpush1.bf16.xpose.msra.mxu0 0
    %1862 = vmatprep.subr.bf16.mxu0 0
    %1863 = vmatpush1.bf16.xpose.msra.mxu0 0
    %1864 = vmatprep.subr.bf16.mxu0 0
    %1865 = vmatpush1.bf16.xpose.msra.mxu0 0
    %1866 = vmatprep.subr.bf16.mxu0 0
    %1867 = vmatpush1.bf16.xpose.msra.mxu0 0
    %1868 = vmatprep.subr.bf16.mxu0 0
    %1869 = vmatpush1.bf16.xpose.msra.mxu0 0
    %1870 = vmatprep.subr.bf16.mxu0 0
    %1871 = vmatpush1.bf16.xpose.msra.mxu0 0
    %1872 = vmatprep.subr.bf16.mxu0 0
    %1873 = vmatpush1.bf16.xpose.msra.mxu0 0
    %1874 = vmatprep.subr.bf16.mxu0 0
    %1875 = vmatpush1.bf16.xpose.msra.mxu0 0
    %1876 = vmatprep.subr.bf16.mxu0 0
    %1877 = vmatpush1.bf16.xpose.msra.mxu0 0
    %1878 = vmatprep.subr.bf16.mxu0 0
    %1879 = vmatpush1.bf16.xpose.msra.mxu0 0
    %1880 = vmatprep.subr.bf16.mxu0 0
    %1881 = vmatpush1.bf16.xpose.msra.mxu0 0
    %1882 = vmatprep.subr.bf16.mxu0 0
    %1883 = vmatpush1.bf16.xpose.msra.mxu0 0
    %1884 = vmatprep.subr.bf16.mxu0 0
    %1885 = vmatpush1.bf16.xpose.msra.mxu0 0
    %1886 = vmatprep.subr.bf16.mxu0 0
    %1887 = vmatpush1.bf16.xpose.msra.mxu0 0
    %1888 = vmatprep.mubr.bf16.mxu0 0
    %1889 = vmatmul.mubr.bf16.gmra.mrb[0].mxu0 %v1851
    %v1890 = vpop.f32.mrb[0].mxu0
    %v1891 = vadd.f32 0.0, %v1890
    %v1892 = vpop.f32.mrb[0].mxu0
    %v1893 = vpop.f32.mrb[0].mxu0
    %v1894 = vpop.f32.mrb[0].mxu0
    %1895 = vdwg.mxu0
    %v1896 = vmul.f32 %v1891, 0.35355338
    %v1897 = vadd.f32 %v1896, %v447
    %v1898 = vsel %vm396, %v1897, -inf
    %1899 = vmax.xlane.f32.xlu0 %v1898
    %v1900 = vpop.xlane.xlu0 %1899
    %v1901 = vsub.f32 %v1897, %v1900
    %v1902 = vmul.f32 %v1901, 1.442695
    %v1903 = vpow.pop %v1902
    %v1904 = vsel %vm396, %v1903, 0.0
    %1905 = vadd.xlane.f32.xlu0 %v1904
    %v1906 = vpop.xlane.xlu0 %1905
    %v1907 = vrcp.pop %v1906
    %v1908 = vmul.f32 %v1903, %v1907
    %v1909 = vpack.c.bf16 %v1908, %v1908
    %1910 = vrot.lane.b32.xlu0 %v1733, 56
    %v1911 = vpop.permute.xlu0 %1910
    %v1913 = vsel %vm396, %v1909, 0
    %v1916 = vsel %vm466, %v1911, 0
    %1918 = vmatprep.subr.bf16.mxu0 0
    %1919 = vmatpush1.bf16.msra.mxu0 %v1916
    %1920 = vmatprep.subr.bf16.mxu0 0
    %1921 = vmatpush1.bf16.msra.mxu0 0
    %1922 = vmatprep.subr.bf16.mxu0 0
    %1923 = vmatpush1.bf16.msra.mxu0 0
    %1924 = vmatprep.subr.bf16.mxu0 0
    %1925 = vmatpush1.bf16.msra.mxu0 0
    %1926 = vmatprep.subr.bf16.mxu0 0
    %1927 = vmatpush1.bf16.msra.mxu0 0
    %1928 = vmatprep.subr.bf16.mxu0 0
    %1929 = vmatpush1.bf16.msra.mxu0 0
    %1930 = vmatprep.subr.bf16.mxu0 0
    %1931 = vmatpush1.bf16.msra.mxu0 0
    %1932 = vmatprep.subr.bf16.mxu0 0
    %1933 = vmatpush1.bf16.msra.mxu0 0
    %1934 = vmatprep.subr.bf16.mxu0 0
    %1935 = vmatpush1.bf16.msra.mxu0 0
    %1936 = vmatprep.subr.bf16.mxu0 0
    %1937 = vmatpush1.bf16.msra.mxu0 0
    %1938 = vmatprep.subr.bf16.mxu0 0
    %1939 = vmatpush1.bf16.msra.mxu0 0
    %1940 = vmatprep.subr.bf16.mxu0 0
    %1941 = vmatpush1.bf16.msra.mxu0 0
    %1942 = vmatprep.subr.bf16.mxu0 0
    %1943 = vmatpush1.bf16.msra.mxu0 0
    %1944 = vmatprep.subr.bf16.mxu0 0
    %1945 = vmatpush1.bf16.msra.mxu0 0
    %1946 = vmatprep.subr.bf16.mxu0 0
    %1947 = vmatpush1.bf16.msra.mxu0 0
    %1948 = vmatprep.subr.bf16.mxu0 0
    %1949 = vmatpush1.bf16.msra.mxu0 0
    %1950 = vmatprep.mubr.bf16.mxu0 0
    %1951 = vmatmul.mubr.bf16.gmra.mrb[0].mxu0 %v1913
    %v1952 = vpop.f32.mrb[0].mxu0
    %v1953 = vadd.f32 0.0, %v1952
    %v1954 = vpop.f32.mrb[0].mxu0
    %v1955 = vpop.f32.mrb[0].mxu0
    %v1956 = vpop.f32.mrb[0].mxu0
    %1957 = vdwg.mxu0
    %1959 = vrot.lane.b32.xlu0 %v1953, 8
    %v1960 = vpop.permute.xlu0 %1959
    %1962 = vst.msk [vmem:[#allocation2] sm:$0xff] %vm627, %v1960
    %1963 = vrot.lane.b32.xlu0 %v1733, 112
    %v1964 = vpop.permute.xlu0 %1963
    %1965 = vrot.lane.b32.xlu0 %v1733, 80
    %v1966 = vpop.permute.xlu0 %1965
    %v1968 = vsel %vm396, %v1964, 0
    %v1971 = vsel %vm396, %v1966, 0
    %1973 = vmatprep.subr.bf16.mxu0 0
    %1974 = vmatpush1.bf16.xpose.msra.mxu0 %v1971
    %1975 = vmatprep.subr.bf16.mxu0 0
    %1976 = vmatpush1.bf16.xpose.msra.mxu0 0
    %1977 = vmatprep.subr.bf16.mxu0 0
    %1978 = vmatpush1.bf16.xpose.msra.mxu0 0
    %1979 = vmatprep.subr.bf16.mxu0 0
    %1980 = vmatpush1.bf16.xpose.msra.mxu0 0
    %1981 = vmatprep.subr.bf16.mxu0 0
    %1982 = vmatpush1.bf16.xpose.msra.mxu0 0
    %1983 = vmatprep.subr.bf16.mxu0 0
    %1984 = vmatpush1.bf16.xpose.msra.mxu0 0
    %1985 = vmatprep.subr.bf16.mxu0 0
    %1986 = vmatpush1.bf16.xpose.msra.mxu0 0
    %1987 = vmatprep.subr.bf16.mxu0 0
    %1988 = vmatpush1.bf16.xpose.msra.mxu0 0
    %1989 = vmatprep.subr.bf16.mxu0 0
    %1990 = vmatpush1.bf16.xpose.msra.mxu0 0
    %1991 = vmatprep.subr.bf16.mxu0 0
    %1992 = vmatpush1.bf16.xpose.msra.mxu0 0
    %1993 = vmatprep.subr.bf16.mxu0 0
    %1994 = vmatpush1.bf16.xpose.msra.mxu0 0
    %1995 = vmatprep.subr.bf16.mxu0 0
    %1996 = vmatpush1.bf16.xpose.msra.mxu0 0
    %1997 = vmatprep.subr.bf16.mxu0 0
    %1998 = vmatpush1.bf16.xpose.msra.mxu0 0
    %1999 = vmatprep.subr.bf16.mxu0 0
    %2000 = vmatpush1.bf16.xpose.msra.mxu0 0
    %2001 = vmatprep.subr.bf16.mxu0 0
    %2002 = vmatpush1.bf16.xpose.msra.mxu0 0
    %2003 = vmatprep.subr.bf16.mxu0 0
    %2004 = vmatpush1.bf16.xpose.msra.mxu0 0
    %2005 = vmatprep.mubr.bf16.mxu0 0
    %2006 = vmatmul.mubr.bf16.gmra.mrb[0].mxu0 %v1968
    %v2007 = vpop.f32.mrb[0].mxu0
    %v2008 = vadd.f32 0.0, %v2007
    %v2009 = vpop.f32.mrb[0].mxu0
    %v2010 = vpop.f32.mrb[0].mxu0
    %v2011 = vpop.f32.mrb[0].mxu0
    %2012 = vdwg.mxu0
    %v2013 = vmul.f32 %v2008, 0.35355338
    %v2014 = vadd.f32 %v2013, %v447
    %v2015 = vsel %vm396, %v2014, -inf
    %2016 = vmax.xlane.f32.xlu0 %v2015
    %v2017 = vpop.xlane.xlu0 %2016
    %v2018 = vsub.f32 %v2014, %v2017
    %v2019 = vmul.f32 %v2018, 1.442695
    %v2020 = vpow.pop %v2019
    %v2021 = vsel %vm396, %v2020, 0.0
    %2022 = vadd.xlane.f32.xlu0 %v2021
    %v2023 = vpop.xlane.xlu0 %2022
    %v2024 = vrcp.pop %v2023
    %v2025 = vmul.f32 %v2020, %v2024
    %v2026 = vpack.c.bf16 %v2025, %v2025
    %2027 = vrot.lane.b32.xlu0 %v1733, 48
    %v2028 = vpop.permute.xlu0 %2027
    %v2030 = vsel %vm396, %v2026, 0
    %v2033 = vsel %vm466, %v2028, 0
    %2035 = vmatprep.subr.bf16.mxu0 0
    %2036 = vmatpush1.bf16.msra.mxu0 %v2033
    %2037 = vmatprep.subr.bf16.mxu0 0
    %2038 = vmatpush1.bf16.msra.mxu0 0
    %2039 = vmatprep.subr.bf16.mxu0 0
    %2040 = vmatpush1.bf16.msra.mxu0 0
    %2041 = vmatprep.subr.bf16.mxu0 0
    %2042 = vmatpush1.bf16.msra.mxu0 0
    %2043 = vmatprep.subr.bf16.mxu0 0
    %2044 = vmatpush1.bf16.msra.mxu0 0
    %2045 = vmatprep.subr.bf16.mxu0 0
    %2046 = vmatpush1.bf16.msra.mxu0 0
    %2047 = vmatprep.subr.bf16.mxu0 0
    %2048 = vmatpush1.bf16.msra.mxu0 0
    %2049 = vmatprep.subr.bf16.mxu0 0
    %2050 = vmatpush1.bf16.msra.mxu0 0
    %2051 = vmatprep.subr.bf16.mxu0 0
    %2052 = vmatpush1.bf16.msra.mxu0 0
    %2053 = vmatprep.subr.bf16.mxu0 0
    %2054 = vmatpush1.bf16.msra.mxu0 0
    %2055 = vmatprep.subr.bf16.mxu0 0
    %2056 = vmatpush1.bf16.msra.mxu0 0
    %2057 = vmatprep.subr.bf16.mxu0 0
    %2058 = vmatpush1.bf16.msra.mxu0 0
    %2059 = vmatprep.subr.bf16.mxu0 0
    %2060 = vmatpush1.bf16.msra.mxu0 0
    %2061 = vmatprep.subr.bf16.mxu0 0
    %2062 = vmatpush1.bf16.msra.mxu0 0
    %2063 = vmatprep.subr.bf16.mxu0 0
    %2064 = vmatpush1.bf16.msra.mxu0 0
    %2065 = vmatprep.subr.bf16.mxu0 0
    %2066 = vmatpush1.bf16.msra.mxu0 0
    %2067 = vmatprep.mubr.bf16.mxu0 0
    %2068 = vmatmul.mubr.bf16.gmra.mrb[0].mxu0 %v2030
    %v2069 = vpop.f32.mrb[0].mxu0
    %v2070 = vadd.f32 0.0, %v2069
    %v2071 = vpop.f32.mrb[0].mxu0
    %v2072 = vpop.f32.mrb[0].mxu0
    %v2073 = vpop.f32.mrb[0].mxu0
    %2074 = vdwg.mxu0
    %2076 = vrot.lane.b32.xlu0 %v2070, 16
    %v2077 = vpop.permute.xlu0 %2076
    %2079 = vst.msk [vmem:[#allocation2] sm:$0xff] %vm745, %v2077
    %2080 = vrot.lane.b32.xlu0 %v1733, 104
    %v2081 = vpop.permute.xlu0 %2080
    %2082 = vrot.lane.b32.xlu0 %v1733, 72
    %v2083 = vpop.permute.xlu0 %2082
    %v2085 = vsel %vm396, %v2081, 0
    %v2088 = vsel %vm396, %v2083, 0
    %2090 = vmatprep.subr.bf16.mxu0 0
    %2091 = vmatpush1.bf16.xpose.msra.mxu0 %v2088
    %2092 = vmatprep.subr.bf16.mxu0 0
    %2093 = vmatpush1.bf16.xpose.msra.mxu0 0
    %2094 = vmatprep.subr.bf16.mxu0 0
    %2095 = vmatpush1.bf16.xpose.msra.mxu0 0
    %2096 = vmatprep.subr.bf16.mxu0 0
    %2097 = vmatpush1.bf16.xpose.msra.mxu0 0
    %2098 = vmatprep.subr.bf16.mxu0 0
    %2099 = vmatpush1.bf16.xpose.msra.mxu0 0
    %2100 = vmatprep.subr.bf16.mxu0 0
    %2101 = vmatpush1.bf16.xpose.msra.mxu0 0
    %2102 = vmatprep.subr.bf16.mxu0 0
    %2103 = vmatpush1.bf16.xpose.msra.mxu0 0
    %2104 = vmatprep.subr.bf16.mxu0 0
    %2105 = vmatpush1.bf16.xpose.msra.mxu0 0
    %2106 = vmatprep.subr.bf16.mxu0 0
    %2107 = vmatpush1.bf16.xpose.msra.mxu0 0
    %2108 = vmatprep.subr.bf16.mxu0 0
    %2109 = vmatpush1.bf16.xpose.msra.mxu0 0
    %2110 = vmatprep.subr.bf16.mxu0 0
    %2111 = vmatpush1.bf16.xpose.msra.mxu0 0
    %2112 = vmatprep.subr.bf16.mxu0 0
    %2113 = vmatpush1.bf16.xpose.msra.mxu0 0
    %2114 = vmatprep.subr.bf16.mxu0 0
    %2115 = vmatpush1.bf16.xpose.msra.mxu0 0
    %2116 = vmatprep.subr.bf16.mxu0 0
    %2117 = vmatpush1.bf16.xpose.msra.mxu0 0
    %2118 = vmatprep.subr.bf16.mxu0 0
    %2119 = vmatpush1.bf16.xpose.msra.mxu0 0
    %2120 = vmatprep.subr.bf16.mxu0 0
    %2121 = vmatpush1.bf16.xpose.msra.mxu0 0
    %2122 = vmatprep.mubr.bf16.mxu0 0
    %2123 = vmatmul.mubr.bf16.gmra.mrb[0].mxu0 %v2085
    %v2124 = vpop.f32.mrb[0].mxu0
    %v2125 = vadd.f32 0.0, %v2124
    %v2126 = vpop.f32.mrb[0].mxu0
    %v2127 = vpop.f32.mrb[0].mxu0
    %v2128 = vpop.f32.mrb[0].mxu0
    %2129 = vdwg.mxu0
    %v2130 = vmul.f32 %v2125, 0.35355338
    %v2131 = vadd.f32 %v2130, %v447
    %v2132 = vsel %vm396, %v2131, -inf
    %2133 = vmax.xlane.f32.xlu0 %v2132
    %v2134 = vpop.xlane.xlu0 %2133
    %v2135 = vsub.f32 %v2131, %v2134
    %v2136 = vmul.f32 %v2135, 1.442695
    %v2137 = vpow.pop %v2136
    %v2138 = vsel %vm396, %v2137, 0.0
    %2139 = vadd.xlane.f32.xlu0 %v2138
    %v2140 = vpop.xlane.xlu0 %2139
    %v2141 = vrcp.pop %v2140
    %v2142 = vmul.f32 %v2137, %v2141
    %v2143 = vpack.c.bf16 %v2142, %v2142
    %2144 = vrot.lane.b32.xlu0 %v1733, 40
    %v2145 = vpop.permute.xlu0 %2144
    %v2147 = vsel %vm396, %v2143, 0
    %v2150 = vsel %vm466, %v2145, 0
    %2152 = vmatprep.subr.bf16.mxu0 0
    %2153 = vmatpush1.bf16.msra.mxu0 %v2150
    %2154 = vmatprep.subr.bf16.mxu0 0
    %2155 = vmatpush1.bf16.msra.mxu0 0
    %2156 = vmatprep.subr.bf16.mxu0 0
    %2157 = vmatpush1.bf16.msra.mxu0 0
    %2158 = vmatprep.subr.bf16.mxu0 0
    %2159 = vmatpush1.bf16.msra.mxu0 0
    %2160 = vmatprep.subr.bf16.mxu0 0
    %2161 = vmatpush1.bf16.msra.mxu0 0
    %2162 = vmatprep.subr.bf16.mxu0 0
    %2163 = vmatpush1.bf16.msra.mxu0 0
    %2164 = vmatprep.subr.bf16.mxu0 0
    %2165 = vmatpush1.bf16.msra.mxu0 0
    %2166 = vmatprep.subr.bf16.mxu0 0
    %2167 = vmatpush1.bf16.msra.mxu0 0
    %2168 = vmatprep.subr.bf16.mxu0 0
    %2169 = vmatpush1.bf16.msra.mxu0 0
    %2170 = vmatprep.subr.bf16.mxu0 0
    %2171 = vmatpush1.bf16.msra.mxu0 0
    %2172 = vmatprep.subr.bf16.mxu0 0
    %2173 = vmatpush1.bf16.msra.mxu0 0
    %2174 = vmatprep.subr.bf16.mxu0 0
    %2175 = vmatpush1.bf16.msra.mxu0 0
    %2176 = vmatprep.subr.bf16.mxu0 0
    %2177 = vmatpush1.bf16.msra.mxu0 0
    %2178 = vmatprep.subr.bf16.mxu0 0
    %2179 = vmatpush1.bf16.msra.mxu0 0
    %2180 = vmatprep.subr.bf16.mxu0 0
    %2181 = vmatpush1.bf16.msra.mxu0 0
    %2182 = vmatprep.subr.bf16.mxu0 0
    %2183 = vmatpush1.bf16.msra.mxu0 0
    %2184 = vmatprep.mubr.bf16.mxu0 0
    %2185 = vmatmul.mubr.bf16.gmra.mrb[0].mxu0 %v2147
    %v2186 = vpop.f32.mrb[0].mxu0
    %v2187 = vadd.f32 0.0, %v2186
    %v2188 = vpop.f32.mrb[0].mxu0
    %v2189 = vpop.f32.mrb[0].mxu0
    %v2190 = vpop.f32.mrb[0].mxu0
    %2191 = vdwg.mxu0
    %2193 = vrot.lane.b32.xlu0 %v2187, 24
    %v2194 = vpop.permute.xlu0 %2193
    %2196 = vst.msk [vmem:[#allocation2] sm:$0xff] %vm863, %v2194
    %v2197 = vrot.slane %v1733, 4
    %2198 = vrot.lane.b32.xlu0 %v2197, 96
    %v2199 = vpop.permute.xlu0 %2198
    %v2201 = vsel %vm396, %v2197, 0
    %v2204 = vsel %vm396, %v2199, 0
    %2206 = vmatprep.subr.bf16.mxu0 0
    %2207 = vmatpush1.bf16.xpose.msra.mxu0 %v2204
    %2208 = vmatprep.subr.bf16.mxu0 0
    %2209 = vmatpush1.bf16.xpose.msra.mxu0 0
    %2210 = vmatprep.subr.bf16.mxu0 0
    %2211 = vmatpush1.bf16.xpose.msra.mxu0 0
    %2212 = vmatprep.subr.bf16.mxu0 0
    %2213 = vmatpush1.bf16.xpose.msra.mxu0 0
    %2214 = vmatprep.subr.bf16.mxu0 0
    %2215 = vmatpush1.bf16.xpose.msra.mxu0 0
    %2216 = vmatprep.subr.bf16.mxu0 0
    %2217 = vmatpush1.bf16.xpose.msra.mxu0 0
    %2218 = vmatprep.subr.bf16.mxu0 0
    %2219 = vmatpush1.bf16.xpose.msra.mxu0 0
    %2220 = vmatprep.subr.bf16.mxu0 0
    %2221 = vmatpush1.bf16.xpose.msra.mxu0 0
    %2222 = vmatprep.subr.bf16.mxu0 0
    %2223 = vmatpush1.bf16.xpose.msra.mxu0 0
    %2224 = vmatprep.subr.bf16.mxu0 0
    %2225 = vmatpush1.bf16.xpose.msra.mxu0 0
    %2226 = vmatprep.subr.bf16.mxu0 0
    %2227 = vmatpush1.bf16.xpose.msra.mxu0 0
    %2228 = vmatprep.subr.bf16.mxu0 0
    %2229 = vmatpush1.bf16.xpose.msra.mxu0 0
    %2230 = vmatprep.subr.bf16.mxu0 0
    %2231 = vmatpush1.bf16.xpose.msra.mxu0 0
    %2232 = vmatprep.subr.bf16.mxu0 0
    %2233 = vmatpush1.bf16.xpose.msra.mxu0 0
    %2234 = vmatprep.subr.bf16.mxu0 0
    %2235 = vmatpush1.bf16.xpose.msra.mxu0 0
    %2236 = vmatprep.subr.bf16.mxu0 0
    %2237 = vmatpush1.bf16.xpose.msra.mxu0 0
    %2238 = vmatprep.mubr.bf16.mxu0 0
    %2239 = vmatmul.mubr.bf16.gmra.mrb[0].mxu0 %v2201
    %v2240 = vpop.f32.mrb[0].mxu0
    %v2241 = vadd.f32 0.0, %v2240
    %v2242 = vpop.f32.mrb[0].mxu0
    %v2243 = vpop.f32.mrb[0].mxu0
    %v2244 = vpop.f32.mrb[0].mxu0
    %2245 = vdwg.mxu0
    %v2246 = vmul.f32 %v2241, 0.35355338
    %v2247 = vadd.f32 %v2246, %v918
    %v2248 = vsel %vm396, %v2247, -inf
    %2249 = vmax.xlane.f32.xlu0 %v2248
    %v2250 = vpop.xlane.xlu0 %2249
    %v2251 = vsub.f32 %v2247, %v2250
    %v2252 = vmul.f32 %v2251, 1.442695
    %v2253 = vpow.pop %v2252
    %v2254 = vsel %vm396, %v2253, 0.0
    %2255 = vadd.xlane.f32.xlu0 %v2254
    %v2256 = vpop.xlane.xlu0 %2255
    %v2257 = vrcp.pop %v2256
    %v2258 = vmul.f32 %v2253, %v2257
    %v2259 = vpack.c.bf16 %v2258, %v2258
    %2260 = vrot.lane.b32.xlu0 %v2197, 64
    %v2261 = vpop.permute.xlu0 %2260
    %v2263 = vsel %vm396, %v2259, 0
    %v2266 = vsel %vm466, %v2261, 0
    %2268 = vmatprep.subr.bf16.mxu0 0
    %2269 = vmatpush1.bf16.msra.mxu0 %v2266
    %2270 = vmatprep.subr.bf16.mxu0 0
    %2271 = vmatpush1.bf16.msra.mxu0 0
    %2272 = vmatprep.subr.bf16.mxu0 0
    %2273 = vmatpush1.bf16.msra.mxu0 0
    %2274 = vmatprep.subr.bf16.mxu0 0
    %2275 = vmatpush1.bf16.msra.mxu0 0
    %2276 = vmatprep.subr.bf16.mxu0 0
    %2277 = vmatpush1.bf16.msra.mxu0 0
    %2278 = vmatprep.subr.bf16.mxu0 0
    %2279 = vmatpush1.bf16.msra.mxu0 0
    %2280 = vmatprep.subr.bf16.mxu0 0
    %2281 = vmatpush1.bf16.msra.mxu0 0
    %2282 = vmatprep.subr.bf16.mxu0 0
    %2283 = vmatpush1.bf16.msra.mxu0 0
    %2284 = vmatprep.subr.bf16.mxu0 0
    %2285 = vmatpush1.bf16.msra.mxu0 0
    %2286 = vmatprep.subr.bf16.mxu0 0
    %2287 = vmatpush1.bf16.msra.mxu0 0
    %2288 = vmatprep.subr.bf16.mxu0 0
    %2289 = vmatpush1.bf16.msra.mxu0 0
    %2290 = vmatprep.subr.bf16.mxu0 0
    %2291 = vmatpush1.bf16.msra.mxu0 0
    %2292 = vmatprep.subr.bf16.mxu0 0
    %2293 = vmatpush1.bf16.msra.mxu0 0
    %2294 = vmatprep.subr.bf16.mxu0 0
    %2295 = vmatpush1.bf16.msra.mxu0 0
    %2296 = vmatprep.subr.bf16.mxu0 0
    %2297 = vmatpush1.bf16.msra.mxu0 0
    %2298 = vmatprep.subr.bf16.mxu0 0
    %2299 = vmatpush1.bf16.msra.mxu0 0
    %2300 = vmatprep.mubr.bf16.mxu0 0
    %2301 = vmatmul.mubr.bf16.gmra.mrb[0].mxu0 %v2263
    %v2302 = vpop.f32.mrb[0].mxu0
    %v2303 = vadd.f32 0.0, %v2302
    %v2304 = vpop.f32.mrb[0].mxu0
    %v2305 = vpop.f32.mrb[0].mxu0
    %v2306 = vpop.f32.mrb[0].mxu0
    %2307 = vdwg.mxu0
    %2308 = vst.msk [vmem:[#allocation2 + $0x8] sm:$0xff] %vm396, %v2303
    %2309 = vrot.lane.b32.xlu0 %v2197, 120
    %v2310 = vpop.permute.xlu0 %2309
    %2311 = vrot.lane.b32.xlu0 %v2197, 88
    %v2312 = vpop.permute.xlu0 %2311
    %v2314 = vsel %vm396, %v2310, 0
    %v2317 = vsel %vm396, %v2312, 0
    %2319 = vmatprep.subr.bf16.mxu0 0
    %2320 = vmatpush1.bf16.xpose.msra.mxu0 %v2317
    %2321 = vmatprep.subr.bf16.mxu0 0
    %2322 = vmatpush1.bf16.xpose.msra.mxu0 0
    %2323 = vmatprep.subr.bf16.mxu0 0
    %2324 = vmatpush1.bf16.xpose.msra.mxu0 0
    %2325 = vmatprep.subr.bf16.mxu0 0
    %2326 = vmatpush1.bf16.xpose.msra.mxu0 0
    %2327 = vmatprep.subr.bf16.mxu0 0
    %2328 = vmatpush1.bf16.xpose.msra.mxu0 0
    %2329 = vmatprep.subr.bf16.mxu0 0
    %2330 = vmatpush1.bf16.xpose.msra.mxu0 0
    %2331 = vmatprep.subr.bf16.mxu0 0
    %2332 = vmatpush1.bf16.xpose.msra.mxu0 0
    %2333 = vmatprep.subr.bf16.mxu0 0
    %2334 = vmatpush1.bf16.xpose.msra.mxu0 0
    %2335 = vmatprep.subr.bf16.mxu0 0
    %2336 = vmatpush1.bf16.xpose.msra.mxu0 0
    %2337 = vmatprep.subr.bf16.mxu0 0
    %2338 = vmatpush1.bf16.xpose.msra.mxu0 0
    %2339 = vmatprep.subr.bf16.mxu0 0
    %2340 = vmatpush1.bf16.xpose.msra.mxu0 0
    %2341 = vmatprep.subr.bf16.mxu0 0
    %2342 = vmatpush1.bf16.xpose.msra.mxu0 0
    %2343 = vmatprep.subr.bf16.mxu0 0
    %2344 = vmatpush1.bf16.xpose.msra.mxu0 0
    %2345 = vmatprep.subr.bf16.mxu0 0
    %2346 = vmatpush1.bf16.xpose.msra.mxu0 0
    %2347 = vmatprep.subr.bf16.mxu0 0
    %2348 = vmatpush1.bf16.xpose.msra.mxu0 0
    %2349 = vmatprep.subr.bf16.mxu0 0
    %2350 = vmatpush1.bf16.xpose.msra.mxu0 0
    %2351 = vmatprep.mubr.bf16.mxu0 0
    %2352 = vmatmul.mubr.bf16.gmra.mrb[0].mxu0 %v2314
    %v2353 = vpop.f32.mrb[0].mxu0
    %v2354 = vadd.f32 0.0, %v2353
    %v2355 = vpop.f32.mrb[0].mxu0
    %v2356 = vpop.f32.mrb[0].mxu0
    %v2357 = vpop.f32.mrb[0].mxu0
    %2358 = vdwg.mxu0
    %v2359 = vmul.f32 %v2354, 0.35355338
    %v2360 = vadd.f32 %v2359, %v918
    %v2361 = vsel %vm396, %v2360, -inf
    %2362 = vmax.xlane.f32.xlu0 %v2361
    %v2363 = vpop.xlane.xlu0 %2362
    %v2364 = vsub.f32 %v2360, %v2363
    %v2365 = vmul.f32 %v2364, 1.442695
    %v2366 = vpow.pop %v2365
    %v2367 = vsel %vm396, %v2366, 0.0
    %2368 = vadd.xlane.f32.xlu0 %v2367
    %v2369 = vpop.xlane.xlu0 %2368
    %v2370 = vrcp.pop %v2369
    %v2371 = vmul.f32 %v2366, %v2370
    %v2372 = vpack.c.bf16 %v2371, %v2371
    %2373 = vrot.lane.b32.xlu0 %v2197, 56
    %v2374 = vpop.permute.xlu0 %2373
    %v2376 = vsel %vm396, %v2372, 0
    %v2379 = vsel %vm466, %v2374, 0
    %2381 = vmatprep.subr.bf16.mxu0 0
    %2382 = vmatpush1.bf16.msra.mxu0 %v2379
    %2383 = vmatprep.subr.bf16.mxu0 0
    %2384 = vmatpush1.bf16.msra.mxu0 0
    %2385 = vmatprep.subr.bf16.mxu0 0
    %2386 = vmatpush1.bf16.msra.mxu0 0
    %2387 = vmatprep.subr.bf16.mxu0 0
    %2388 = vmatpush1.bf16.msra.mxu0 0
    %2389 = vmatprep.subr.bf16.mxu0 0
    %2390 = vmatpush1.bf16.msra.mxu0 0
    %2391 = vmatprep.subr.bf16.mxu0 0
    %2392 = vmatpush1.bf16.msra.mxu0 0
    %2393 = vmatprep.subr.bf16.mxu0 0
    %2394 = vmatpush1.bf16.msra.mxu0 0
    %2395 = vmatprep.subr.bf16.mxu0 0
    %2396 = vmatpush1.bf16.msra.mxu0 0
    %2397 = vmatprep.subr.bf16.mxu0 0
    %2398 = vmatpush1.bf16.msra.mxu0 0
    %2399 = vmatprep.subr.bf16.mxu0 0
    %2400 = vmatpush1.bf16.msra.mxu0 0
    %2401 = vmatprep.subr.bf16.mxu0 0
    %2402 = vmatpush1.bf16.msra.mxu0 0
    %2403 = vmatprep.subr.bf16.mxu0 0
    %2404 = vmatpush1.bf16.msra.mxu0 0
    %2405 = vmatprep.subr.bf16.mxu0 0
    %2406 = vmatpush1.bf16.msra.mxu0 0
    %2407 = vmatprep.subr.bf16.mxu0 0
    %2408 = vmatpush1.bf16.msra.mxu0 0
    %2409 = vmatprep.subr.bf16.mxu0 0
    %2410 = vmatpush1.bf16.msra.mxu0 0
    %2411 = vmatprep.subr.bf16.mxu0 0
    %2412 = vmatpush1.bf16.msra.mxu0 0
    %2413 = vmatprep.mubr.bf16.mxu0 0
    %2414 = vmatmul.mubr.bf16.gmra.mrb[0].mxu0 %v2376
    %v2415 = vpop.f32.mrb[0].mxu0
    %v2416 = vadd.f32 0.0, %v2415
    %v2417 = vpop.f32.mrb[0].mxu0
    %v2418 = vpop.f32.mrb[0].mxu0
    %v2419 = vpop.f32.mrb[0].mxu0
    %2420 = vdwg.mxu0
    %2422 = vrot.lane.b32.xlu0 %v2416, 8
    %v2423 = vpop.permute.xlu0 %2422
    %2425 = vst.msk [vmem:[#allocation2 + $0x8] sm:$0xff] %vm627, %v2423
    %2426 = vrot.lane.b32.xlu0 %v2197, 112
    %v2427 = vpop.permute.xlu0 %2426
    %2428 = vrot.lane.b32.xlu0 %v2197, 80
    %v2429 = vpop.permute.xlu0 %2428
    %v2431 = vsel %vm396, %v2427, 0
    %v2434 = vsel %vm396, %v2429, 0
    %2436 = vmatprep.subr.bf16.mxu0 0
    %2437 = vmatpush1.bf16.xpose.msra.mxu0 %v2434
    %2438 = vmatprep.subr.bf16.mxu0 0
    %2439 = vmatpush1.bf16.xpose.msra.mxu0 0
    %2440 = vmatprep.subr.bf16.mxu0 0
    %2441 = vmatpush1.bf16.xpose.msra.mxu0 0
    %2442 = vmatprep.subr.bf16.mxu0 0
    %2443 = vmatpush1.bf16.xpose.msra.mxu0 0
    %2444 = vmatprep.subr.bf16.mxu0 0
    %2445 = vmatpush1.bf16.xpose.msra.mxu0 0
    %2446 = vmatprep.subr.bf16.mxu0 0
    %2447 = vmatpush1.bf16.xpose.msra.mxu0 0
    %2448 = vmatprep.subr.bf16.mxu0 0
    %2449 = vmatpush1.bf16.xpose.msra.mxu0 0
    %2450 = vmatprep.subr.bf16.mxu0 0
    %2451 = vmatpush1.bf16.xpose.msra.mxu0 0
    %2452 = vmatprep.subr.bf16.mxu0 0
    %2453 = vmatpush1.bf16.xpose.msra.mxu0 0
    %2454 = vmatprep.subr.bf16.mxu0 0
    %2455 = vmatpush1.bf16.xpose.msra.mxu0 0
    %2456 = vmatprep.subr.bf16.mxu0 0
    %2457 = vmatpush1.bf16.xpose.msra.mxu0 0
    %2458 = vmatprep.subr.bf16.mxu0 0
    %2459 = vmatpush1.bf16.xpose.msra.mxu0 0
    %2460 = vmatprep.subr.bf16.mxu0 0
    %2461 = vmatpush1.bf16.xpose.msra.mxu0 0
    %2462 = vmatprep.subr.bf16.mxu0 0
    %2463 = vmatpush1.bf16.xpose.msra.mxu0 0
    %2464 = vmatprep.subr.bf16.mxu0 0
    %2465 = vmatpush1.bf16.xpose.msra.mxu0 0
    %2466 = vmatprep.subr.bf16.mxu0 0
    %2467 = vmatpush1.bf16.xpose.msra.mxu0 0
    %2468 = vmatprep.mubr.bf16.mxu0 0
    %2469 = vmatmul.mubr.bf16.gmra.mrb[0].mxu0 %v2431
    %v2470 = vpop.f32.mrb[0].mxu0
    %v2471 = vadd.f32 0.0, %v2470
    %v2472 = vpop.f32.mrb[0].mxu0
    %v2473 = vpop.f32.mrb[0].mxu0
    %v2474 = vpop.f32.mrb[0].mxu0
    %2475 = vdwg.mxu0
    %v2476 = vmul.f32 %v2471, 0.35355338
    %v2477 = vadd.f32 %v2476, %v918
    %v2478 = vsel %vm396, %v2477, -inf
    %2479 = vmax.xlane.f32.xlu0 %v2478
    %v2480 = vpop.xlane.xlu0 %2479
    %v2481 = vsub.f32 %v2477, %v2480
    %v2482 = vmul.f32 %v2481, 1.442695
    %v2483 = vpow.pop %v2482
    %v2484 = vsel %vm396, %v2483, 0.0
    %2485 = vadd.xlane.f32.xlu0 %v2484
    %v2486 = vpop.xlane.xlu0 %2485
    %v2487 = vrcp.pop %v2486
    %v2488 = vmul.f32 %v2483, %v2487
    %v2489 = vpack.c.bf16 %v2488, %v2488
    %2490 = vrot.lane.b32.xlu0 %v2197, 48
    %v2491 = vpop.permute.xlu0 %2490
    %v2493 = vsel %vm396, %v2489, 0
    %v2496 = vsel %vm466, %v2491, 0
    %2498 = vmatprep.subr.bf16.mxu0 0
    %2499 = vmatpush1.bf16.msra.mxu0 %v2496
    %2500 = vmatprep.subr.bf16.mxu0 0
    %2501 = vmatpush1.bf16.msra.mxu0 0
    %2502 = vmatprep.subr.bf16.mxu0 0
    %2503 = vmatpush1.bf16.msra.mxu0 0
    %2504 = vmatprep.subr.bf16.mxu0 0
    %2505 = vmatpush1.bf16.msra.mxu0 0
    %2506 = vmatprep.subr.bf16.mxu0 0
    %2507 = vmatpush1.bf16.msra.mxu0 0
    %2508 = vmatprep.subr.bf16.mxu0 0
    %2509 = vmatpush1.bf16.msra.mxu0 0
    %2510 = vmatprep.subr.bf16.mxu0 0
    %2511 = vmatpush1.bf16.msra.mxu0 0
    %2512 = vmatprep.subr.bf16.mxu0 0
    %2513 = vmatpush1.bf16.msra.mxu0 0
    %2514 = vmatprep.subr.bf16.mxu0 0
    %2515 = vmatpush1.bf16.msra.mxu0 0
    %2516 = vmatprep.subr.bf16.mxu0 0
    %2517 = vmatpush1.bf16.msra.mxu0 0
    %2518 = vmatprep.subr.bf16.mxu0 0
    %2519 = vmatpush1.bf16.msra.mxu0 0
    %2520 = vmatprep.subr.bf16.mxu0 0
    %2521 = vmatpush1.bf16.msra.mxu0 0
    %2522 = vmatprep.subr.bf16.mxu0 0
    %2523 = vmatpush1.bf16.msra.mxu0 0
    %2524 = vmatprep.subr.bf16.mxu0 0
    %2525 = vmatpush1.bf16.msra.mxu0 0
    %2526 = vmatprep.subr.bf16.mxu0 0
    %2527 = vmatpush1.bf16.msra.mxu0 0
    %2528 = vmatprep.subr.bf16.mxu0 0
    %2529 = vmatpush1.bf16.msra.mxu0 0
    %2530 = vmatprep.mubr.bf16.mxu0 0
    %2531 = vmatmul.mubr.bf16.gmra.mrb[0].mxu0 %v2493
    %v2532 = vpop.f32.mrb[0].mxu0
    %v2533 = vadd.f32 0.0, %v2532
    %v2534 = vpop.f32.mrb[0].mxu0
    %v2535 = vpop.f32.mrb[0].mxu0
    %v2536 = vpop.f32.mrb[0].mxu0
    %2537 = vdwg.mxu0
    %2539 = vrot.lane.b32.xlu0 %v2533, 16
    %v2540 = vpop.permute.xlu0 %2539
    %2542 = vst.msk [vmem:[#allocation2 + $0x8] sm:$0xff] %vm745, %v2540
    %2543 = vrot.lane.b32.xlu0 %v2197, 104
    %v2544 = vpop.permute.xlu0 %2543
    %2545 = vrot.lane.b32.xlu0 %v2197, 72
    %v2546 = vpop.permute.xlu0 %2545
    %v2548 = vsel %vm396, %v2544, 0
    %v2551 = vsel %vm396, %v2546, 0
    %2553 = vmatprep.subr.bf16.mxu0 0
    %2554 = vmatpush1.bf16.xpose.msra.mxu0 %v2551
    %2555 = vmatprep.subr.bf16.mxu0 0
    %2556 = vmatpush1.bf16.xpose.msra.mxu0 0
    %2557 = vmatprep.subr.bf16.mxu0 0
    %2558 = vmatpush1.bf16.xpose.msra.mxu0 0
    %2559 = vmatprep.subr.bf16.mxu0 0
    %2560 = vmatpush1.bf16.xpose.msra.mxu0 0
    %2561 = vmatprep.subr.bf16.mxu0 0
    %2562 = vmatpush1.bf16.xpose.msra.mxu0 0
    %2563 = vmatprep.subr.bf16.mxu0 0
    %2564 = vmatpush1.bf16.xpose.msra.mxu0 0
    %2565 = vmatprep.subr.bf16.mxu0 0
    %2566 = vmatpush1.bf16.xpose.msra.mxu0 0
    %2567 = vmatprep.subr.bf16.mxu0 0
    %2568 = vmatpush1.bf16.xpose.msra.mxu0 0
    %2569 = vmatprep.subr.bf16.mxu0 0
    %2570 = vmatpush1.bf16.xpose.msra.mxu0 0
    %2571 = vmatprep.subr.bf16.mxu0 0
    %2572 = vmatpush1.bf16.xpose.msra.mxu0 0
    %2573 = vmatprep.subr.bf16.mxu0 0
    %2574 = vmatpush1.bf16.xpose.msra.mxu0 0
    %2575 = vmatprep.subr.bf16.mxu0 0
    %2576 = vmatpush1.bf16.xpose.msra.mxu0 0
    %2577 = vmatprep.subr.bf16.mxu0 0
    %2578 = vmatpush1.bf16.xpose.msra.mxu0 0
    %2579 = vmatprep.subr.bf16.mxu0 0
    %2580 = vmatpush1.bf16.xpose.msra.mxu0 0
    %2581 = vmatprep.subr.bf16.mxu0 0
    %2582 = vmatpush1.bf16.xpose.msra.mxu0 0
    %2583 = vmatprep.subr.bf16.mxu0 0
    %2584 = vmatpush1.bf16.xpose.msra.mxu0 0
    %2585 = vmatprep.mubr.bf16.mxu0 0
    %2586 = vmatmul.mubr.bf16.gmra.mrb[0].mxu0 %v2548
    %v2587 = vpop.f32.mrb[0].mxu0
    %v2588 = vadd.f32 0.0, %v2587
    %v2589 = vpop.f32.mrb[0].mxu0
    %v2590 = vpop.f32.mrb[0].mxu0
    %v2591 = vpop.f32.mrb[0].mxu0
    %2592 = vdwg.mxu0
    %v2593 = vmul.f32 %v2588, 0.35355338
    %v2594 = vadd.f32 %v2593, %v918
    %v2595 = vsel %vm396, %v2594, -inf
    %2596 = vmax.xlane.f32.xlu0 %v2595
    %v2597 = vpop.xlane.xlu0 %2596
    %v2598 = vsub.f32 %v2594, %v2597
    %v2599 = vmul.f32 %v2598, 1.442695
    %v2600 = vpow.pop %v2599
    %v2601 = vsel %vm396, %v2600, 0.0
    %2602 = vadd.xlane.f32.xlu0 %v2601
    %v2603 = vpop.xlane.xlu0 %2602
    %v2604 = vrcp.pop %v2603
    %v2605 = vmul.f32 %v2600, %v2604
    %v2606 = vpack.c.bf16 %v2605, %v2605
    %2607 = vrot.lane.b32.xlu0 %v2197, 40
    %v2608 = vpop.permute.xlu0 %2607
    %v2610 = vsel %vm396, %v2606, 0
    %v2613 = vsel %vm466, %v2608, 0
    %2615 = vmatprep.subr.bf16.mxu0 0
    %2616 = vmatpush1.bf16.msra.mxu0 %v2613
    %2617 = vmatprep.subr.bf16.mxu0 0
    %2618 = vmatpush1.bf16.msra.mxu0 0
    %2619 = vmatprep.subr.bf16.mxu0 0
    %2620 = vmatpush1.bf16.msra.mxu0 0
    %2621 = vmatprep.subr.bf16.mxu0 0
    %2622 = vmatpush1.bf16.msra.mxu0 0
    %2623 = vmatprep.subr.bf16.mxu0 0
    %2624 = vmatpush1.bf16.msra.mxu0 0
    %2625 = vmatprep.subr.bf16.mxu0 0
    %2626 = vmatpush1.bf16.msra.mxu0 0
    %2627 = vmatprep.subr.bf16.mxu0 0
    %2628 = vmatpush1.bf16.msra.mxu0 0
    %2629 = vmatprep.subr.bf16.mxu0 0
    %2630 = vmatpush1.bf16.msra.mxu0 0
    %2631 = vmatprep.subr.bf16.mxu0 0
    %2632 = vmatpush1.bf16.msra.mxu0 0
    %2633 = vmatprep.subr.bf16.mxu0 0
    %2634 = vmatpush1.bf16.msra.mxu0 0
    %2635 = vmatprep.subr.bf16.mxu0 0
    %2636 = vmatpush1.bf16.msra.mxu0 0
    %2637 = vmatprep.subr.bf16.mxu0 0
    %2638 = vmatpush1.bf16.msra.mxu0 0
    %2639 = vmatprep.subr.bf16.mxu0 0
    %2640 = vmatpush1.bf16.msra.mxu0 0
    %2641 = vmatprep.subr.bf16.mxu0 0
    %2642 = vmatpush1.bf16.msra.mxu0 0
    %2643 = vmatprep.subr.bf16.mxu0 0
    %2644 = vmatpush1.bf16.msra.mxu0 0
    %2645 = vmatprep.subr.bf16.mxu0 0
    %2646 = vmatpush1.bf16.msra.mxu0 0
    %2647 = vmatprep.mubr.bf16.mxu0 0
    %2648 = vmatmul.mubr.bf16.gmra.mrb[0].mxu0 %v2610
    %v2649 = vpop.f32.mrb[0].mxu0
    %v2650 = vadd.f32 0.0, %v2649
    %v2651 = vpop.f32.mrb[0].mxu0
    %v2652 = vpop.f32.mrb[0].mxu0
    %v2653 = vpop.f32.mrb[0].mxu0
    %2654 = vdwg.mxu0
    %2656 = vrot.lane.b32.xlu0 %v2650, 24
    %v2657 = vpop.permute.xlu0 %2656
    %2659 = vst.msk [vmem:[#allocation2 + $0x8] sm:$0xff] %vm863, %v2657
    %v2660 = vld [vmem:[#allocation2] sm:$0xff]
    %v2661 = vld [vmem:[#allocation2 + $0x8] sm:$0xff]
    %v2662 = vld [vmem:[%s37] sm:$0xf]
    %v2663 = vld [vmem:[%s37 + $0x4] sm:$0xf]
    %v2664 = vld [vmem:[%s37 + $0x8] sm:$0xf]
    %v2665 = vld [vmem:[%s37 + $0xc] sm:$0xf]
    %v2666 = vpack.c.bf16 %v2661, %v2660
    %v2667 = vld [vmem:[%s39] sm:$0x1]
    %v2669 = vlaneseq
    %v2670 = vshrl.u32 %v2669, 7
    %v2671 = vsub.s32 0, %v2670
    %v2672 = vrot.slane %v2667, %v2671
    %v2678 = vunpack.c.l.b16 %v2662
    %v2679 = vunpack.c.l.b16 %v2663
    %v2680 = vunpack.c.l.b16 %v2664
    %v2681 = vunpack.c.l.b16 %v2665
    %v2682 = vpack.c.b16 %v2679, %v2678
    %v2683 = vpack.c.b16 %v2681, %v2680
    %v2687 = vsel %vm279, %v2666, 0
    %2689 = vmatprep.subr.bf16.mxu0 0
    %2690 = vmatpush1.bf16.msra.mxu0 %v2682
    %2691 = vmatprep.subr.bf16.mxu0 0
    %2692 = vmatpush1.bf16.msra.mxu0 %v2683
    %2693 = vmatprep.subr.bf16.mxu0 0
    %2694 = vmatpush1.bf16.msra.mxu0 0
    %2695 = vmatprep.subr.bf16.mxu0 0
    %2696 = vmatpush1.bf16.msra.mxu0 0
    %2697 = vmatprep.subr.bf16.mxu0 0
    %2698 = vmatpush1.bf16.msra.mxu0 0
    %2699 = vmatprep.subr.bf16.mxu0 0
    %2700 = vmatpush1.bf16.msra.mxu0 0
    %2701 = vmatprep.subr.bf16.mxu0 0
    %2702 = vmatpush1.bf16.msra.mxu0 0
    %2703 = vmatprep.subr.bf16.mxu0 0
    %2704 = vmatpush1.bf16.msra.mxu0 0
    %2705 = vmatprep.subr.bf16.mxu0 0
    %2706 = vmatpush1.bf16.msra.mxu0 0
    %2707 = vmatprep.subr.bf16.mxu0 0
    %2708 = vmatpush1.bf16.msra.mxu0 0
    %2709 = vmatprep.subr.bf16.mxu0 0
    %2710 = vmatpush1.bf16.msra.mxu0 0
    %2711 = vmatprep.subr.bf16.mxu0 0
    %2712 = vmatpush1.bf16.msra.mxu0 0
    %2713 = vmatprep.subr.bf16.mxu0 0
    %2714 = vmatpush1.bf16.msra.mxu0 0
    %2715 = vmatprep.subr.bf16.mxu0 0
    %2716 = vmatpush1.bf16.msra.mxu0 0
    %2717 = vmatprep.subr.bf16.mxu0 0
    %2718 = vmatpush1.bf16.msra.mxu0 0
    %2719 = vmatprep.subr.bf16.mxu0 0
    %2720 = vmatpush1.bf16.msra.mxu0 0
    %2721 = vmatprep.mubr.bf16.mxu0 0
    %2722 = vmatmul.mubr.bf16.gmra.mrb[0].mxu0 %v2687
    %v2723 = vpop.f32.mrb[0].mxu0
    %v2724 = vadd.f32 %v2672, %v2723
    %v2725 = vpop.f32.mrb[0].mxu0
    %v2726 = vpop.f32.mrb[0].mxu0
    %v2727 = vadd.f32 %v2672, %v2726
    %v2728 = vpop.f32.mrb[0].mxu0
    %2729 = vdwg.mxu0
    %v2730 = vadd.f32 %v2724, %v1663
    %v2731 = vadd.f32 %v2727, %v1664
    %v2732 = vld [vmem:[%s41] sm:$0x1]
    %v2733 = vld [vmem:[%s43] sm:$0x1]
    %v2734 = vsel %vm279, %v2730, 0.0
    %2735 = vadd.xlane.f32.xlu0 %v2734
    %v2736 = vpop.xlane.xlu0 %2735
    %v2737 = vsel %vm279, %v2731, 0.0
    %2738 = vadd.xlane.f32.xlu0 %v2737
    %v2739 = vpop.xlane.xlu0 %2738
    %v2740 = vmul.f32 %v2736, %v286
    %v2741 = vmul.f32 %v2739, %v286
    %v2742 = vsub.f32 %v2730, %v2740
    %v2743 = vsub.f32 %v2731, %v2741
    %v2744 = vmul.f32 %v2742, %v2742
    %v2745 = vmul.f32 %v2743, %v2743
    %v2746 = vsel %vm279, %v2744, 0.0
    %2747 = vadd.xlane.f32.xlu0 %v2746
    %v2748 = vpop.xlane.xlu0 %2747
    %v2749 = vsel %vm279, %v2745, 0.0
    %2750 = vadd.xlane.f32.xlu0 %v2749
    %v2751 = vpop.xlane.xlu0 %2750
    %v2752 = vmul.f32 %v2748, %v286
    %v2753 = vmul.f32 %v2751, %v286
    %v2754 = vadd.f32 %v2752, 1e-12
    %v2755 = vadd.f32 %v2753, 1e-12
    %v2756 = vrsqrt.pop %v2754
    %v2757 = vrsqrt.pop %v2755
    %v2758 = vmul.f32 %v2742, %v2756
    %v2759 = vmul.f32 %v2743, %v2757
    %v2761 = vlaneseq
    %v2762 = vshrl.u32 %v2761, 7
    %v2763 = vsub.s32 0, %v2762
    %v2764 = vrot.slane %v2732, %v2763
    %v2766 = vmul.f32 %v2758, %v2764
    %v2767 = vmul.f32 %v2759, %v2764
    %v2769 = vlaneseq
    %v2770 = vshrl.u32 %v2769, 7
    %v2771 = vsub.s32 0, %v2770
    %v2772 = vrot.slane %v2733, %v2771
    %v2774 = vadd.f32 %v2766, %v2772
    %v2775 = vadd.f32 %v2767, %v2772
    %v2776 = vld [vmem:[%s45] sm:$0xf]
    %v2777 = vld [vmem:[%s45 + $0x4] sm:$0xf]
    %v2778 = vld [vmem:[%s45 + $0x8] sm:$0xf]
    %v2779 = vld [vmem:[%s45 + $0xc] sm:$0xf]
    %v2780 = vpack.c.bf16 %v2775, %v2774
    %v2781 = vld [vmem:[%s47] sm:$0x1]
    %v2783 = vlaneseq
    %v2784 = vshrl.u32 %v2783, 7
    %v2785 = vsub.s32 0, %v2784
    %v2786 = vrot.slane %v2781, %v2785
    %v2792 = vunpack.c.l.b16 %v2776
    %v2793 = vunpack.c.l.b16 %v2777
    %v2794 = vunpack.c.l.b16 %v2778
    %v2795 = vunpack.c.l.b16 %v2779
    %v2796 = vpack.c.b16 %v2793, %v2792
    %v2797 = vpack.c.b16 %v2795, %v2794
    %v2801 = vsel %vm279, %v2780, 0
    %2803 = vmatprep.subr.bf16.mxu0 0
    %2804 = vmatpush1.bf16.msra.mxu0 %v2796
    %2805 = vmatprep.subr.bf16.mxu0 0
    %2806 = vmatpush1.bf16.msra.mxu0 %v2797
    %2807 = vmatprep.subr.bf16.mxu0 0
    %2808 = vmatpush1.bf16.msra.mxu0 0
    %2809 = vmatprep.subr.bf16.mxu0 0
    %2810 = vmatpush1.bf16.msra.mxu0 0
    %2811 = vmatprep.subr.bf16.mxu0 0
    %2812 = vmatpush1.bf16.msra.mxu0 0
    %2813 = vmatprep.subr.bf16.mxu0 0
    %2814 = vmatpush1.bf16.msra.mxu0 0
    %2815 = vmatprep.subr.bf16.mxu0 0
    %2816 = vmatpush1.bf16.msra.mxu0 0
    %2817 = vmatprep.subr.bf16.mxu0 0
    %2818 = vmatpush1.bf16.msra.mxu0 0
    %2819 = vmatprep.subr.bf16.mxu0 0
    %2820 = vmatpush1.bf16.msra.mxu0 0
    %2821 = vmatprep.subr.bf16.mxu0 0
    %2822 = vmatpush1.bf16.msra.mxu0 0
    %2823 = vmatprep.subr.bf16.mxu0 0
    %2824 = vmatpush1.bf16.msra.mxu0 0
    %2825 = vmatprep.subr.bf16.mxu0 0
    %2826 = vmatpush1.bf16.msra.mxu0 0
    %2827 = vmatprep.subr.bf16.mxu0 0
    %2828 = vmatpush1.bf16.msra.mxu0 0
    %2829 = vmatprep.subr.bf16.mxu0 0
    %2830 = vmatpush1.bf16.msra.mxu0 0
    %2831 = vmatprep.subr.bf16.mxu0 0
    %2832 = vmatpush1.bf16.msra.mxu0 0
    %2833 = vmatprep.subr.bf16.mxu0 0
    %2834 = vmatpush1.bf16.msra.mxu0 0
    %2835 = vmatprep.mubr.bf16.mxu0 0
    %2836 = vmatmul.mubr.bf16.gmra.mrb[0].mxu0 %v2801
    %v2837 = vpop.f32.mrb[0].mxu0
    %v2838 = vadd.f32 %v2786, %v2837
    %v2839 = vpop.f32.mrb[0].mxu0
    %v2840 = vpop.f32.mrb[0].mxu0
    %v2841 = vadd.f32 %v2786, %v2840
    %v2842 = vpop.f32.mrb[0].mxu0
    %2843 = vdwg.mxu0
    %v2844 = vmul.f32 %v2838, 0.5
    %v2845 = vmul.f32 %v2841, 0.5
    %v2846 = vmul.f32 %v2838, 0.044715
    %v2847 = vmul.f32 %v2841, 0.044715
    %v2848 = vmul.f32 %v2846, %v2838
    %v2849 = vmul.f32 %v2847, %v2841
    %v2850 = vmul.f32 %v2848, %v2838
    %v2851 = vmul.f32 %v2849, %v2841
    %v2852 = vadd.f32 %v2838, %v2850
    %v2853 = vadd.f32 %v2841, %v2851
    %v2854 = vmul.f32 %v2852, 0.7978846
    %v2855 = vmul.f32 %v2853, 0.7978846
    %v2856 = vtanh.pop %v2854
    %v2857 = vtanh.pop %v2855
    %v2858 = vadd.f32 %v2856, 1.0
    %v2859 = vadd.f32 %v2857, 1.0
    %v2860 = vmul.f32 %v2844, %v2858
    %v2861 = vmul.f32 %v2845, %v2859
    %v2862 = vld [vmem:[%s49] sm:$0xf]
    %v2863 = vld [vmem:[%s49 + $0x4] sm:$0xf]
    %v2864 = vld [vmem:[%s49 + $0x8] sm:$0xf]
    %v2865 = vld [vmem:[%s49 + $0xc] sm:$0xf]
    %v2866 = vld [vmem:[%s49 + $0x10] sm:$0xf]
    %v2867 = vld [vmem:[%s49 + $0x14] sm:$0xf]
    %v2868 = vld [vmem:[%s49 + $0x18] sm:$0xf]
    %v2869 = vld [vmem:[%s49 + $0x1c] sm:$0xf]
    %v2870 = vpack.c.bf16 %v2861, %v2860
    %v2871 = vld [vmem:[%s51] sm:$0x1]
    %v2873 = vlaneseq
    %v2874 = vshrl.u32 %v2873, 7
    %v2875 = vsub.s32 0, %v2874
    %v2876 = vrot.slane %v2871, %v2875
    %v2886 = vunpack.c.l.b16 %v2862
    %v2887 = vunpack.c.l.b16 %v2863
    %v2888 = vunpack.c.l.b16 %v2864
    %v2889 = vunpack.c.l.b16 %v2865
    %v2890 = vunpack.c.l.b16 %v2866
    %v2891 = vunpack.c.l.b16 %v2867
    %v2892 = vunpack.c.l.b16 %v2868
    %v2893 = vunpack.c.l.b16 %v2869
    %v2894 = vpack.c.b16 %v2887, %v2886
    %v2895 = vpack.c.b16 %v2889, %v2888
    %v2896 = vpack.c.b16 %v2891, %v2890
    %v2897 = vpack.c.b16 %v2893, %v2892
    %v2903 = vsel %vm1574, %v2870, 0
    %2905 = vmatprep.subr.bf16.mxu0 0
    %2906 = vmatpush1.bf16.msra.mxu0 %v2894
    %2907 = vmatprep.subr.bf16.mxu0 0
    %2908 = vmatpush1.bf16.msra.mxu0 %v2895
    %2909 = vmatprep.subr.bf16.mxu0 0
    %2910 = vmatpush1.bf16.msra.mxu0 %v2896
    %2911 = vmatprep.subr.bf16.mxu0 0
    %2912 = vmatpush1.bf16.msra.mxu0 %v2897
    %2913 = vmatprep.subr.bf16.mxu0 0
    %2914 = vmatpush1.bf16.msra.mxu0 0
    %2915 = vmatprep.subr.bf16.mxu0 0
    %2916 = vmatpush1.bf16.msra.mxu0 0
    %2917 = vmatprep.subr.bf16.mxu0 0
    %2918 = vmatpush1.bf16.msra.mxu0 0
    %2919 = vmatprep.subr.bf16.mxu0 0
    %2920 = vmatpush1.bf16.msra.mxu0 0
    %2921 = vmatprep.subr.bf16.mxu0 0
    %2922 = vmatpush1.bf16.msra.mxu0 0
    %2923 = vmatprep.subr.bf16.mxu0 0
    %2924 = vmatpush1.bf16.msra.mxu0 0
    %2925 = vmatprep.subr.bf16.mxu0 0
    %2926 = vmatpush1.bf16.msra.mxu0 0
    %2927 = vmatprep.subr.bf16.mxu0 0
    %2928 = vmatpush1.bf16.msra.mxu0 0
    %2929 = vmatprep.subr.bf16.mxu0 0
    %2930 = vmatpush1.bf16.msra.mxu0 0
    %2931 = vmatprep.subr.bf16.mxu0 0
    %2932 = vmatpush1.bf16.msra.mxu0 0
    %2933 = vmatprep.subr.bf16.mxu0 0
    %2934 = vmatpush1.bf16.msra.mxu0 0
    %2935 = vmatprep.subr.bf16.mxu0 0
    %2936 = vmatpush1.bf16.msra.mxu0 0
    %2937 = vmatprep.mubr.bf16.mxu0 0
    %2938 = vmatmul.mubr.bf16.gmra.mrb[0].mxu0 %v2903
    %v2939 = vpop.f32.mrb[0].mxu0
    %v2940 = vadd.f32 %v2876, %v2939
    %v2941 = vpop.f32.mrb[0].mxu0
    %v2942 = vpop.f32.mrb[0].mxu0
    %v2943 = vadd.f32 %v2876, %v2942
    %v2944 = vpop.f32.mrb[0].mxu0
    %2945 = vdwg.mxu0
    %v2946 = vadd.f32 %v2940, %v2774
    %v2947 = vadd.f32 %v2943, %v2775
    %v2948 = vld [vmem:[%s53] sm:$0x1]
    %v2949 = vld [vmem:[%s55] sm:$0x1]
    %v2950 = vsel %vm279, %v2946, 0.0
    %2951 = vadd.xlane.f32.xlu0 %v2950
    %v2952 = vpop.xlane.xlu0 %2951
    %v2953 = vsel %vm279, %v2947, 0.0
    %2954 = vadd.xlane.f32.xlu0 %v2953
    %v2955 = vpop.xlane.xlu0 %2954
    %v2956 = vmul.f32 %v2952, %v286
    %v2957 = vmul.f32 %v2955, %v286
    %v2958 = vsub.f32 %v2946, %v2956
    %v2959 = vsub.f32 %v2947, %v2957
    %v2960 = vmul.f32 %v2958, %v2958
    %v2961 = vmul.f32 %v2959, %v2959
    %v2962 = vsel %vm279, %v2960, 0.0
    %2963 = vadd.xlane.f32.xlu0 %v2962
    %v2964 = vpop.xlane.xlu0 %2963
    %v2965 = vsel %vm279, %v2961, 0.0
    %2966 = vadd.xlane.f32.xlu0 %v2965
    %v2967 = vpop.xlane.xlu0 %2966
    %v2968 = vmul.f32 %v2964, %v286
    %v2969 = vmul.f32 %v2967, %v286
    %v2970 = vadd.f32 %v2968, 1e-12
    %v2971 = vadd.f32 %v2969, 1e-12
    %v2972 = vrsqrt.pop %v2970
    %v2973 = vrsqrt.pop %v2971
    %v2974 = vmul.f32 %v2958, %v2972
    %v2975 = vmul.f32 %v2959, %v2973
    %v2977 = vlaneseq
    %v2978 = vshrl.u32 %v2977, 7
    %v2979 = vsub.s32 0, %v2978
    %v2980 = vrot.slane %v2948, %v2979
    %v2982 = vmul.f32 %v2974, %v2980
    %v2983 = vmul.f32 %v2975, %v2980
    %v2985 = vlaneseq
    %v2986 = vshrl.u32 %v2985, 7
    %v2987 = vsub.s32 0, %v2986
    %v2988 = vrot.slane %v2949, %v2987
    %v2990 = vadd.f32 %v2982, %v2988
    %v2991 = vadd.f32 %v2983, %v2988
    %v2993 = vrot.slane %v2991, 7
    %vm2995 = vcmask 1040384
    %v2996 = vsel %vm2995, %v2990, %v2993
    %v2997 = vld [vmem:[%s57] sm:$0xf]
    %v2998 = vld [vmem:[%s57 + $0x4] sm:$0xf]
    %v2999 = vld [vmem:[%s57 + $0x8] sm:$0xf]
    %v3000 = vld [vmem:[%s57 + $0xc] sm:$0xf]
    %v3001 = vpack.c.bf16 %v2996, %v2996
    %v3002 = vld [vmem:[%s59] sm:$0x1]
    %v3004 = vlaneseq
    %v3005 = vshrl.u32 %v3004, 7
    %v3006 = vsub.s32 0, %v3005
    %v3007 = vrot.slane %v3002, %v3006
    %v3013 = vunpack.c.l.b16 %v2997
    %v3014 = vunpack.c.l.b16 %v2998
    %v3015 = vunpack.c.l.b16 %v2999
    %v3016 = vunpack.c.l.b16 %v3000
    %v3017 = vpack.c.b16 %v3014, %v3013
    %v3018 = vpack.c.b16 %v3016, %v3015
    %v3022 = vsel %vm279, %v3001, 0
    %3024 = vmatprep.subr.bf16.mxu0 0
    %3025 = vmatpush1.bf16.msra.mxu0 %v3017
    %3026 = vmatprep.subr.bf16.mxu0 0
    %3027 = vmatpush1.bf16.msra.mxu0 %v3018
    %3028 = vmatprep.subr.bf16.mxu0 0
    %3029 = vmatpush1.bf16.msra.mxu0 0
    %3030 = vmatprep.subr.bf16.mxu0 0
    %3031 = vmatpush1.bf16.msra.mxu0 0
    %3032 = vmatprep.subr.bf16.mxu0 0
    %3033 = vmatpush1.bf16.msra.mxu0 0
    %3034 = vmatprep.subr.bf16.mxu0 0
    %3035 = vmatpush1.bf16.msra.mxu0 0
    %3036 = vmatprep.subr.bf16.mxu0 0
    %3037 = vmatpush1.bf16.msra.mxu0 0
    %3038 = vmatprep.subr.bf16.mxu0 0
    %3039 = vmatpush1.bf16.msra.mxu0 0
    %3040 = vmatprep.subr.bf16.mxu0 0
    %3041 = vmatpush1.bf16.msra.mxu0 0
    %3042 = vmatprep.subr.bf16.mxu0 0
    %3043 = vmatpush1.bf16.msra.mxu0 0
    %3044 = vmatprep.subr.bf16.mxu0 0
    %3045 = vmatpush1.bf16.msra.mxu0 0
    %3046 = vmatprep.subr.bf16.mxu0 0
    %3047 = vmatpush1.bf16.msra.mxu0 0
    %3048 = vmatprep.subr.bf16.mxu0 0
    %3049 = vmatpush1.bf16.msra.mxu0 0
    %3050 = vmatprep.subr.bf16.mxu0 0
    %3051 = vmatpush1.bf16.msra.mxu0 0
    %3052 = vmatprep.subr.bf16.mxu0 0
    %3053 = vmatpush1.bf16.msra.mxu0 0
    %3054 = vmatprep.subr.bf16.mxu0 0
    %3055 = vmatpush1.bf16.msra.mxu0 0
    %3056 = vmatprep.mubr.bf16.mxu0 0
    %3057 = vmatmul.mubr.bf16.gmra.mrb[0].mxu0 %v3022
    %v3058 = vpop.f32.mrb[0].mxu0
    %v3059 = vadd.f32 %v3007, %v3058
    %v3060 = vpop.f32.mrb[0].mxu0
    %v3061 = vpop.f32.mrb[0].mxu0
    %v3062 = vpop.f32.mrb[0].mxu0
    %3063 = vdwg.mxu0
    %v3064 = vtanh.pop %v3059
    %v3065 = vld [vmem:[%s61] sm:$0xf]
    %v3066 = vld [vmem:[%s61 + $0x4] sm:$0xf]
    %v3067 = vld [vmem:[%s61 + $0x8] sm:$0xf]
    %v3068 = vld [vmem:[%s61 + $0xc] sm:$0xf]
    %v3069 = vpack.c.bf16 %v3064, %v3064
    %v3070 = vld [vmem:[%s63] sm:$0x1]
    %v3072 = vlaneseq
    %v3073 = vshrl.u32 %v3072, 7
    %v3074 = vsub.s32 0, %v3073
    %v3075 = vrot.slane %v3070, %v3074
    %v3081 = vunpack.c.l.b16 %v3065
    %v3082 = vunpack.c.l.b16 %v3066
    %v3083 = vunpack.c.l.b16 %v3067
    %v3084 = vunpack.c.l.b16 %v3068
    %v3085 = vpack.c.b16 %v3082, %v3081
    %v3086 = vpack.c.b16 %v3084, %v3083
    %v3090 = vsel %vm279, %v3069, 0
    %3092 = vmatprep.subr.bf16.mxu0 0
    %3093 = vmatpush1.bf16.msra.mxu0 %v3085
    %3094 = vmatprep.subr.bf16.mxu0 0
    %3095 = vmatpush1.bf16.msra.mxu0 %v3086
    %3096 = vmatprep.subr.bf16.mxu0 0
    %3097 = vmatpush1.bf16.msra.mxu0 0
    %3098 = vmatprep.subr.bf16.mxu0 0
    %3099 = vmatpush1.bf16.msra.mxu0 0
    %3100 = vmatprep.subr.bf16.mxu0 0
    %3101 = vmatpush1.bf16.msra.mxu0 0
    %3102 = vmatprep.subr.bf16.mxu0 0
    %3103 = vmatpush1.bf16.msra.mxu0 0
    %3104 = vmatprep.subr.bf16.mxu0 0
    %3105 = vmatpush1.bf16.msra.mxu0 0
    %3106 = vmatprep.subr.bf16.mxu0 0
    %3107 = vmatpush1.bf16.msra.mxu0 0
    %3108 = vmatprep.subr.bf16.mxu0 0
    %3109 = vmatpush1.bf16.msra.mxu0 0
    %3110 = vmatprep.subr.bf16.mxu0 0
    %3111 = vmatpush1.bf16.msra.mxu0 0
    %3112 = vmatprep.subr.bf16.mxu0 0
    %3113 = vmatpush1.bf16.msra.mxu0 0
    %3114 = vmatprep.subr.bf16.mxu0 0
    %3115 = vmatpush1.bf16.msra.mxu0 0
    %3116 = vmatprep.subr.bf16.mxu0 0
    %3117 = vmatpush1.bf16.msra.mxu0 0
    %3118 = vmatprep.subr.bf16.mxu0 0
    %3119 = vmatpush1.bf16.msra.mxu0 0
    %3120 = vmatprep.subr.bf16.mxu0 0
    %3121 = vmatpush1.bf16.msra.mxu0 0
    %3122 = vmatprep.subr.bf16.mxu0 0
    %3123 = vmatpush1.bf16.msra.mxu0 0
    %3124 = vmatprep.mubr.bf16.mxu0 0
    %3125 = vmatmul.mubr.bf16.gmra.mrb[0].mxu0 %v3090
    %v3126 = vpop.f32.mrb[0].mxu0
    %v3127 = vadd.f32 %v3075, %v3126
    %v3128 = vpop.f32.mrb[0].mxu0
    %v3129 = vpop.f32.mrb[0].mxu0
    %v3130 = vpop.f32.mrb[0].mxu0
    %3131 = vdwg.mxu0
    %3132 = vst [vmem:[#allocation23] sm:$0x3] %v3127
    // Predicated region
    $region178: #{tpu_custom_call.1} parent=1 // pred_check
      _
    $region179: #{tpu_custom_call.1} parent=1 // pred_check_branch
      %3134 = sbr.rel (0) target = $region181
    $region180: #{tpu_custom_call.1} parent=1 // pred_region
      %s3136 = ssub.s32 32, 32
      %3137 = vsyncadd [#allocation5], %s3136
      %s3139 = sshll.u32 [#allocation23], 4
      %s3140 = int_to_ptr.vmem [resolvable:$true] %s3139
      %3142 = dma.vmem_to_hbm [thread:$0]  %s3140, 32, %s65, [#allocation5]
    $region181: #{tpu_custom_call.1} parent=1 // pred_fallthru
      _
    // Predicated region
    $region182: #{tpu_custom_call.1} parent=1 // pred_check
      _
    $region183: #{tpu_custom_call.1} parent=1 // pred_check_branch
      %3144 = sbr.rel (0) target = $region185
    $region184: #{tpu_custom_call.1} parent=1 // pred_region
      %3145 = dma.done [#allocation5], 32
    $region185: #{tpu_custom_call.1} parent=1 // pred_fallthru
      _
    %3146 = vsyncpa [#allocation4], 1
    %3147 = vsyncpa [#allocation7], 1
    %3148 = vsyncpa [#allocation10], 1
    %3149 = vsyncpa [#allocation13], 1
    %3150 = vsyncpa [#allocation16], 1
    %3151 = vsyncpa [#allocation19], 1
    %3152 = vsyncpa [#allocation22], 1
    %3153 = vsyncpa [#allocation5], 1

</llo_original>
